<compile_context>
chip_gen: v7x
topology: tpu7x:2x2x1
jax: 0.10.0
libtpu: 0.0.40
codegen_flags: <defaults>
</compile_context>

<pallas_src>
from functools import partial

import jax
import jax.numpy as jnp
from jax.experimental import pallas as pl
from jax.experimental.pallas import tpu as pltpu


# ------------------------------ fused kernel ---------------------------------
def dqn_fused_kernel(x_ref, w1_ref, b1_ref, w2_ref, b2_ref,
                     wh_ref, bh_ref, wo_ref, bo_ref, out_ref, *, n_actions):
    # x_ref : (L1*B, C*K)  pre-im2col'd state, rows ordered (l1, b), cols (c, k)
    # w1_ref: (C*K, C1)    conv1 as one im2col matrix
    # b1_ref: (1, C1)
    # w2_ref: (K, C1, C2)  conv2 taps
    # b2_ref: (1, C2)
    # wh_ref: (F, 2H)      [wv1 | wa1], rows permuted to (l*C2 + c) order
    # bh_ref: (1, 2H)
    # wo_ref: (2H, 128)    block-diagonal [wv2 ; wa2], zero-padded to 128 lanes
    # bo_ref: (1, 128)
    # out_ref: (B, 128)    lanes 1..A hold Q(s, a); other lanes are padding
    f32 = jnp.float32
    K, C1, C2 = w2_ref.shape
    B = out_ref.shape[0]
    L1 = x_ref.shape[0] // B
    L2 = L1 - K + 1
    cdt = wh_ref.dtype               # weight storage / MXU dtype for head GEMMs

    # ---- conv trunk (f32 activations; tiny conv weights upcast once) ----
    x = x_ref[...].astype(f32)                                     # (L1*B, C*K)
    h1 = jnp.dot(x, w1_ref[...].astype(f32), preferred_element_type=f32)
    h1 = jnp.maximum(h1 + b1_ref[...], 0.0)                        # (L1*B, C1) rows (l1, b)

    w2 = w2_ref[...].astype(f32)                                   # (K, C1, C2)
    h2 = jnp.zeros((L2 * B, C2), f32)
    for k in range(K):                                             # K accumulating taps,
        h2 = h2 + jnp.dot(h1[k * B:(k + L2) * B, :], w2[k],        # contiguous row slices
                          preferred_element_type=f32)
    h2 = jnp.maximum(h2 + b2_ref[...], 0.0)                        # (L2*B, C2) rows (l2, b)

    # ---- dueling heads (batch on the M axis) ----
    # torch's .view(B, -1) flatten is folded into wh's row order (l*C2 + c):
    # accumulate the head-1 GEMM over the L2 row-slices of h2 - no flatten
    # scratch, no relayout.  Accumulation is f32; only the tiny (B, C2)
    # activation tiles are cast to the weight dtype.
    acc = jnp.zeros((B, wh_ref.shape[1]), f32)
    for l in range(L2):
        acc = acc + jnp.dot(h2[l * B:(l + 1) * B, :].astype(cdt),
                            wh_ref[l * C2:(l + 1) * C2, :],
                            preferred_element_type=f32)
    hh = jnp.maximum(acc + bh_ref[...], 0.0)                       # (B, 2H) = [hv | ha]

    # head-2: block-diagonal [wv2 ; wa2], lane-dense (zero-padded) result.
    va = (jnp.dot(hh.astype(cdt), wo_ref[...], preferred_element_type=f32)
          + bo_ref[...])                                           # (B, 128)
    # va lanes: [val, adv_0..adv_{A-1}, 0, ...]. Padding columns are exactly 0
    # (zero weights + zero bias), so the advantage mean is (row_sum - val) / A
    # -- divide by A, never by the padded width.
    adv_mean = (jnp.sum(va, axis=1, keepdims=True) - va[:, 0:1]) * (1.0 / n_actions)
    q = va[:, 0:1] + va - adv_mean                                 # lanes 1..A = Q(s, a)
    out_ref[...] = q.astype(out_ref.dtype)


# --------------------- one-time host-side weight prep -------------------------
def prepare_params(p, weight_dtype=jnp.bfloat16, out_pad=128):
    """Run once, reuse every step (all relayout hoisted out of the forward)."""
    w1, w2 = p["w1"], p["w2"]                  # (C1, C, K), (C2, C1, K)
    C1, C, K = w1.shape
    C2 = w2.shape[0]
    H, F = p["wv1"].shape                      # (512, C2*L2)
    L2 = F // C2
    A = p["wa2"].shape[0]
    wd = weight_dtype

    # Conv1 as a single im2col matrix: row index c*K + k, cols = out channels.
    w1_mat = w1.reshape(C1, C * K).T
    # Conv2 taps with output channels lane-dense.
    w2_t = jnp.transpose(w2, (2, 1, 0))        # (K, C1, C2)

    # Head first layers: permute rows from torch flatten order (c*L2 + l) to
    # the kernel's order (l*C2 + c), then concat [val | adv] on the columns.
    def permute_rows(w):                       # (H, F) -> (F, H)
        return jnp.transpose(w.reshape(H, C2, L2), (2, 1, 0)).reshape(F, H)

    wh = jnp.concatenate([permute_rows(p["wv1"]), permute_rows(p["wa1"])], axis=1)
    bh = jnp.concatenate([p["bv1"], p["ba1"]]).reshape(1, 2 * H)

    # Head second layers: block-diagonal RHS, zero-padded to a 128-lane tile.
    # col 0 = value, cols 1..A = advantages, the rest exactly zero.
    wo = jnp.zeros((2 * H, out_pad), jnp.float32)
    wo = wo.at[:H, 0:1].set(p["wv2"].T)
    wo = wo.at[H:, 1:1 + A].set(p["wa2"].T)
    bo = jnp.zeros((1, out_pad), jnp.float32)
    bo = bo.at[0, 0].set(p["bv2"][0])
    bo = bo.at[0, 1:1 + A].set(p["ba2"])

    return {
        "w1": w1_mat.astype(wd), "b1": p["b1"].reshape(1, C1).astype(jnp.float32),
        "w2": w2_t.astype(wd),   "b2": p["b2"].reshape(1, C2).astype(jnp.float32),
        "wh": wh.astype(wd),     "bh": bh.astype(jnp.float32),
        "wo": wo.astype(wd),     "bo": bo.astype(jnp.float32),
    }


def _im2col(x, K):
    # x: (N, B, C, L) -> (N, L1*B, C*K); rows ordered (l1, b), cols (c, k).
    N, B, C, L = x.shape
    L1 = L - K + 1
    taps = jnp.stack([x[..., k:k + L1] for k in range(K)], axis=-1)  # (N,B,C,L1,K)
    cols = jnp.transpose(taps, (0, 3, 1, 2, 4))                      # (N,L1,B,C,K)
    return cols.reshape(N, L1 * B, C * K)


# ---------------------------------- forward -----------------------------------
@partial(jax.jit, static_argnames=("actions_n",))
def dqn_conv1d_forward(x, pp, *, actions_n):
    """x: (N, B, C, L) batch of N states, or a single (B, C, L) state."""
    squeeze = x.ndim == 3
    if squeeze:
        x = x[None]
    N, B, C, L = x.shape
    CK, C1 = pp["w1"].shape
    K, _, C2 = pp["w2"].shape
    F, H2 = pp["wh"].shape
    OUT = pp["wo"].shape[1]
    L1 = L - K + 1
    L2 = L1 - K + 1
    assert C * K == CK and F == L2 * C2

    x_cols = _im2col(x.astype(jnp.float32), K)        # tiny wrapper-side op

    const2 = lambda s: (0, 0)
    const3 = lambda s: (0, 0, 0)
    grid_spec = pltpu.PrefetchScalarGridSpec(
        num_scalar_prefetch=0,
        grid=(N,),
        in_specs=[
            # one state per grid step
            pl.BlockSpec((None, L1 * B, CK), lambda s: (s, 0, 0)),
            # weights: constant index maps -> DMA'd once, VMEM-resident across steps
            pl.BlockSpec((CK, C1), const2),
            pl.BlockSpec((1, C1), const2),
            pl.BlockSpec((K, C1, C2), const3),
            pl.BlockSpec((1, C2), const2),
            pl.BlockSpec((F, H2), const2),
            pl.BlockSpec((1, H2), const2),
            pl.BlockSpec((H2, OUT), const2),
            pl.BlockSpec((1, OUT), const2),
        ],
        out_specs=pl.BlockSpec((None, B, OUT), lambda s: (s, 0, 0)),
    )
    q_pad = pl.pallas_call(
        partial(dqn_fused_kernel, n_actions=actions_n),
        out_shape=jax.ShapeDtypeStruct((N, B, OUT), jnp.float32),
        grid_spec=grid_spec,
        compiler_params=pltpu.CompilerParams(
            dimension_semantics=("parallel",),        # v7x: split states across TCs
            vmem_limit_bytes=32 * 1024 * 1024),
    )(x_cols, pp["w1"], pp["b1"], pp["w2"], pp["b2"],
      pp["wh"], pp["bh"], pp["wo"], pp["bo"])

    q = q_pad[..., 1:1 + actions_n]                   # drop lane padding -> (N, B, A)
    return q[0] if squeeze else q


# --------------------------- pure-JAX reference --------------------------------
def dqn_conv1d_reference(x, p):
    dn = ("NCH", "OIH", "NCH")
    h = jax.lax.conv_general_dilated(x, p["w1"], (1,), "VALID", dimension_numbers=dn)
    h = jnp.maximum(h + p["b1"][None, :, None], 0.0)
    h = jax.lax.conv_general_dilated(h, p["w2"], (1,), "VALID", dimension_numbers=dn)
    h = jnp.maximum(h + p["b2"][None, :, None], 0.0)
    co = h.reshape(x.shape[0], -1)
    hv = jnp.maximum(co @ p["wv1"].T + p["bv1"], 0.0)
    val = hv @ p["wv2"].T + p["bv2"]
    ha = jnp.maximum(co @ p["wa1"].T + p["ba1"], 0.0)
    adv = ha @ p["wa2"].T + p["ba2"]
    return val + adv - jnp.mean(adv, axis=1, keepdims=True)


if __name__ == "__main__":
    # shape = (C, L) = (4, 16), actions_n = 3, batch = 2, N = 8 states per call.
    B, C, L, A, K = 2, 4, 16, 3, 5
    N_STEPS = 8
    L2 = L - 2 * (K - 1)
    F = 128 * L2                                      # conv trunk output size = 1024

    key = jax.random.PRNGKey(0)
    ks = jax.random.split(key, 13)

    def init(k, shape, fan_in):
        return (jax.random.normal(k, shape, dtype=jnp.float32)
                / jnp.sqrt(jnp.float32(fan_in)))

    params = {
        "w1": init(ks[0], (128, C, K), C * K),
        "b1": init(ks[1], (128,), C * K),
        "w2": init(ks[2], (128, 128, K), 128 * K),
        "b2": init(ks[3], (128,), 128 * K),
        "wv1": init(ks[4], (512, F), F),
        "bv1": init(ks[5], (512,), F),
        "wv2": init(ks[6], (1, 512), 512),
        "bv2": init(ks[7], (1,), 512),
        "wa1": init(ks[8], (512, F), F),
        "ba1": init(ks[9], (512,), F),
        "wa2": init(ks[10], (A, 512), 512),
        "ba2": init(ks[11], (A,), 512),
    }
    x = jax.random.normal(ks[12], (N_STEPS, B, C, L), dtype=jnp.float32)

    ref = jax.block_until_ready(
        jax.vmap(dqn_conv1d_reference, in_axes=(0, None))(x, params))

    # f32 weights: strict check against the pure-JAX reference.
    pp_f32 = prepare_params(params, weight_dtype=jnp.float32)
    out = jax.block_until_ready(dqn_conv1d_forward(x, pp_f32, actions_n=A))
    assert out.shape == (N_STEPS, B, A), out.shape
    assert jnp.allclose(out, ref, atol=1e-4, rtol=1e-4), (out, ref)

    # Single-state (module-shaped) call still works.
    out1 = jax.block_until_ready(dqn_conv1d_forward(x[0], pp_f32, actions_n=A))
    assert out1.shape == (B, A), out1.shape
    assert jnp.allclose(out1, ref[0], atol=1e-4, rtol=1e-4), (out1, ref[0])

    # Default: bf16 weight storage (weights-only; f32 activations/accumulation).
    pp_bf16 = prepare_params(params)
    out_bf16 = jax.block_until_ready(dqn_conv1d_forward(x, pp_bf16, actions_n=A))
    assert out_bf16.shape == (N_STEPS, B, A), out_bf16.shape
    assert jnp.allclose(out_bf16, ref, atol=5e-2, rtol=5e-2), (out_bf16, ref)

    print("KERNEL_OK")
</pallas_src>

<mosaic_0001>
module attributes {stable_mosaic.version = 11 : i64} {
  func.func @dqn_fused_kernel(%arg0: i32, %arg1: memref<1x24x20xf32, #tpu.memory_space<vmem>>, %arg2: memref<20x128xf32, #tpu.memory_space<vmem>>, %arg3: memref<1x128xf32, #tpu.memory_space<vmem>>, %arg4: memref<5x128x128xf32, #tpu.memory_space<vmem>>, %arg5: memref<1x128xf32, #tpu.memory_space<vmem>>, %arg6: memref<1024x1024xf32, #tpu.memory_space<vmem>>, %arg7: memref<1x1024xf32, #tpu.memory_space<vmem>>, %arg8: memref<1024x128xf32, #tpu.memory_space<vmem>>, %arg9: memref<1x128xf32, #tpu.memory_space<vmem>>, %arg10: memref<1x2x128xf32, #tpu.memory_space<vmem>>) attributes {dimension_semantics = [#tpu.dimension_semantics<parallel>], iteration_bounds = array<i64: 8>, scalar_prefetch = 0 : i64, scratch_operands = 0 : i64, tpu.core_type = #tpu.core_type<tc>, window_params = [{transform_indices = @transform_0, window_bounds = array<i64: 1, 24, 20>}, {pipeline_mode = #tpu.pipeline_mode<synchronous>, transform_indices = @transform_1, window_bounds = array<i64: 20, 128>}, {pipeline_mode = #tpu.pipeline_mode<synchronous>, transform_indices = @transform_2, window_bounds = array<i64: 1, 128>}, {pipeline_mode = #tpu.pipeline_mode<synchronous>, transform_indices = @transform_3, window_bounds = array<i64: 5, 128, 128>}, {pipeline_mode = #tpu.pipeline_mode<synchronous>, transform_indices = @transform_4, window_bounds = array<i64: 1, 128>}, {pipeline_mode = #tpu.pipeline_mode<synchronous>, transform_indices = @transform_5, window_bounds = array<i64: 1024, 1024>}, {pipeline_mode = #tpu.pipeline_mode<synchronous>, transform_indices = @transform_6, window_bounds = array<i64: 1, 1024>}, {pipeline_mode = #tpu.pipeline_mode<synchronous>, transform_indices = @transform_7, window_bounds = array<i64: 1024, 128>}, {pipeline_mode = #tpu.pipeline_mode<synchronous>, transform_indices = @transform_8, window_bounds = array<i64: 1, 128>}, {transform_indices = @transform_9, window_bounds = array<i64: 1, 2, 128>}]} {
    %c0 = arith.constant 0 : index
    %c0_0 = arith.constant 0 : index
    %c0_1 = arith.constant 0 : index
    %0 = vector.load %arg1[%c0, %c0_0, %c0_1] : memref<1x24x20xf32, #tpu.memory_space<vmem>>, vector<1x24x20xf32>
    %1 = vector.shape_cast %0 : vector<1x24x20xf32> to vector<24x20xf32>
    %c0_2 = arith.constant 0 : index
    %c0_3 = arith.constant 0 : index
    %2 = vector.load %arg2[%c0_2, %c0_3] : memref<20x128xf32, #tpu.memory_space<vmem>>, vector<20x128xf32>
    %cst = arith.constant dense<0.000000e+00> : vector<24x128xf32>
    %3 = tpu.matmul %1, %2, %cst {dimension_numbers = #tpu.dot_dimension_numbers<[1], [0], [0], [1], [0, 0, 1, 1], [], []>} : vector<24x20xf32>, vector<20x128xf32>, vector<24x128xf32> -> vector<24x128xf32>
    %c0_4 = arith.constant 0 : index
    %c0_5 = arith.constant 0 : index
    %4 = vector.load %arg3[%c0_4, %c0_5] : memref<1x128xf32, #tpu.memory_space<vmem>>, vector<1x128xf32>
    %5 = vector.broadcast %4 : vector<1x128xf32> to vector<24x128xf32>
    %6 = arith.addf %3, %5 : vector<24x128xf32>
    %cst_6 = arith.constant 0.000000e+00 : f32
    %7 = vector.broadcast %cst_6 : f32 to vector<24x128xf32>
    %8 = arith.maximumf %6, %7 : vector<24x128xf32>
    %c0_7 = arith.constant 0 : index
    %c0_8 = arith.constant 0 : index
    %c0_9 = arith.constant 0 : index
    %9 = vector.load %arg4[%c0_7, %c0_8, %c0_9] : memref<5x128x128xf32, #tpu.memory_space<vmem>>, vector<5x128x128xf32>
    %cst_10 = arith.constant 0.000000e+00 : f32
    %10 = vector.broadcast %cst_10 : f32 to vector<16x128xf32>
    %11 = vector.extract_strided_slice %8 {offsets = [0, 0], sizes = [16, 128], strides = [1, 1]} : vector<24x128xf32> to vector<16x128xf32>
    %12 = vector.extract_strided_slice %9 {offsets = [0, 0, 0], sizes = [1, 128, 128], strides = [1, 1, 1]} : vector<5x128x128xf32> to vector<1x128x128xf32>
    %13 = vector.shape_cast %12 : vector<1x128x128xf32> to vector<128x128xf32>
    %cst_11 = arith.constant dense<0.000000e+00> : vector<16x128xf32>
    %14 = tpu.matmul %11, %13, %cst_11 {dimension_numbers = #tpu.dot_dimension_numbers<[1], [0], [0], [1], [0, 0, 1, 1], [], []>} : vector<16x128xf32>, vector<128x128xf32>, vector<16x128xf32> -> vector<16x128xf32>
    %15 = arith.addf %10, %14 : vector<16x128xf32>
    %16 = vector.extract_strided_slice %8 {offsets = [2, 0], sizes = [16, 128], strides = [1, 1]} : vector<24x128xf32> to vector<16x128xf32>
    %17 = vector.extract_strided_slice %9 {offsets = [1, 0, 0], sizes = [1, 128, 128], strides = [1, 1, 1]} : vector<5x128x128xf32> to vector<1x128x128xf32>
    %18 = vector.shape_cast %17 : vector<1x128x128xf32> to vector<128x128xf32>
    %cst_12 = arith.constant dense<0.000000e+00> : vector<16x128xf32>
    %19 = tpu.matmul %16, %18, %cst_12 {dimension_numbers = #tpu.dot_dimension_numbers<[1], [0], [0], [1], [0, 0, 1, 1], [], []>} : vector<16x128xf32>, vector<128x128xf32>, vector<16x128xf32> -> vector<16x128xf32>
    %20 = arith.addf %15, %19 : vector<16x128xf32>
    %21 = vector.extract_strided_slice %8 {offsets = [4, 0], sizes = [16, 128], strides = [1, 1]} : vector<24x128xf32> to vector<16x128xf32>
    %22 = vector.extract_strided_slice %9 {offsets = [2, 0, 0], sizes = [1, 128, 128], strides = [1, 1, 1]} : vector<5x128x128xf32> to vector<1x128x128xf32>
    %23 = vector.shape_cast %22 : vector<1x128x128xf32> to vector<128x128xf32>
    %cst_13 = arith.constant dense<0.000000e+00> : vector<16x128xf32>
    %24 = tpu.matmul %21, %23, %cst_13 {dimension_numbers = #tpu.dot_dimension_numbers<[1], [0], [0], [1], [0, 0, 1, 1], [], []>} : vector<16x128xf32>, vector<128x128xf32>, vector<16x128xf32> -> vector<16x128xf32>
    %25 = arith.addf %20, %24 : vector<16x128xf32>
    %26 = vector.extract_strided_slice %8 {offsets = [6, 0], sizes = [16, 128], strides = [1, 1]} : vector<24x128xf32> to vector<16x128xf32>
    %27 = vector.extract_strided_slice %9 {offsets = [3, 0, 0], sizes = [1, 128, 128], strides = [1, 1, 1]} : vector<5x128x128xf32> to vector<1x128x128xf32>
    %28 = vector.shape_cast %27 : vector<1x128x128xf32> to vector<128x128xf32>
    %cst_14 = arith.constant dense<0.000000e+00> : vector<16x128xf32>
    %29 = tpu.matmul %26, %28, %cst_14 {dimension_numbers = #tpu.dot_dimension_numbers<[1], [0], [0], [1], [0, 0, 1, 1], [], []>} : vector<16x128xf32>, vector<128x128xf32>, vector<16x128xf32> -> vector<16x128xf32>
    %30 = arith.addf %25, %29 : vector<16x128xf32>
    %31 = vector.extract_strided_slice %8 {offsets = [8, 0], sizes = [16, 128], strides = [1, 1]} : vector<24x128xf32> to vector<16x128xf32>
    %32 = vector.extract_strided_slice %9 {offsets = [4, 0, 0], sizes = [1, 128, 128], strides = [1, 1, 1]} : vector<5x128x128xf32> to vector<1x128x128xf32>
    %33 = vector.shape_cast %32 : vector<1x128x128xf32> to vector<128x128xf32>
    %cst_15 = arith.constant dense<0.000000e+00> : vector<16x128xf32>
    %34 = tpu.matmul %31, %33, %cst_15 {dimension_numbers = #tpu.dot_dimension_numbers<[1], [0], [0], [1], [0, 0, 1, 1], [], []>} : vector<16x128xf32>, vector<128x128xf32>, vector<16x128xf32> -> vector<16x128xf32>
    %35 = arith.addf %30, %34 : vector<16x128xf32>
    %c0_16 = arith.constant 0 : index
    %c0_17 = arith.constant 0 : index
    %36 = vector.load %arg5[%c0_16, %c0_17] : memref<1x128xf32, #tpu.memory_space<vmem>>, vector<1x128xf32>
    %37 = vector.broadcast %36 : vector<1x128xf32> to vector<16x128xf32>
    %38 = arith.addf %35, %37 : vector<16x128xf32>
    %cst_18 = arith.constant 0.000000e+00 : f32
    %39 = vector.broadcast %cst_18 : f32 to vector<16x128xf32>
    %40 = arith.maximumf %38, %39 : vector<16x128xf32>
    %cst_19 = arith.constant 0.000000e+00 : f32
    %41 = vector.broadcast %cst_19 : f32 to vector<2x1024xf32>
    %42 = vector.extract_strided_slice %40 {offsets = [0, 0], sizes = [2, 128], strides = [1, 1]} : vector<16x128xf32> to vector<2x128xf32>
    %c0_20 = arith.constant 0 : index
    %c0_21 = arith.constant 0 : index
    %43 = vector.load %arg6[%c0_20, %c0_21] : memref<1024x1024xf32, #tpu.memory_space<vmem>>, vector<128x1024xf32>
    %cst_22 = arith.constant dense<0.000000e+00> : vector<2x1024xf32>
    %44 = tpu.matmul %42, %43, %cst_22 {dimension_numbers = #tpu.dot_dimension_numbers<[1], [0], [0], [1], [0, 0, 1, 1], [], []>} : vector<2x128xf32>, vector<128x1024xf32>, vector<2x1024xf32> -> vector<2x1024xf32>
    %45 = arith.addf %41, %44 : vector<2x1024xf32>
    %46 = vector.extract_strided_slice %40 {offsets = [2, 0], sizes = [2, 128], strides = [1, 1]} : vector<16x128xf32> to vector<2x128xf32>
    %c128 = arith.constant 128 : index
    %c0_23 = arith.constant 0 : index
    %47 = vector.load %arg6[%c128, %c0_23] : memref<1024x1024xf32, #tpu.memory_space<vmem>>, vector<128x1024xf32>
    %cst_24 = arith.constant dense<0.000000e+00> : vector<2x1024xf32>
    %48 = tpu.matmul %46, %47, %cst_24 {dimension_numbers = #tpu.dot_dimension_numbers<[1], [0], [0], [1], [0, 0, 1, 1], [], []>} : vector<2x128xf32>, vector<128x1024xf32>, vector<2x1024xf32> -> vector<2x1024xf32>
    %49 = arith.addf %45, %48 : vector<2x1024xf32>
    %50 = vector.extract_strided_slice %40 {offsets = [4, 0], sizes = [2, 128], strides = [1, 1]} : vector<16x128xf32> to vector<2x128xf32>
    %c256 = arith.constant 256 : index
    %c0_25 = arith.constant 0 : index
    %51 = vector.load %arg6[%c256, %c0_25] : memref<1024x1024xf32, #tpu.memory_space<vmem>>, vector<128x1024xf32>
    %cst_26 = arith.constant dense<0.000000e+00> : vector<2x1024xf32>
    %52 = tpu.matmul %50, %51, %cst_26 {dimension_numbers = #tpu.dot_dimension_numbers<[1], [0], [0], [1], [0, 0, 1, 1], [], []>} : vector<2x128xf32>, vector<128x1024xf32>, vector<2x1024xf32> -> vector<2x1024xf32>
    %53 = arith.addf %49, %52 : vector<2x1024xf32>
    %54 = vector.extract_strided_slice %40 {offsets = [6, 0], sizes = [2, 128], strides = [1, 1]} : vector<16x128xf32> to vector<2x128xf32>
    %c384 = arith.constant 384 : index
    %c0_27 = arith.constant 0 : index
    %55 = vector.load %arg6[%c384, %c0_27] : memref<1024x1024xf32, #tpu.memory_space<vmem>>, vector<128x1024xf32>
    %cst_28 = arith.constant dense<0.000000e+00> : vector<2x1024xf32>
    %56 = tpu.matmul %54, %55, %cst_28 {dimension_numbers = #tpu.dot_dimension_numbers<[1], [0], [0], [1], [0, 0, 1, 1], [], []>} : vector<2x128xf32>, vector<128x1024xf32>, vector<2x1024xf32> -> vector<2x1024xf32>
    %57 = arith.addf %53, %56 : vector<2x1024xf32>
    %58 = vector.extract_strided_slice %40 {offsets = [8, 0], sizes = [2, 128], strides = [1, 1]} : vector<16x128xf32> to vector<2x128xf32>
    %c512 = arith.constant 512 : index
    %c0_29 = arith.constant 0 : index
    %59 = vector.load %arg6[%c512, %c0_29] : memref<1024x1024xf32, #tpu.memory_space<vmem>>, vector<128x1024xf32>
    %cst_30 = arith.constant dense<0.000000e+00> : vector<2x1024xf32>
    %60 = tpu.matmul %58, %59, %cst_30 {dimension_numbers = #tpu.dot_dimension_numbers<[1], [0], [0], [1], [0, 0, 1, 1], [], []>} : vector<2x128xf32>, vector<128x1024xf32>, vector<2x1024xf32> -> vector<2x1024xf32>
    %61 = arith.addf %57, %60 : vector<2x1024xf32>
    %62 = vector.extract_strided_slice %40 {offsets = [10, 0], sizes = [2, 128], strides = [1, 1]} : vector<16x128xf32> to vector<2x128xf32>
    %c640 = arith.constant 640 : index
    %c0_31 = arith.constant 0 : index
    %63 = vector.load %arg6[%c640, %c0_31] : memref<1024x1024xf32, #tpu.memory_space<vmem>>, vector<128x1024xf32>
    %cst_32 = arith.constant dense<0.000000e+00> : vector<2x1024xf32>
    %64 = tpu.matmul %62, %63, %cst_32 {dimension_numbers = #tpu.dot_dimension_numbers<[1], [0], [0], [1], [0, 0, 1, 1], [], []>} : vector<2x128xf32>, vector<128x1024xf32>, vector<2x1024xf32> -> vector<2x1024xf32>
    %65 = arith.addf %61, %64 : vector<2x1024xf32>
    %66 = vector.extract_strided_slice %40 {offsets = [12, 0], sizes = [2, 128], strides = [1, 1]} : vector<16x128xf32> to vector<2x128xf32>
    %c768 = arith.constant 768 : index
    %c0_33 = arith.constant 0 : index
    %67 = vector.load %arg6[%c768, %c0_33] : memref<1024x1024xf32, #tpu.memory_space<vmem>>, vector<128x1024xf32>
    %cst_34 = arith.constant dense<0.000000e+00> : vector<2x1024xf32>
    %68 = tpu.matmul %66, %67, %cst_34 {dimension_numbers = #tpu.dot_dimension_numbers<[1], [0], [0], [1], [0, 0, 1, 1], [], []>} : vector<2x128xf32>, vector<128x1024xf32>, vector<2x1024xf32> -> vector<2x1024xf32>
    %69 = arith.addf %65, %68 : vector<2x1024xf32>
    %70 = vector.extract_strided_slice %40 {offsets = [14, 0], sizes = [2, 128], strides = [1, 1]} : vector<16x128xf32> to vector<2x128xf32>
    %c896 = arith.constant 896 : index
    %c0_35 = arith.constant 0 : index
    %71 = vector.load %arg6[%c896, %c0_35] : memref<1024x1024xf32, #tpu.memory_space<vmem>>, vector<128x1024xf32>
    %cst_36 = arith.constant dense<0.000000e+00> : vector<2x1024xf32>
    %72 = tpu.matmul %70, %71, %cst_36 {dimension_numbers = #tpu.dot_dimension_numbers<[1], [0], [0], [1], [0, 0, 1, 1], [], []>} : vector<2x128xf32>, vector<128x1024xf32>, vector<2x1024xf32> -> vector<2x1024xf32>
    %73 = arith.addf %69, %72 : vector<2x1024xf32>
    %c0_37 = arith.constant 0 : index
    %c0_38 = arith.constant 0 : index
    %74 = vector.load %arg7[%c0_37, %c0_38] : memref<1x1024xf32, #tpu.memory_space<vmem>>, vector<1x1024xf32>
    %75 = vector.broadcast %74 : vector<1x1024xf32> to vector<2x1024xf32>
    %76 = arith.addf %73, %75 : vector<2x1024xf32>
    %cst_39 = arith.constant 0.000000e+00 : f32
    %77 = vector.broadcast %cst_39 : f32 to vector<2x1024xf32>
    %78 = arith.maximumf %76, %77 : vector<2x1024xf32>
    %c0_40 = arith.constant 0 : index
    %c0_41 = arith.constant 0 : index
    %79 = vector.load %arg8[%c0_40, %c0_41] : memref<1024x128xf32, #tpu.memory_space<vmem>>, vector<1024x128xf32>
    %cst_42 = arith.constant dense<0.000000e+00> : vector<2x128xf32>
    %80 = tpu.matmul %78, %79, %cst_42 {dimension_numbers = #tpu.dot_dimension_numbers<[1], [0], [0], [1], [0, 0, 1, 1], [], []>} : vector<2x1024xf32>, vector<1024x128xf32>, vector<2x128xf32> -> vector<2x128xf32>
    %c0_43 = arith.constant 0 : index
    %c0_44 = arith.constant 0 : index
    %81 = vector.load %arg9[%c0_43, %c0_44] : memref<1x128xf32, #tpu.memory_space<vmem>>, vector<1x128xf32>
    %82 = vector.broadcast %81 : vector<1x128xf32> to vector<2x128xf32>
    %83 = arith.addf %80, %82 : vector<2x128xf32>
    %cst_45 = arith.constant dense<0.000000e+00> : vector<2xf32>
    %84 = vector.multi_reduction <add>, %83, %cst_45 [1] : vector<2x128xf32> to vector<2xf32>
    %85 = vector.shape_cast %84 : vector<2xf32> to vector<2x1xf32>
    %86 = vector.extract_strided_slice %83 {offsets = [0, 0], sizes = [2, 1], strides = [1, 1]} : vector<2x128xf32> to vector<2x1xf32>
    %87 = arith.subf %85, %86 : vector<2x1xf32>
    %cst_46 = arith.constant 0.333333343 : f32
    %88 = vector.broadcast %cst_46 : f32 to vector<2x1xf32>
    %89 = arith.mulf %87, %88 : vector<2x1xf32>
    %90 = vector.extract_strided_slice %83 {offsets = [0, 0], sizes = [2, 1], strides = [1, 1]} : vector<2x128xf32> to vector<2x1xf32>
    %91 = vector.broadcast %90 : vector<2x1xf32> to vector<2x128xf32>
    %92 = arith.addf %91, %83 : vector<2x128xf32>
    %93 = vector.broadcast %89 : vector<2x1xf32> to vector<2x128xf32>
    %94 = arith.subf %92, %93 : vector<2x128xf32>
    %c0_47 = arith.constant 0 : index
    %c0_48 = arith.constant 0 : index
    %c0_49 = arith.constant 0 : index
    %95 = vector.load %arg10[%c0_47, %c0_48, %c0_49] : memref<1x2x128xf32, #tpu.memory_space<vmem>>, vector<1x2x128xf32>
    %96 = vector.shape_cast %95 : vector<1x2x128xf32> to vector<2x128xf32>
    %97 = vector.shape_cast %94 : vector<2x128xf32> to vector<1x2x128xf32>
    tpu.vector_store %arg10[%c0_47, %c0_48, %c0_49], %97 {strides = array<i32>} : memref<1x2x128xf32, #tpu.memory_space<vmem>>, vector<1x2x128xf32>,
    return
  }
  func.func @transform_0(%arg0: i32) -> (i32, i32, i32) {
    %c0_i32 = arith.constant 0 : i32
    %c0_i32_0 = arith.constant 0 : i32
    %c0_i32_1 = arith.constant 0 : i32
    return %arg0, %c0_i32, %c0_i32_0 : i32, i32, i32
  }
  func.func @transform_1(%arg0: i32) -> (i32, i32) {
    %c0_i32 = arith.constant 0 : i32
    %c0_i32_0 = arith.constant 0 : i32
    %c0_i32_1 = arith.constant 0 : i32
    return %c0_i32, %c0_i32_0 : i32, i32
  }
  func.func @transform_2(%arg0: i32) -> (i32, i32) {
    %c0_i32 = arith.constant 0 : i32
    %c0_i32_0 = arith.constant 0 : i32
    %c0_i32_1 = arith.constant 0 : i32
    return %c0_i32, %c0_i32_0 : i32, i32
  }
  func.func @transform_3(%arg0: i32) -> (i32, i32, i32) {
    %c0_i32 = arith.constant 0 : i32
    %c0_i32_0 = arith.constant 0 : i32
    %c0_i32_1 = arith.constant 0 : i32
    %c0_i32_2 = arith.constant 0 : i32
    return %c0_i32, %c0_i32_0, %c0_i32_1 : i32, i32, i32
  }
  func.func @transform_4(%arg0: i32) -> (i32, i32) {
    %c0_i32 = arith.constant 0 : i32
    %c0_i32_0 = arith.constant 0 : i32
    %c0_i32_1 = arith.constant 0 : i32
    return %c0_i32, %c0_i32_0 : i32, i32
  }
  func.func @transform_5(%arg0: i32) -> (i32, i32) {
    %c0_i32 = arith.constant 0 : i32
    %c0_i32_0 = arith.constant 0 : i32
    %c0_i32_1 = arith.constant 0 : i32
    return %c0_i32, %c0_i32_0 : i32, i32
  }
  func.func @transform_6(%arg0: i32) -> (i32, i32) {
    %c0_i32 = arith.constant 0 : i32
    %c0_i32_0 = arith.constant 0 : i32
    %c0_i32_1 = arith.constant 0 : i32
    return %c0_i32, %c0_i32_0 : i32, i32
  }
  func.func @transform_7(%arg0: i32) -> (i32, i32) {
    %c0_i32 = arith.constant 0 : i32
    %c0_i32_0 = arith.constant 0 : i32
    %c0_i32_1 = arith.constant 0 : i32
    return %c0_i32, %c0_i32_0 : i32, i32
  }
  func.func @transform_8(%arg0: i32) -> (i32, i32) {
    %c0_i32 = arith.constant 0 : i32
    %c0_i32_0 = arith.constant 0 : i32
    %c0_i32_1 = arith.constant 0 : i32
    return %c0_i32, %c0_i32_0 : i32, i32
  }
  func.func @transform_9(%arg0: i32) -> (i32, i32, i32) {
    %c0_i32 = arith.constant 0 : i32
    %c0_i32_0 = arith.constant 0 : i32
    %c0_i32_1 = arith.constant 0 : i32
    return %arg0, %c0_i32, %c0_i32_0 : i32, i32, i32
  }
}

</mosaic_0001>

<llo_original>
// kernel: dqn_conv1d_forward.1
$region0: #{dqn_conv1d_forward.1}
  #allocation0 [shape = 'u32[]', space=smem, size = 0x4, offset = 0x4, fixed_abs, tag = 'smem constant byte address 0x4 - core index']
  #allocation1 [shape = 'u32[144,128]{1,0:T(1,128)}', space=vmem, size = 0x12000, scoped, tag = 'internal scratch']
  %s0 = inlined_call_operand.vmem [shape: f32[8,24,20], index: 0, kind: input, shape index: {}]
  %s1 = inlined_call_operand.hbm [shape: f32[20,128], index: 1, kind: input, shape index: {}]
  %s2 = inlined_call_operand.hbm [shape: f32[1,128], index: 2, kind: input, shape index: {}]
  %s3 = inlined_call_operand.hbm [shape: f32[5,128,128], index: 3, kind: input, shape index: {}]
  %s4 = inlined_call_operand.hbm [shape: f32[1,128], index: 4, kind: input, shape index: {}]
  %s5 = inlined_call_operand.hbm [shape: f32[1024,1024], index: 5, kind: input, shape index: {}]
  %s6 = inlined_call_operand.hbm [shape: f32[1,1024], index: 6, kind: input, shape index: {}]
  %s7 = inlined_call_operand.hbm [shape: f32[1024,128], index: 7, kind: input, shape index: {}]
  %s8 = inlined_call_operand.hbm [shape: f32[1,128], index: 8, kind: input, shape index: {}]
  %s9 = inlined_call_operand.vmem [shape: f32[8,2,128], index: 9, kind: output, shape index: {}]
  %s10 = sld [smem:[#allocation0]]
  $region101: #{dqn_conv1d_forward.1} parent=0
    _
  %s12 = ssub.s32 1, %s10
  %s13 = scalar_select 0, %s12, %s10
  $region1: #{dqn_conv1d_forward.1} parent=0
    #allocation2 [shape = 'u8[12288]{0}', space=vmem, size = 0x3000, scoped, tag = 'input window, operand 1, single buffered']
    #allocation3 [shape = 's32[2]{0}', space=sflag, size = 0x8, scoped, tag = 'scoped memory for dqn_conv1d_forward.1']
    #allocation4 [shape = 'u8[512]{0}', space=vmem, size = 0x400, scoped, tag = 'input window, operand 2, single buffered']
    #allocation5 [shape = 's32[1]{0}', space=sflag, size = 0x4, scoped, tag = 'scoped memory for dqn_conv1d_forward.1']
    #allocation6 [shape = 'u8[327680]{0}', space=vmem, size = 0x50000, scoped, tag = 'input window, operand 3, single buffered']
    #allocation7 [shape = 'u8[512]{0}', space=vmem, size = 0x400, scoped, tag = 'input window, operand 4, single buffered']
    #allocation8 [shape = 's32[1]{0}', space=sflag, size = 0x4, scoped, tag = 'scoped memory for dqn_conv1d_forward.1']
    #allocation9 [shape = 'u8[4194304]{0}', space=vmem, size = 0x400000, scoped, tag = 'input window, operand 5, single buffered']
    #allocation10 [shape = 'u8[4096]{0}', space=vmem, size = 0x1000, scoped, tag = 'input window, operand 6, single buffered']
    #allocation11 [shape = 's32[1]{0}', space=sflag, size = 0x4, scoped, tag = 'scoped memory for dqn_conv1d_forward.1']
    #allocation12 [shape = 'u8[524288]{0}', space=vmem, size = 0x80000, scoped, tag = 'input window, operand 7, single buffered']
    #allocation13 [shape = 'u8[512]{0}', space=vmem, size = 0x400, scoped, tag = 'input window, operand 8, single buffered']
    #allocation14 [shape = 's32[1]{0}', space=sflag, size = 0x4, scoped, tag = 'scoped memory for dqn_conv1d_forward.1']
    %14 = vsyncpa [#allocation3], 0
    %15 = vsyncpa [#allocation5], 0
    %16 = vsyncpa [#allocation8], 0
    %17 = vsyncpa [#allocation11], 0
    %18 = vsyncpa [#allocation14], 0
    loop: start=0, step=1, limit=10
    $region2: #{dqn_conv1d_forward.1} parent=1 // loop_pre_header
      _
    $region3: #{dqn_conv1d_forward.1} parent=1 // loop_header
      %s20 = sphi 0, %s24
      %p21 = scmp.ge.s32.totalorder %s20, 10
      %s30 = sphi 0, %s32
      %s33 = sphi 0, %s30
      %s34 = sphi 0, %s33
      %s50 = sphi 0, %s34
      %s54 = sphi 0, %s54
      %s56 = sphi 0, %s54
      %s57 = sphi 0, %s56
      %s71 = sphi 0, %s57
      %s75 = sphi 0, %s75
      %s77 = sphi 0, %s75
      %s78 = sphi 0, %s77
      %s92 = sphi 0, %s78
      %s96 = sphi 0, %s96
      %s98 = sphi 0, %s96
      %s99 = sphi 0, %s98
      %s113 = sphi 0, %s99
      %s117 = sphi 0, %s117
      %s119 = sphi 0, %s117
      %s120 = sphi 0, %s119
      %s134 = sphi 0, %s120
      %s138 = sphi 0, %s138
      %s140 = sphi 0, %s138
      %s141 = sphi 0, %s140
      %s155 = sphi 0, %s141
      %s159 = sphi 0, %s159
      %s161 = sphi 0, %s159
      %s162 = sphi 0, %s161
      %s176 = sphi 0, %s162
      %s180 = sphi 0, %s180
      %s182 = sphi 0, %s180
      %s183 = sphi 0, %s182
      %s197 = sphi 0, %s183
      %s201 = sphi 0, %s201
      %s203 = sphi 0, %s201
      %s204 = sphi 0, %s203
      %s218 = sphi 0, %s204
      %s224 = sphi 0, %s226
      %s227 = sphi 0, %s224
      %s228 = sphi 0, %s227
      %s244 = sphi 0, %s228
    $region4: #{dqn_conv1d_forward.1} parent=1 // loop_header_branch
      %23 = sbr.rel (%p21) target = $region8
    $region5: #{dqn_conv1d_forward.1} parent=1 // loop_body
      %s25 = ssub.s32 %s20, 1
      %s26 = ssub.s32 %s20, 2
      %s27 = sadd.s32 %s20, 1
      %s28 = ssub.s32 %s20, %s27
      %p29 = scmp.eq.s32.totalorder %s28, 0
      %s31 = sadd.s32 %s30, 1
      %s32 = scalar_select %p29, %s30, %s31
      %p35 = pneg %p29
      %p36 = scmp.eq.s32.totalorder %s20, 7
      %p37 = por %p35, %p36
      %p38 = scmp.ne.s32.totalorder %s30, %s33
      %p39 = scmp.eq.s32.totalorder %s20, 0
      %p40 = por %p38, %p39
      %p41 = scmp.ne.s32.totalorder %s30, %s33
      %p42 = scmp.eq.s32.totalorder %s25, 7
      %p43 = por %p41, %p42
      %p44 = scmp.ne.s32.totalorder %s33, %s34
      %p45 = scmp.eq.s32.totalorder %s25, 0
      %p46 = por %p44, %p45
      %p47 = scmp.ne.s32.totalorder %s33, %s34
      %p48 = scmp.eq.s32.totalorder %s26, 7
      %p49 = por %p47, %p48
      %p51 = scmp.ne.s32.totalorder %s34, %s50
      %p52 = scmp.eq.s32.totalorder %s26, 0
      %p53 = por %p51, %p52
      %s55 = sadd.s32 %s54, 1
      %p58 = scmp.eq.s32.totalorder %s20, 7
      %p59 = scmp.ne.s32.totalorder %s54, %s56
      %p60 = scmp.eq.s32.totalorder %s20, 0
      %p61 = por %p59, %p60
      %p62 = scmp.ne.s32.totalorder %s54, %s56
      %p63 = scmp.eq.s32.totalorder %s25, 7
      %p64 = por %p62, %p63
      %p65 = scmp.ne.s32.totalorder %s56, %s57
      %p66 = scmp.eq.s32.totalorder %s25, 0
      %p67 = por %p65, %p66
      %p68 = scmp.ne.s32.totalorder %s56, %s57
      %p69 = scmp.eq.s32.totalorder %s26, 7
      %p70 = por %p68, %p69
      %p72 = scmp.ne.s32.totalorder %s57, %s71
      %p73 = scmp.eq.s32.totalorder %s26, 0
      %p74 = por %p72, %p73
      %s76 = sadd.s32 %s75, 1
      %p79 = scmp.eq.s32.totalorder %s20, 7
      %p80 = scmp.ne.s32.totalorder %s75, %s77
      %p81 = scmp.eq.s32.totalorder %s20, 0
      %p82 = por %p80, %p81
      %p83 = scmp.ne.s32.totalorder %s75, %s77
      %p84 = scmp.eq.s32.totalorder %s25, 7
      %p85 = por %p83, %p84
      %p86 = scmp.ne.s32.totalorder %s77, %s78
      %p87 = scmp.eq.s32.totalorder %s25, 0
      %p88 = por %p86, %p87
      %p89 = scmp.ne.s32.totalorder %s77, %s78
      %p90 = scmp.eq.s32.totalorder %s26, 7
      %p91 = por %p89, %p90
      %p93 = scmp.ne.s32.totalorder %s78, %s92
      %p94 = scmp.eq.s32.totalorder %s26, 0
      %p95 = por %p93, %p94
      %s97 = sadd.s32 %s96, 1
      %p100 = scmp.eq.s32.totalorder %s20, 7
      %p101 = scmp.ne.s32.totalorder %s96, %s98
      %p102 = scmp.eq.s32.totalorder %s20, 0
      %p103 = por %p101, %p102
      %p104 = scmp.ne.s32.totalorder %s96, %s98
      %p105 = scmp.eq.s32.totalorder %s25, 7
      %p106 = por %p104, %p105
      %p107 = scmp.ne.s32.totalorder %s98, %s99
      %p108 = scmp.eq.s32.totalorder %s25, 0
      %p109 = por %p107, %p108
      %p110 = scmp.ne.s32.totalorder %s98, %s99
      %p111 = scmp.eq.s32.totalorder %s26, 7
      %p112 = por %p110, %p111
      %p114 = scmp.ne.s32.totalorder %s99, %s113
      %p115 = scmp.eq.s32.totalorder %s26, 0
      %p116 = por %p114, %p115
      %s118 = sadd.s32 %s117, 1
      %p121 = scmp.eq.s32.totalorder %s20, 7
      %p122 = scmp.ne.s32.totalorder %s117, %s119
      %p123 = scmp.eq.s32.totalorder %s20, 0
      %p124 = por %p122, %p123
      %p125 = scmp.ne.s32.totalorder %s117, %s119
      %p126 = scmp.eq.s32.totalorder %s25, 7
      %p127 = por %p125, %p126
      %p128 = scmp.ne.s32.totalorder %s119, %s120
      %p129 = scmp.eq.s32.totalorder %s25, 0
      %p130 = por %p128, %p129
      %p131 = scmp.ne.s32.totalorder %s119, %s120
      %p132 = scmp.eq.s32.totalorder %s26, 7
      %p133 = por %p131, %p132
      %p135 = scmp.ne.s32.totalorder %s120, %s134
      %p136 = scmp.eq.s32.totalorder %s26, 0
      %p137 = por %p135, %p136
      %s139 = sadd.s32 %s138, 1
      %p142 = scmp.eq.s32.totalorder %s20, 7
      %p143 = scmp.ne.s32.totalorder %s138, %s140
      %p144 = scmp.eq.s32.totalorder %s20, 0
      %p145 = por %p143, %p144
      %p146 = scmp.ne.s32.totalorder %s138, %s140
      %p147 = scmp.eq.s32.totalorder %s25, 7
      %p148 = por %p146, %p147
      %p149 = scmp.ne.s32.totalorder %s140, %s141
      %p150 = scmp.eq.s32.totalorder %s25, 0
      %p151 = por %p149, %p150
      %p152 = scmp.ne.s32.totalorder %s140, %s141
      %p153 = scmp.eq.s32.totalorder %s26, 7
      %p154 = por %p152, %p153
      %p156 = scmp.ne.s32.totalorder %s141, %s155
      %p157 = scmp.eq.s32.totalorder %s26, 0
      %p158 = por %p156, %p157
      %s160 = sadd.s32 %s159, 1
      %p163 = scmp.eq.s32.totalorder %s20, 7
      %p164 = scmp.ne.s32.totalorder %s159, %s161
      %p165 = scmp.eq.s32.totalorder %s20, 0
      %p166 = por %p164, %p165
      %p167 = scmp.ne.s32.totalorder %s159, %s161
      %p168 = scmp.eq.s32.totalorder %s25, 7
      %p169 = por %p167, %p168
      %p170 = scmp.ne.s32.totalorder %s161, %s162
      %p171 = scmp.eq.s32.totalorder %s25, 0
      %p172 = por %p170, %p171
      %p173 = scmp.ne.s32.totalorder %s161, %s162
      %p174 = scmp.eq.s32.totalorder %s26, 7
      %p175 = por %p173, %p174
      %p177 = scmp.ne.s32.totalorder %s162, %s176
      %p178 = scmp.eq.s32.totalorder %s26, 0
      %p179 = por %p177, %p178
      %s181 = sadd.s32 %s180, 1
      %p184 = scmp.eq.s32.totalorder %s20, 7
      %p185 = scmp.ne.s32.totalorder %s180, %s182
      %p186 = scmp.eq.s32.totalorder %s20, 0
      %p187 = por %p185, %p186
      %p188 = scmp.ne.s32.totalorder %s180, %s182
      %p189 = scmp.eq.s32.totalorder %s25, 7
      %p190 = por %p188, %p189
      %p191 = scmp.ne.s32.totalorder %s182, %s183
      %p192 = scmp.eq.s32.totalorder %s25, 0
      %p193 = por %p191, %p192
      %p194 = scmp.ne.s32.totalorder %s182, %s183
      %p195 = scmp.eq.s32.totalorder %s26, 7
      %p196 = por %p194, %p195
      %p198 = scmp.ne.s32.totalorder %s183, %s197
      %p199 = scmp.eq.s32.totalorder %s26, 0
      %p200 = por %p198, %p199
      %s202 = sadd.s32 %s201, 1
      %p205 = scmp.eq.s32.totalorder %s20, 7
      %p206 = scmp.ne.s32.totalorder %s201, %s203
      %p207 = scmp.eq.s32.totalorder %s20, 0
      %p208 = por %p206, %p207
      %p209 = scmp.ne.s32.totalorder %s201, %s203
      %p210 = scmp.eq.s32.totalorder %s25, 7
      %p211 = por %p209, %p210
      %p212 = scmp.ne.s32.totalorder %s203, %s204
      %p213 = scmp.eq.s32.totalorder %s25, 0
      %p214 = por %p212, %p213
      %p215 = scmp.ne.s32.totalorder %s203, %s204
      %p216 = scmp.eq.s32.totalorder %s26, 7
      %p217 = por %p215, %p216
      %p219 = scmp.ne.s32.totalorder %s204, %s218
      %p220 = scmp.eq.s32.totalorder %s26, 0
      %p221 = por %p219, %p220
      %s222 = ssub.s32 %s20, %s27
      %p223 = scmp.eq.s32.totalorder %s222, 0
      %s225 = sadd.s32 %s224, 1
      %s226 = scalar_select %p223, %s224, %s225
      %p229 = pneg %p223
      %p230 = scmp.eq.s32.totalorder %s20, 7
      %p231 = por %p229, %p230
      %p232 = scmp.ne.s32.totalorder %s224, %s227
      %p233 = scmp.eq.s32.totalorder %s20, 0
      %p234 = por %p232, %p233
      %p235 = scmp.ne.s32.totalorder %s224, %s227
      %p236 = scmp.eq.s32.totalorder %s25, 7
      %p237 = por %p235, %p236
      %p238 = scmp.ne.s32.totalorder %s227, %s228
      %p239 = scmp.eq.s32.totalorder %s25, 0
      %p240 = por %p238, %p239
      %p241 = scmp.ne.s32.totalorder %s227, %s228
      %p242 = scmp.eq.s32.totalorder %s26, 7
      %p243 = por %p241, %p242
      %p245 = scmp.ne.s32.totalorder %s228, %s244
      %p246 = scmp.eq.s32.totalorder %s26, 0
      %p247 = por %p245, %p246
      %p248 = scmp.le.s32.totalorder 1, %s20
      %p249 = scmp.lt.s32.totalorder %s20, 9
      %p250 = pnand %p248, %p249
      %p251 = pneg %p250
      // Predicated region
      $region9: #{dqn_conv1d_forward.1} parent=5 // pred_check
        _
      $region10: #{dqn_conv1d_forward.1} parent=5 // pred_check_branch
        %253 = sbr.rel (%p250) target = $region12
      $region11: #{dqn_conv1d_forward.1} parent=5 // pred_region
        %s254 = ssub.s32 %s20, 1
        // Predicated region
        $region13: #{dqn_conv1d_forward.1} parent=11 // pred_check
          %p255 = pneg %p67
        $region14: #{dqn_conv1d_forward.1} parent=11 // pred_check_branch
          %257 = sbr.rel (%p255) target = $region16
        $region15: #{dqn_conv1d_forward.1} parent=11 // pred_region
          %s259 = ssub.s32 384, 384
          %260 = vsyncadd [#allocation3], %s259
          %s261 = sshll.u32 [#allocation2], 4
          %s262 = int_to_ptr.vmem [resolvable:$true] %s261
          %267 = dma.hbm_to_vmem [thread:$0]  %s1, 384, %s262, [#allocation3], 128, 128, 8
        $region16: #{dqn_conv1d_forward.1} parent=11 // pred_fallthru
          _
        // Predicated region
        $region17: #{dqn_conv1d_forward.1} parent=11 // pred_check
          %p268 = pneg %p88
        $region18: #{dqn_conv1d_forward.1} parent=11 // pred_check_branch
          %270 = sbr.rel (%p268) target = $region20
        $region19: #{dqn_conv1d_forward.1} parent=11 // pred_region
          %s272 = ssub.s32 16, 16
          %273 = vsyncadd [#allocation5], %s272
          %s275 = sshll.u32 [#allocation4], 4
          %s276 = int_to_ptr.vmem [resolvable:$true] %s275
          %278 = dma.hbm_to_vmem [thread:$0]  %s2, 16, %s276, [#allocation5]
        $region20: #{dqn_conv1d_forward.1} parent=11 // pred_fallthru
          _
        // Predicated region
        $region21: #{dqn_conv1d_forward.1} parent=11 // pred_check
          %p279 = pneg %p109
        $region22: #{dqn_conv1d_forward.1} parent=11 // pred_check_branch
          %281 = sbr.rel (%p279) target = $region24
        $region23: #{dqn_conv1d_forward.1} parent=11 // pred_region
          %s283 = ssub.s32 10240, 10240
          %284 = vsyncadd [#allocation5], %s283
          %s285 = sshll.u32 [#allocation6], 4
          %s286 = int_to_ptr.vmem [resolvable:$true] %s285
          %291 = dma.hbm_to_vmem [thread:$0]  %s3, 10240, %s286, [#allocation5], 128, 128, 8
        $region24: #{dqn_conv1d_forward.1} parent=11 // pred_fallthru
          _
        // Predicated region
        $region25: #{dqn_conv1d_forward.1} parent=11 // pred_check
          %p292 = pneg %p130
        $region26: #{dqn_conv1d_forward.1} parent=11 // pred_check_branch
          %294 = sbr.rel (%p292) target = $region28
        $region27: #{dqn_conv1d_forward.1} parent=11 // pred_region
          %s296 = ssub.s32 16, 16
          %297 = vsyncadd [#allocation8], %s296
          %s299 = sshll.u32 [#allocation7], 4
          %s300 = int_to_ptr.vmem [resolvable:$true] %s299
          %302 = dma.hbm_to_vmem [thread:$0]  %s4, 16, %s300, [#allocation8]
        $region28: #{dqn_conv1d_forward.1} parent=11 // pred_fallthru
          _
        // Predicated region
        $region29: #{dqn_conv1d_forward.1} parent=11 // pred_check
          %p303 = pneg %p151
        $region30: #{dqn_conv1d_forward.1} parent=11 // pred_check_branch
          %305 = sbr.rel (%p303) target = $region32
        $region31: #{dqn_conv1d_forward.1} parent=11 // pred_region
          %s307 = ssub.s32 131072, 131072
          %308 = vsyncadd [#allocation8], %s307
          %s309 = sshll.u32 [#allocation9], 4
          %s310 = int_to_ptr.vmem [resolvable:$true] %s309
          %315 = dma.hbm_to_vmem [thread:$0]  %s5, 131072, %s310, [#allocation8], 1024, 1024, 64
        $region32: #{dqn_conv1d_forward.1} parent=11 // pred_fallthru
          _
        // Predicated region
        $region33: #{dqn_conv1d_forward.1} parent=11 // pred_check
          %p316 = pneg %p172
        $region34: #{dqn_conv1d_forward.1} parent=11 // pred_check_branch
          %318 = sbr.rel (%p316) target = $region36
        $region35: #{dqn_conv1d_forward.1} parent=11 // pred_region
          %s320 = ssub.s32 128, 128
          %321 = vsyncadd [#allocation11], %s320
          %s323 = sshll.u32 [#allocation10], 4
          %s324 = int_to_ptr.vmem [resolvable:$true] %s323
          %326 = dma.hbm_to_vmem [thread:$0]  %s6, 128, %s324, [#allocation11]
        $region36: #{dqn_conv1d_forward.1} parent=11 // pred_fallthru
          _
        // Predicated region
        $region37: #{dqn_conv1d_forward.1} parent=11 // pred_check
          %p327 = pneg %p193
        $region38: #{dqn_conv1d_forward.1} parent=11 // pred_check_branch
          %329 = sbr.rel (%p327) target = $region40
        $region39: #{dqn_conv1d_forward.1} parent=11 // pred_region
          %s331 = ssub.s32 16384, 16384
          %332 = vsyncadd [#allocation11], %s331
          %s333 = sshll.u32 [#allocation12], 4
          %s334 = int_to_ptr.vmem [resolvable:$true] %s333
          %339 = dma.hbm_to_vmem [thread:$0]  %s7, 16384, %s334, [#allocation11], 128, 128, 8
        $region40: #{dqn_conv1d_forward.1} parent=11 // pred_fallthru
          _
        // Predicated region
        $region41: #{dqn_conv1d_forward.1} parent=11 // pred_check
          %p340 = pneg %p214
        $region42: #{dqn_conv1d_forward.1} parent=11 // pred_check_branch
          %342 = sbr.rel (%p340) target = $region44
        $region43: #{dqn_conv1d_forward.1} parent=11 // pred_region
          %s344 = ssub.s32 16, 16
          %345 = vsyncadd [#allocation14], %s344
          %s347 = sshll.u32 [#allocation13], 4
          %s348 = int_to_ptr.vmem [resolvable:$true] %s347
          %350 = dma.hbm_to_vmem [thread:$0]  %s8, 16, %s348, [#allocation14]
        $region44: #{dqn_conv1d_forward.1} parent=11 // pred_fallthru
          _
      $region12: #{dqn_conv1d_forward.1} parent=5 // pred_fallthru
        _
      %p351 = scmp.lt.s32.totalorder %s20, 8
      // Predicated region
      $region45: #{dqn_conv1d_forward.1} parent=5 // pred_check
        %p352 = pneg %p351
      $region46: #{dqn_conv1d_forward.1} parent=5 // pred_check_branch
        %354 = sbr.rel (%p352) target = $region48
      $region47: #{dqn_conv1d_forward.1} parent=5 // pred_region
        // Predicated region
        $region49: #{dqn_conv1d_forward.1} parent=47 // pred_check
          %p355 = pneg %p40
        $region50: #{dqn_conv1d_forward.1} parent=47 // pred_check_branch
          %357 = sbr.rel (%p355) target = $region52
        $region51: #{dqn_conv1d_forward.1} parent=47 // pred_region
          %p358 = scmp.lt.s32.totalorder %s20, 7
          %s359 = scalar_select %p358, %s20, 7
          %s360 = smul.addr %s359, 3
          %s361 = smul.addr %s360, 8
          %s362 = scalar_lea.vmem %s0, %s361
        $region52: #{dqn_conv1d_forward.1} parent=47 // pred_fallthru
          _
      $region48: #{dqn_conv1d_forward.1} parent=5 // pred_fallthru
        _
      %p363 = scmp.le.s32.totalorder 1, %s20
      %p364 = scmp.lt.s32.totalorder %s20, 9
      %p365 = pnand %p363, %p364
      %p366 = pneg %p365
      // Predicated region
      $region53: #{dqn_conv1d_forward.1} parent=5 // pred_check
        _
      $region54: #{dqn_conv1d_forward.1} parent=5 // pred_check_branch
        %368 = sbr.rel (%p365) target = $region56
      $region55: #{dqn_conv1d_forward.1} parent=5 // pred_region
        %s369 = ssub.s32 %s20, 1
        // Predicated region
        $region57: #{dqn_conv1d_forward.1} parent=55 // pred_check
          %p370 = pneg %p67
        $region58: #{dqn_conv1d_forward.1} parent=55 // pred_check_branch
          %372 = sbr.rel (%p370) target = $region60
        $region59: #{dqn_conv1d_forward.1} parent=55 // pred_region
          %373 = dma.done [#allocation3], 384
        $region60: #{dqn_conv1d_forward.1} parent=55 // pred_fallthru
          _
        // Predicated region
        $region61: #{dqn_conv1d_forward.1} parent=55 // pred_check
          %p374 = pneg %p88
        $region62: #{dqn_conv1d_forward.1} parent=55 // pred_check_branch
          %376 = sbr.rel (%p374) target = $region64
        $region63: #{dqn_conv1d_forward.1} parent=55 // pred_region
          %377 = dma.done [#allocation5], 16
        $region64: #{dqn_conv1d_forward.1} parent=55 // pred_fallthru
          _
        // Predicated region
        $region65: #{dqn_conv1d_forward.1} parent=55 // pred_check
          %p378 = pneg %p109
        $region66: #{dqn_conv1d_forward.1} parent=55 // pred_check_branch
          %380 = sbr.rel (%p378) target = $region68
        $region67: #{dqn_conv1d_forward.1} parent=55 // pred_region
          %381 = dma.done [#allocation5], 10240
        $region68: #{dqn_conv1d_forward.1} parent=55 // pred_fallthru
          _
        // Predicated region
        $region69: #{dqn_conv1d_forward.1} parent=55 // pred_check
          %p382 = pneg %p130
        $region70: #{dqn_conv1d_forward.1} parent=55 // pred_check_branch
          %384 = sbr.rel (%p382) target = $region72
        $region71: #{dqn_conv1d_forward.1} parent=55 // pred_region
          %385 = dma.done [#allocation8], 16
        $region72: #{dqn_conv1d_forward.1} parent=55 // pred_fallthru
          _
        // Predicated region
        $region73: #{dqn_conv1d_forward.1} parent=55 // pred_check
          %p386 = pneg %p151
        $region74: #{dqn_conv1d_forward.1} parent=55 // pred_check_branch
          %388 = sbr.rel (%p386) target = $region76
        $region75: #{dqn_conv1d_forward.1} parent=55 // pred_region
          %389 = dma.done [#allocation8], 131072
        $region76: #{dqn_conv1d_forward.1} parent=55 // pred_fallthru
          _
        // Predicated region
        $region77: #{dqn_conv1d_forward.1} parent=55 // pred_check
          %p390 = pneg %p172
        $region78: #{dqn_conv1d_forward.1} parent=55 // pred_check_branch
          %392 = sbr.rel (%p390) target = $region80
        $region79: #{dqn_conv1d_forward.1} parent=55 // pred_region
          %393 = dma.done [#allocation11], 128
        $region80: #{dqn_conv1d_forward.1} parent=55 // pred_fallthru
          _
        // Predicated region
        $region81: #{dqn_conv1d_forward.1} parent=55 // pred_check
          %p394 = pneg %p193
        $region82: #{dqn_conv1d_forward.1} parent=55 // pred_check_branch
          %396 = sbr.rel (%p394) target = $region84
        $region83: #{dqn_conv1d_forward.1} parent=55 // pred_region
          %397 = dma.done [#allocation11], 16384
        $region84: #{dqn_conv1d_forward.1} parent=55 // pred_fallthru
          _
        // Predicated region
        $region85: #{dqn_conv1d_forward.1} parent=55 // pred_check
          %p398 = pneg %p214
        $region86: #{dqn_conv1d_forward.1} parent=55 // pred_check_branch
          %400 = sbr.rel (%p398) target = $region88
        $region87: #{dqn_conv1d_forward.1} parent=55 // pred_region
          %401 = dma.done [#allocation14], 16
        $region88: #{dqn_conv1d_forward.1} parent=55 // pred_fallthru
          _
        %p402 = scmp.lt.s32.totalorder %s25, 7
        %s403 = scalar_select %p402, %s25, 7
        %s404 = smul.addr %s403, 3
        %s405 = smul.addr %s404, 8
        %s406 = scalar_lea.vmem %s0, %s405
        %p407 = pneg %p46
        %p408 = pneg %p43
        %p409 = pneg %p67
        %p410 = pneg %p64
        %p411 = pneg %p88
        %p412 = pneg %p85
        %p413 = pneg %p109
        %p414 = pneg %p106
        %p415 = pneg %p130
        %p416 = pneg %p127
        %p417 = pneg %p151
        %p418 = pneg %p148
        %p419 = pneg %p172
        %p420 = pneg %p169
        %p421 = pneg %p193
        %p422 = pneg %p190
        %p423 = pneg %p214
        %p424 = pneg %p211
        %p425 = pneg %p240
        %p426 = pneg %p237
        %p427 = scmp.lt.s32.totalorder %s25, 7
        %s428 = scalar_select %p427, %s25, 7
        %s429 = smul.addr %s428, 2
        %s430 = scalar_lea.vmem %s9, %s429
        %p431 = scmp.lt.s32.totalorder %s25, 7
        %s432 = scalar_select %p431, %s25, 7
        %s433 = smul.addr %s432, 3
        %s434 = smul.addr %s433, 8
        %s435 = scalar_lea.vmem %s0, %s434
        %p436 = scmp.lt.s32.totalorder %s25, 7
        %s437 = scalar_select %p436, %s25, 7
        %s438 = smul.addr %s437, 2
        %s439 = scalar_lea.vmem %s9, %s438
        %v440 = vld [vmem:[%s435] sm:$0xff]
        %v441 = vld [vmem:[%s435 + $0x8] sm:$0xff]
        %v442 = vld [vmem:[%s435 + $0x10] sm:$0xff]
        %v443 = vld [vmem:[#allocation2] sm:$0xff]
        %v444 = vld [vmem:[#allocation2 + $0x8] sm:$0xff]
        %v445 = vld [vmem:[#allocation2 + $0x10] sm:$0xf]
        %v446 = vld [vmem:[#allocation4] sm:$0x1]
        %v448 = vlaneseq
        %v449 = vshrl.u32 %v448, 7
        %v450 = vsub.s32 0, %v449
        %v451 = vrot.slane %v446, %v450
        %vm453 = vcmask 162816
        %v455 = vsel %vm453, %v440, 0
        %v458 = vsel %vm453, %v441, 0
        %v461 = vsel %vm453, %v442, 0
        %vm463 = vcmask 1043456
        %v465 = vsel %vm463, %v445, 0
        %467 = vmatprep.subr.mxu0 0.0
        %468 = vmatpush1.msra.mxu0 %v443
        %469 = vmatprep.subr.mxu0 0.0
        %470 = vmatpush1.msra.mxu0 %v444
        %471 = vmatprep.subr.mxu0 0.0
        %472 = vmatpush1.msra.mxu0 %v465
        %473 = vmatprep.subr.mxu0 0.0
        %474 = vmatpush1.msra.mxu0 0.0
        %475 = vmatprep.subr.mxu0 0.0
        %476 = vmatpush1.msra.mxu0 0.0
        %477 = vmatprep.subr.mxu0 0.0
        %478 = vmatpush1.msra.mxu0 0.0
        %479 = vmatprep.subr.mxu0 0.0
        %480 = vmatpush1.msra.mxu0 0.0
        %481 = vmatprep.subr.mxu0 0.0
        %482 = vmatpush1.msra.mxu0 0.0
        %483 = vmatprep.subr.mxu0 0.0
        %484 = vmatpush1.msra.mxu0 0.0
        %485 = vmatprep.subr.mxu0 0.0
        %486 = vmatpush1.msra.mxu0 0.0
        %487 = vmatprep.subr.mxu0 0.0
        %488 = vmatpush1.msra.mxu0 0.0
        %489 = vmatprep.subr.mxu0 0.0
        %490 = vmatpush1.msra.mxu0 0.0
        %491 = vmatprep.subr.mxu0 0.0
        %492 = vmatpush1.msra.mxu0 0.0
        %493 = vmatprep.subr.mxu0 0.0
        %494 = vmatpush1.msra.mxu0 0.0
        %495 = vmatprep.subr.mxu0 0.0
        %496 = vmatpush1.msra.mxu0 0.0
        %497 = vmatprep.subr.mxu0 0.0
        %498 = vmatpush1.msra.mxu0 0.0
        %499 = vmatprep.subr.mxu0 0.0
        %500 = vmatpush1.msra.mxu0 0.0
        %501 = vmatprep.subr.mxu0 0.0
        %502 = vmatpush1.msra.mxu0 0.0
        %503 = vmatprep.subr.mxu0 0.0
        %504 = vmatpush1.msra.mxu0 0.0
        %505 = vmatprep.subr.mxu0 0.0
        %506 = vmatpush1.msra.mxu0 0.0
        %507 = vmatprep.subr.mxu0 0.0
        %508 = vmatpush1.msra.mxu0 0.0
        %509 = vmatprep.subr.mxu0 0.0
        %510 = vmatpush1.msra.mxu0 0.0
        %511 = vmatprep.subr.mxu0 0.0
        %512 = vmatpush1.msra.mxu0 0.0
        %513 = vmatprep.subr.mxu0 0.0
        %514 = vmatpush1.msra.mxu0 0.0
        %515 = vmatprep.subr.mxu0 0.0
        %516 = vmatpush1.msra.mxu0 0.0
        %517 = vmatprep.subr.mxu0 0.0
        %518 = vmatpush1.msra.mxu0 0.0
        %519 = vmatprep.subr.mxu0 0.0
        %520 = vmatpush1.msra.mxu0 0.0
        %521 = vmatprep.subr.mxu0 0.0
        %522 = vmatpush1.msra.mxu0 0.0
        %523 = vmatprep.subr.mxu0 0.0
        %524 = vmatpush1.msra.mxu0 0.0
        %525 = vmatprep.subr.mxu0 0.0
        %526 = vmatpush1.msra.mxu0 0.0
        %527 = vmatprep.subr.mxu0 0.0
        %528 = vmatpush1.msra.mxu0 0.0
        %529 = vmatprep.subr.mxu0 0.0
        %530 = vmatpush1.msra.mxu0 0.0
        %531 = vmatprep.mubr.f32.mxu0 0.0
        %532 = vmatmul.mubr.f32.gmra.mrb[0].mxu0 %v455
        %v533 = vpop.f32.mrb[0].mxu0
        %v534 = vadd.f32 %v451, %v533
        %v535 = vpop.f32.mrb[0].mxu0
        %536 = vmatprep.mubr.f32.mxu0 0.0
        %537 = vmatmul.mubr.f32.gmra.mrb[0].mxu0 %v458
        %v538 = vpop.f32.mrb[0].mxu0
        %v539 = vadd.f32 %v451, %v538
        %v540 = vpop.f32.mrb[0].mxu0
        %541 = vmatprep.mubr.f32.mxu0 0.0
        %542 = vmatmul.mubr.f32.gmra.mrb[0].mxu0 %v461
        %v543 = vpop.f32.mrb[0].mxu0
        %v544 = vadd.f32 %v451, %v543
        %v545 = vpop.f32.mrb[0].mxu0
        %546 = vdwg.mxu0
        %v547 = vmax.f32 %v534, 0.0
        %v548 = vmax.f32 %v539, 0.0
        %v549 = vmax.f32 %v544, 0.0
        %v550 = vld [vmem:[#allocation6] sm:$0xff]
        %v551 = vld [vmem:[#allocation6 + $0x8] sm:$0xff]
        %v552 = vld [vmem:[#allocation6 + $0x10] sm:$0xff]
        %v553 = vld [vmem:[#allocation6 + $0x18] sm:$0xff]
        %v554 = vld [vmem:[#allocation6 + $0x20] sm:$0xff]
        %v555 = vld [vmem:[#allocation6 + $0x28] sm:$0xff]
        %v556 = vld [vmem:[#allocation6 + $0x30] sm:$0xff]
        %v557 = vld [vmem:[#allocation6 + $0x38] sm:$0xff]
        %v558 = vld [vmem:[#allocation6 + $0x40] sm:$0xff]
        %v559 = vld [vmem:[#allocation6 + $0x48] sm:$0xff]
        %v560 = vld [vmem:[#allocation6 + $0x50] sm:$0xff]
        %v561 = vld [vmem:[#allocation6 + $0x58] sm:$0xff]
        %v562 = vld [vmem:[#allocation6 + $0x60] sm:$0xff]
        %v563 = vld [vmem:[#allocation6 + $0x68] sm:$0xff]
        %v564 = vld [vmem:[#allocation6 + $0x70] sm:$0xff]
        %v565 = vld [vmem:[#allocation6 + $0x78] sm:$0xff]
        %v566 = vld [vmem:[#allocation6 + $0x80] sm:$0xff]
        %v567 = vld [vmem:[#allocation6 + $0x88] sm:$0xff]
        %v568 = vld [vmem:[#allocation6 + $0x90] sm:$0xff]
        %v569 = vld [vmem:[#allocation6 + $0x98] sm:$0xff]
        %v570 = vld [vmem:[#allocation6 + $0xa0] sm:$0xff]
        %v571 = vld [vmem:[#allocation6 + $0xa8] sm:$0xff]
        %v572 = vld [vmem:[#allocation6 + $0xb0] sm:$0xff]
        %v573 = vld [vmem:[#allocation6 + $0xb8] sm:$0xff]
        %v574 = vld [vmem:[#allocation6 + $0xc0] sm:$0xff]
        %v575 = vld [vmem:[#allocation6 + $0xc8] sm:$0xff]
        %v576 = vld [vmem:[#allocation6 + $0xd0] sm:$0xff]
        %v577 = vld [vmem:[#allocation6 + $0xd8] sm:$0xff]
        %v578 = vld [vmem:[#allocation6 + $0xe0] sm:$0xff]
        %v579 = vld [vmem:[#allocation6 + $0xe8] sm:$0xff]
        %v580 = vld [vmem:[#allocation6 + $0xf0] sm:$0xff]
        %v581 = vld [vmem:[#allocation6 + $0xf8] sm:$0xff]
        %v582 = vld [vmem:[#allocation6 + $0x100] sm:$0xff]
        %v583 = vld [vmem:[#allocation6 + $0x108] sm:$0xff]
        %v584 = vld [vmem:[#allocation6 + $0x110] sm:$0xff]
        %v585 = vld [vmem:[#allocation6 + $0x118] sm:$0xff]
        %v586 = vld [vmem:[#allocation6 + $0x120] sm:$0xff]
        %v587 = vld [vmem:[#allocation6 + $0x128] sm:$0xff]
        %v588 = vld [vmem:[#allocation6 + $0x130] sm:$0xff]
        %v589 = vld [vmem:[#allocation6 + $0x138] sm:$0xff]
        %v590 = vld [vmem:[#allocation6 + $0x140] sm:$0xff]
        %v591 = vld [vmem:[#allocation6 + $0x148] sm:$0xff]
        %v592 = vld [vmem:[#allocation6 + $0x150] sm:$0xff]
        %v593 = vld [vmem:[#allocation6 + $0x158] sm:$0xff]
        %v594 = vld [vmem:[#allocation6 + $0x160] sm:$0xff]
        %v595 = vld [vmem:[#allocation6 + $0x168] sm:$0xff]
        %v596 = vld [vmem:[#allocation6 + $0x170] sm:$0xff]
        %v597 = vld [vmem:[#allocation6 + $0x178] sm:$0xff]
        %v598 = vld [vmem:[#allocation6 + $0x180] sm:$0xff]
        %v599 = vld [vmem:[#allocation6 + $0x188] sm:$0xff]
        %v600 = vld [vmem:[#allocation6 + $0x190] sm:$0xff]
        %v601 = vld [vmem:[#allocation6 + $0x198] sm:$0xff]
        %v602 = vld [vmem:[#allocation6 + $0x1a0] sm:$0xff]
        %v603 = vld [vmem:[#allocation6 + $0x1a8] sm:$0xff]
        %v604 = vld [vmem:[#allocation6 + $0x1b0] sm:$0xff]
        %v605 = vld [vmem:[#allocation6 + $0x1b8] sm:$0xff]
        %v606 = vld [vmem:[#allocation6 + $0x1c0] sm:$0xff]
        %v607 = vld [vmem:[#allocation6 + $0x1c8] sm:$0xff]
        %v608 = vld [vmem:[#allocation6 + $0x1d0] sm:$0xff]
        %v609 = vld [vmem:[#allocation6 + $0x1d8] sm:$0xff]
        %v610 = vld [vmem:[#allocation6 + $0x1e0] sm:$0xff]
        %v611 = vld [vmem:[#allocation6 + $0x1e8] sm:$0xff]
        %v612 = vld [vmem:[#allocation6 + $0x1f0] sm:$0xff]
        %v613 = vld [vmem:[#allocation6 + $0x1f8] sm:$0xff]
        %v614 = vld [vmem:[#allocation6 + $0x200] sm:$0xff]
        %v615 = vld [vmem:[#allocation6 + $0x208] sm:$0xff]
        %v616 = vld [vmem:[#allocation6 + $0x210] sm:$0xff]
        %v617 = vld [vmem:[#allocation6 + $0x218] sm:$0xff]
        %v618 = vld [vmem:[#allocation6 + $0x220] sm:$0xff]
        %v619 = vld [vmem:[#allocation6 + $0x228] sm:$0xff]
        %v620 = vld [vmem:[#allocation6 + $0x230] sm:$0xff]
        %v621 = vld [vmem:[#allocation6 + $0x238] sm:$0xff]
        %v622 = vld [vmem:[#allocation6 + $0x240] sm:$0xff]
        %v623 = vld [vmem:[#allocation6 + $0x248] sm:$0xff]
        %v624 = vld [vmem:[#allocation6 + $0x250] sm:$0xff]
        %v625 = vld [vmem:[#allocation6 + $0x258] sm:$0xff]
        %v626 = vld [vmem:[#allocation6 + $0x260] sm:$0xff]
        %v627 = vld [vmem:[#allocation6 + $0x268] sm:$0xff]
        %v628 = vld [vmem:[#allocation6 + $0x270] sm:$0xff]
        %v629 = vld [vmem:[#allocation6 + $0x278] sm:$0xff]
        %vm633 = vcmask 1045504
        %v634 = vrot.slane %v547, 2
        %v635 = vrot.slane %v548, 2
        %v636 = vsel %vm633, %v634, %v635
        %v637 = vrot.slane %v549, 2
        %v638 = vsel %vm633, %v635, %v637
        %641 = vmatprep.subr.mxu0 0.0
        %642 = vmatpush1.msra.mxu0 %v566
        %643 = vmatprep.subr.mxu0 0.0
        %644 = vmatpush1.msra.mxu0 %v567
        %645 = vmatprep.subr.mxu0 0.0
        %646 = vmatpush1.msra.mxu0 %v568
        %647 = vmatprep.subr.mxu0 0.0
        %648 = vmatpush1.msra.mxu0 %v569
        %649 = vmatprep.subr.mxu0 0.0
        %650 = vmatpush1.msra.mxu0 %v570
        %651 = vmatprep.subr.mxu0 0.0
        %652 = vmatpush1.msra.mxu0 %v571
        %653 = vmatprep.subr.mxu0 0.0
        %654 = vmatpush1.msra.mxu0 %v572
        %655 = vmatprep.subr.mxu0 0.0
        %656 = vmatpush1.msra.mxu0 %v573
        %657 = vmatprep.subr.mxu0 0.0
        %658 = vmatpush1.msra.mxu0 %v574
        %659 = vmatprep.subr.mxu0 0.0
        %660 = vmatpush1.msra.mxu0 %v575
        %661 = vmatprep.subr.mxu0 0.0
        %662 = vmatpush1.msra.mxu0 %v576
        %663 = vmatprep.subr.mxu0 0.0
        %664 = vmatpush1.msra.mxu0 %v577
        %665 = vmatprep.subr.mxu0 0.0
        %666 = vmatpush1.msra.mxu0 %v578
        %667 = vmatprep.subr.mxu0 0.0
        %668 = vmatpush1.msra.mxu0 %v579
        %669 = vmatprep.subr.mxu0 0.0
        %670 = vmatpush1.msra.mxu0 %v580
        %671 = vmatprep.subr.mxu0 0.0
        %672 = vmatpush1.msra.mxu0 %v581
        %673 = vmatprep.subr.mxu0 0.0
        %674 = vmatpush1.msra.mxu0 0.0
        %675 = vmatprep.subr.mxu0 0.0
        %676 = vmatpush1.msra.mxu0 0.0
        %677 = vmatprep.subr.mxu0 0.0
        %678 = vmatpush1.msra.mxu0 0.0
        %679 = vmatprep.subr.mxu0 0.0
        %680 = vmatpush1.msra.mxu0 0.0
        %681 = vmatprep.subr.mxu0 0.0
        %682 = vmatpush1.msra.mxu0 0.0
        %683 = vmatprep.subr.mxu0 0.0
        %684 = vmatpush1.msra.mxu0 0.0
        %685 = vmatprep.subr.mxu0 0.0
        %686 = vmatpush1.msra.mxu0 0.0
        %687 = vmatprep.subr.mxu0 0.0
        %688 = vmatpush1.msra.mxu0 0.0
        %689 = vmatprep.subr.mxu0 0.0
        %690 = vmatpush1.msra.mxu0 0.0
        %691 = vmatprep.subr.mxu0 0.0
        %692 = vmatpush1.msra.mxu0 0.0
        %693 = vmatprep.subr.mxu0 0.0
        %694 = vmatpush1.msra.mxu0 0.0
        %695 = vmatprep.subr.mxu0 0.0
        %696 = vmatpush1.msra.mxu0 0.0
        %697 = vmatprep.subr.mxu0 0.0
        %698 = vmatpush1.msra.mxu0 0.0
        %699 = vmatprep.subr.mxu0 0.0
        %700 = vmatpush1.msra.mxu0 0.0
        %701 = vmatprep.subr.mxu0 0.0
        %702 = vmatpush1.msra.mxu0 0.0
        %703 = vmatprep.subr.mxu0 0.0
        %704 = vmatpush1.msra.mxu0 0.0
        %705 = vmatprep.mubr.f32.mxu0 0.0
        %706 = vmatmul.mubr.f32.gmra.mrb[0].mxu0 %v636
        %v707 = vpop.f32.mrb[0].mxu0
        %v708 = vadd.f32 0.0, %v707
        %v709 = vpop.f32.mrb[0].mxu0
        %710 = vmatprep.mubr.f32.mxu0 0.0
        %711 = vmatmul.mubr.f32.gmra.mrb[0].mxu0 %v638
        %v712 = vpop.f32.mrb[0].mxu0
        %v713 = vadd.f32 0.0, %v712
        %v714 = vpop.f32.mrb[0].mxu0
        %715 = vdwg.mxu0
        %716 = vmatprep.subr.mxu0 0.0
        %717 = vmatpush1.msra.mxu0 %v550
        %718 = vmatprep.subr.mxu0 0.0
        %719 = vmatpush1.msra.mxu0 %v551
        %720 = vmatprep.subr.mxu0 0.0
        %721 = vmatpush1.msra.mxu0 %v552
        %722 = vmatprep.subr.mxu0 0.0
        %723 = vmatpush1.msra.mxu0 %v553
        %724 = vmatprep.subr.mxu0 0.0
        %725 = vmatpush1.msra.mxu0 %v554
        %726 = vmatprep.subr.mxu0 0.0
        %727 = vmatpush1.msra.mxu0 %v555
        %728 = vmatprep.subr.mxu0 0.0
        %729 = vmatpush1.msra.mxu0 %v556
        %730 = vmatprep.subr.mxu0 0.0
        %731 = vmatpush1.msra.mxu0 %v557
        %732 = vmatprep.subr.mxu0 0.0
        %733 = vmatpush1.msra.mxu0 %v558
        %734 = vmatprep.subr.mxu0 0.0
        %735 = vmatpush1.msra.mxu0 %v559
        %736 = vmatprep.subr.mxu0 0.0
        %737 = vmatpush1.msra.mxu0 %v560
        %738 = vmatprep.subr.mxu0 0.0
        %739 = vmatpush1.msra.mxu0 %v561
        %740 = vmatprep.subr.mxu0 0.0
        %741 = vmatpush1.msra.mxu0 %v562
        %742 = vmatprep.subr.mxu0 0.0
        %743 = vmatpush1.msra.mxu0 %v563
        %744 = vmatprep.subr.mxu0 0.0
        %745 = vmatpush1.msra.mxu0 %v564
        %746 = vmatprep.subr.mxu0 0.0
        %747 = vmatpush1.msra.mxu0 %v565
        %748 = vmatprep.subr.mxu0 0.0
        %749 = vmatpush1.msra.mxu0 0.0
        %750 = vmatprep.subr.mxu0 0.0
        %751 = vmatpush1.msra.mxu0 0.0
        %752 = vmatprep.subr.mxu0 0.0
        %753 = vmatpush1.msra.mxu0 0.0
        %754 = vmatprep.subr.mxu0 0.0
        %755 = vmatpush1.msra.mxu0 0.0
        %756 = vmatprep.subr.mxu0 0.0
        %757 = vmatpush1.msra.mxu0 0.0
        %758 = vmatprep.subr.mxu0 0.0
        %759 = vmatpush1.msra.mxu0 0.0
        %760 = vmatprep.subr.mxu0 0.0
        %761 = vmatpush1.msra.mxu0 0.0
        %762 = vmatprep.subr.mxu0 0.0
        %763 = vmatpush1.msra.mxu0 0.0
        %764 = vmatprep.subr.mxu0 0.0
        %765 = vmatpush1.msra.mxu0 0.0
        %766 = vmatprep.subr.mxu0 0.0
        %767 = vmatpush1.msra.mxu0 0.0
        %768 = vmatprep.subr.mxu0 0.0
        %769 = vmatpush1.msra.mxu0 0.0
        %770 = vmatprep.subr.mxu0 0.0
        %771 = vmatpush1.msra.mxu0 0.0
        %772 = vmatprep.subr.mxu0 0.0
        %773 = vmatpush1.msra.mxu0 0.0
        %774 = vmatprep.subr.mxu0 0.0
        %775 = vmatpush1.msra.mxu0 0.0
        %776 = vmatprep.subr.mxu0 0.0
        %777 = vmatpush1.msra.mxu0 0.0
        %778 = vmatprep.subr.mxu0 0.0
        %779 = vmatpush1.msra.mxu0 0.0
        %780 = vmatprep.mubr.f32.mxu0 0.0
        %781 = vmatmul.mubr.f32.gmra.mrb[0].mxu0 %v547
        %v782 = vpop.f32.mrb[0].mxu0
        %v783 = vadd.f32 %v708, %v782
        %v784 = vpop.f32.mrb[0].mxu0
        %785 = vmatprep.mubr.f32.mxu0 0.0
        %786 = vmatmul.mubr.f32.gmra.mrb[0].mxu0 %v548
        %v787 = vpop.f32.mrb[0].mxu0
        %v788 = vadd.f32 %v713, %v787
        %v789 = vpop.f32.mrb[0].mxu0
        %790 = vdwg.mxu0
        %v791 = vrot.slane %v547, 4
        %v792 = vrot.slane %v548, 4
        %v793 = vsel %vm463, %v791, %v792
        %v794 = vrot.slane %v549, 4
        %v795 = vsel %vm463, %v792, %v794
        %798 = vmatprep.subr.mxu0 0.0
        %799 = vmatpush1.msra.mxu0 %v582
        %800 = vmatprep.subr.mxu0 0.0
        %801 = vmatpush1.msra.mxu0 %v583
        %802 = vmatprep.subr.mxu0 0.0
        %803 = vmatpush1.msra.mxu0 %v584
        %804 = vmatprep.subr.mxu0 0.0
        %805 = vmatpush1.msra.mxu0 %v585
        %806 = vmatprep.subr.mxu0 0.0
        %807 = vmatpush1.msra.mxu0 %v586
        %808 = vmatprep.subr.mxu0 0.0
        %809 = vmatpush1.msra.mxu0 %v587
        %810 = vmatprep.subr.mxu0 0.0
        %811 = vmatpush1.msra.mxu0 %v588
        %812 = vmatprep.subr.mxu0 0.0
        %813 = vmatpush1.msra.mxu0 %v589
        %814 = vmatprep.subr.mxu0 0.0
        %815 = vmatpush1.msra.mxu0 %v590
        %816 = vmatprep.subr.mxu0 0.0
        %817 = vmatpush1.msra.mxu0 %v591
        %818 = vmatprep.subr.mxu0 0.0
        %819 = vmatpush1.msra.mxu0 %v592
        %820 = vmatprep.subr.mxu0 0.0
        %821 = vmatpush1.msra.mxu0 %v593
        %822 = vmatprep.subr.mxu0 0.0
        %823 = vmatpush1.msra.mxu0 %v594
        %824 = vmatprep.subr.mxu0 0.0
        %825 = vmatpush1.msra.mxu0 %v595
        %826 = vmatprep.subr.mxu0 0.0
        %827 = vmatpush1.msra.mxu0 %v596
        %828 = vmatprep.subr.mxu0 0.0
        %829 = vmatpush1.msra.mxu0 %v597
        %830 = vmatprep.subr.mxu0 0.0
        %831 = vmatpush1.msra.mxu0 0.0
        %832 = vmatprep.subr.mxu0 0.0
        %833 = vmatpush1.msra.mxu0 0.0
        %834 = vmatprep.subr.mxu0 0.0
        %835 = vmatpush1.msra.mxu0 0.0
        %836 = vmatprep.subr.mxu0 0.0
        %837 = vmatpush1.msra.mxu0 0.0
        %838 = vmatprep.subr.mxu0 0.0
        %839 = vmatpush1.msra.mxu0 0.0
        %840 = vmatprep.subr.mxu0 0.0
        %841 = vmatpush1.msra.mxu0 0.0
        %842 = vmatprep.subr.mxu0 0.0
        %843 = vmatpush1.msra.mxu0 0.0
        %844 = vmatprep.subr.mxu0 0.0
        %845 = vmatpush1.msra.mxu0 0.0
        %846 = vmatprep.subr.mxu0 0.0
        %847 = vmatpush1.msra.mxu0 0.0
        %848 = vmatprep.subr.mxu0 0.0
        %849 = vmatpush1.msra.mxu0 0.0
        %850 = vmatprep.subr.mxu0 0.0
        %851 = vmatpush1.msra.mxu0 0.0
        %852 = vmatprep.subr.mxu0 0.0
        %853 = vmatpush1.msra.mxu0 0.0
        %854 = vmatprep.subr.mxu0 0.0
        %855 = vmatpush1.msra.mxu0 0.0
        %856 = vmatprep.subr.mxu0 0.0
        %857 = vmatpush1.msra.mxu0 0.0
        %858 = vmatprep.subr.mxu0 0.0
        %859 = vmatpush1.msra.mxu0 0.0
        %860 = vmatprep.subr.mxu0 0.0
        %861 = vmatpush1.msra.mxu0 0.0
        %862 = vmatprep.mubr.f32.mxu0 0.0
        %863 = vmatmul.mubr.f32.gmra.mrb[0].mxu0 %v793
        %v864 = vpop.f32.mrb[0].mxu0
        %v865 = vadd.f32 0.0, %v864
        %v866 = vpop.f32.mrb[0].mxu0
        %867 = vmatprep.mubr.f32.mxu0 0.0
        %868 = vmatmul.mubr.f32.gmra.mrb[0].mxu0 %v795
        %v869 = vpop.f32.mrb[0].mxu0
        %v870 = vadd.f32 0.0, %v869
        %v871 = vpop.f32.mrb[0].mxu0
        %872 = vdwg.mxu0
        %v873 = vadd.f32 %v783, %v865
        %v874 = vadd.f32 %v788, %v870
        %vm875 = vcmask 1041408
        %v876 = vrot.slane %v547, 6
        %v877 = vrot.slane %v548, 6
        %v878 = vsel %vm875, %v876, %v877
        %v879 = vrot.slane %v549, 6
        %v880 = vsel %vm875, %v877, %v879
        %883 = vmatprep.subr.mxu0 0.0
        %884 = vmatpush1.msra.mxu0 %v598
        %885 = vmatprep.subr.mxu0 0.0
        %886 = vmatpush1.msra.mxu0 %v599
        %887 = vmatprep.subr.mxu0 0.0
        %888 = vmatpush1.msra.mxu0 %v600
        %889 = vmatprep.subr.mxu0 0.0
        %890 = vmatpush1.msra.mxu0 %v601
        %891 = vmatprep.subr.mxu0 0.0
        %892 = vmatpush1.msra.mxu0 %v602
        %893 = vmatprep.subr.mxu0 0.0
        %894 = vmatpush1.msra.mxu0 %v603
        %895 = vmatprep.subr.mxu0 0.0
        %896 = vmatpush1.msra.mxu0 %v604
        %897 = vmatprep.subr.mxu0 0.0
        %898 = vmatpush1.msra.mxu0 %v605
        %899 = vmatprep.subr.mxu0 0.0
        %900 = vmatpush1.msra.mxu0 %v606
        %901 = vmatprep.subr.mxu0 0.0
        %902 = vmatpush1.msra.mxu0 %v607
        %903 = vmatprep.subr.mxu0 0.0
        %904 = vmatpush1.msra.mxu0 %v608
        %905 = vmatprep.subr.mxu0 0.0
        %906 = vmatpush1.msra.mxu0 %v609
        %907 = vmatprep.subr.mxu0 0.0
        %908 = vmatpush1.msra.mxu0 %v610
        %909 = vmatprep.subr.mxu0 0.0
        %910 = vmatpush1.msra.mxu0 %v611
        %911 = vmatprep.subr.mxu0 0.0
        %912 = vmatpush1.msra.mxu0 %v612
        %913 = vmatprep.subr.mxu0 0.0
        %914 = vmatpush1.msra.mxu0 %v613
        %915 = vmatprep.subr.mxu0 0.0
        %916 = vmatpush1.msra.mxu0 0.0
        %917 = vmatprep.subr.mxu0 0.0
        %918 = vmatpush1.msra.mxu0 0.0
        %919 = vmatprep.subr.mxu0 0.0
        %920 = vmatpush1.msra.mxu0 0.0
        %921 = vmatprep.subr.mxu0 0.0
        %922 = vmatpush1.msra.mxu0 0.0
        %923 = vmatprep.subr.mxu0 0.0
        %924 = vmatpush1.msra.mxu0 0.0
        %925 = vmatprep.subr.mxu0 0.0
        %926 = vmatpush1.msra.mxu0 0.0
        %927 = vmatprep.subr.mxu0 0.0
        %928 = vmatpush1.msra.mxu0 0.0
        %929 = vmatprep.subr.mxu0 0.0
        %930 = vmatpush1.msra.mxu0 0.0
        %931 = vmatprep.subr.mxu0 0.0
        %932 = vmatpush1.msra.mxu0 0.0
        %933 = vmatprep.subr.mxu0 0.0
        %934 = vmatpush1.msra.mxu0 0.0
        %935 = vmatprep.subr.mxu0 0.0
        %936 = vmatpush1.msra.mxu0 0.0
        %937 = vmatprep.subr.mxu0 0.0
        %938 = vmatpush1.msra.mxu0 0.0
        %939 = vmatprep.subr.mxu0 0.0
        %940 = vmatpush1.msra.mxu0 0.0
        %941 = vmatprep.subr.mxu0 0.0
        %942 = vmatpush1.msra.mxu0 0.0
        %943 = vmatprep.subr.mxu0 0.0
        %944 = vmatpush1.msra.mxu0 0.0
        %945 = vmatprep.subr.mxu0 0.0
        %946 = vmatpush1.msra.mxu0 0.0
        %947 = vmatprep.mubr.f32.mxu0 0.0
        %948 = vmatmul.mubr.f32.gmra.mrb[0].mxu0 %v878
        %v949 = vpop.f32.mrb[0].mxu0
        %v950 = vadd.f32 0.0, %v949
        %v951 = vpop.f32.mrb[0].mxu0
        %952 = vmatprep.mubr.f32.mxu0 0.0
        %953 = vmatmul.mubr.f32.gmra.mrb[0].mxu0 %v880
        %v954 = vpop.f32.mrb[0].mxu0
        %v955 = vadd.f32 0.0, %v954
        %v956 = vpop.f32.mrb[0].mxu0
        %957 = vdwg.mxu0
        %v958 = vadd.f32 %v873, %v950
        %v959 = vadd.f32 %v874, %v955
        %960 = vmatprep.subr.mxu0 0.0
        %961 = vmatpush1.msra.mxu0 %v614
        %962 = vmatprep.subr.mxu0 0.0
        %963 = vmatpush1.msra.mxu0 %v615
        %964 = vmatprep.subr.mxu0 0.0
        %965 = vmatpush1.msra.mxu0 %v616
        %966 = vmatprep.subr.mxu0 0.0
        %967 = vmatpush1.msra.mxu0 %v617
        %968 = vmatprep.subr.mxu0 0.0
        %969 = vmatpush1.msra.mxu0 %v618
        %970 = vmatprep.subr.mxu0 0.0
        %971 = vmatpush1.msra.mxu0 %v619
        %972 = vmatprep.subr.mxu0 0.0
        %973 = vmatpush1.msra.mxu0 %v620
        %974 = vmatprep.subr.mxu0 0.0
        %975 = vmatpush1.msra.mxu0 %v621
        %976 = vmatprep.subr.mxu0 0.0
        %977 = vmatpush1.msra.mxu0 %v622
        %978 = vmatprep.subr.mxu0 0.0
        %979 = vmatpush1.msra.mxu0 %v623
        %980 = vmatprep.subr.mxu0 0.0
        %981 = vmatpush1.msra.mxu0 %v624
        %982 = vmatprep.subr.mxu0 0.0
        %983 = vmatpush1.msra.mxu0 %v625
        %984 = vmatprep.subr.mxu0 0.0
        %985 = vmatpush1.msra.mxu0 %v626
        %986 = vmatprep.subr.mxu0 0.0
        %987 = vmatpush1.msra.mxu0 %v627
        %988 = vmatprep.subr.mxu0 0.0
        %989 = vmatpush1.msra.mxu0 %v628
        %990 = vmatprep.subr.mxu0 0.0
        %991 = vmatpush1.msra.mxu0 %v629
        %992 = vmatprep.subr.mxu0 0.0
        %993 = vmatpush1.msra.mxu0 0.0
        %994 = vmatprep.subr.mxu0 0.0
        %995 = vmatpush1.msra.mxu0 0.0
        %996 = vmatprep.subr.mxu0 0.0
        %997 = vmatpush1.msra.mxu0 0.0
        %998 = vmatprep.subr.mxu0 0.0
        %999 = vmatpush1.msra.mxu0 0.0
        %1000 = vmatprep.subr.mxu0 0.0
        %1001 = vmatpush1.msra.mxu0 0.0
        %1002 = vmatprep.subr.mxu0 0.0
        %1003 = vmatpush1.msra.mxu0 0.0
        %1004 = vmatprep.subr.mxu0 0.0
        %1005 = vmatpush1.msra.mxu0 0.0
        %1006 = vmatprep.subr.mxu0 0.0
        %1007 = vmatpush1.msra.mxu0 0.0
        %1008 = vmatprep.subr.mxu0 0.0
        %1009 = vmatpush1.msra.mxu0 0.0
        %1010 = vmatprep.subr.mxu0 0.0
        %1011 = vmatpush1.msra.mxu0 0.0
        %1012 = vmatprep.subr.mxu0 0.0
        %1013 = vmatpush1.msra.mxu0 0.0
        %1014 = vmatprep.subr.mxu0 0.0
        %1015 = vmatpush1.msra.mxu0 0.0
        %1016 = vmatprep.subr.mxu0 0.0
        %1017 = vmatpush1.msra.mxu0 0.0
        %1018 = vmatprep.subr.mxu0 0.0
        %1019 = vmatpush1.msra.mxu0 0.0
        %1020 = vmatprep.subr.mxu0 0.0
        %1021 = vmatpush1.msra.mxu0 0.0
        %1022 = vmatprep.subr.mxu0 0.0
        %1023 = vmatpush1.msra.mxu0 0.0
        %1024 = vmatprep.mubr.f32.mxu0 0.0
        %1025 = vmatmul.mubr.f32.gmra.mrb[0].mxu0 %v548
        %v1026 = vpop.f32.mrb[0].mxu0
        %v1027 = vadd.f32 0.0, %v1026
        %v1028 = vpop.f32.mrb[0].mxu0
        %1029 = vmatprep.mubr.f32.mxu0 0.0
        %1030 = vmatmul.mubr.f32.gmra.mrb[0].mxu0 %v549
        %v1031 = vpop.f32.mrb[0].mxu0
        %v1032 = vadd.f32 0.0, %v1031
        %v1033 = vpop.f32.mrb[0].mxu0
        %1034 = vdwg.mxu0
        %v1035 = vadd.f32 %v958, %v1027
        %v1036 = vadd.f32 %v959, %v1032
        %v1037 = vld [vmem:[#allocation7] sm:$0x1]
        %v1039 = vlaneseq
        %v1040 = vshrl.u32 %v1039, 7
        %v1041 = vsub.s32 0, %v1040
        %v1042 = vrot.slane %v1037, %v1041
        %v1044 = vadd.f32 %v1035, %v1042
        %v1045 = vadd.f32 %v1036, %v1042
        %v1046 = vmax.f32 %v1044, 0.0
        %v1047 = vmax.f32 %v1045, 0.0
        %v1048 = vld [vmem:[#allocation9] sm:$0xff]
        %v1049 = vld [vmem:[#allocation9 + $0x8] sm:$0xff]
        %v1050 = vld [vmem:[#allocation9 + $0x10] sm:$0xff]
        %v1051 = vld [vmem:[#allocation9 + $0x18] sm:$0xff]
        %v1052 = vld [vmem:[#allocation9 + $0x20] sm:$0xff]
        %v1053 = vld [vmem:[#allocation9 + $0x28] sm:$0xff]
        %v1054 = vld [vmem:[#allocation9 + $0x30] sm:$0xff]
        %v1055 = vld [vmem:[#allocation9 + $0x38] sm:$0xff]
        %v1056 = vld [vmem:[#allocation9 + $0x40] sm:$0xff]
        %v1057 = vld [vmem:[#allocation9 + $0x48] sm:$0xff]
        %v1058 = vld [vmem:[#allocation9 + $0x50] sm:$0xff]
        %v1059 = vld [vmem:[#allocation9 + $0x58] sm:$0xff]
        %v1060 = vld [vmem:[#allocation9 + $0x60] sm:$0xff]
        %v1061 = vld [vmem:[#allocation9 + $0x68] sm:$0xff]
        %v1062 = vld [vmem:[#allocation9 + $0x70] sm:$0xff]
        %v1063 = vld [vmem:[#allocation9 + $0x78] sm:$0xff]
        %v1064 = vld [vmem:[#allocation9 + $0x80] sm:$0xff]
        %v1065 = vld [vmem:[#allocation9 + $0x88] sm:$0xff]
        %v1066 = vld [vmem:[#allocation9 + $0x90] sm:$0xff]
        %v1067 = vld [vmem:[#allocation9 + $0x98] sm:$0xff]
        %v1068 = vld [vmem:[#allocation9 + $0xa0] sm:$0xff]
        %v1069 = vld [vmem:[#allocation9 + $0xa8] sm:$0xff]
        %v1070 = vld [vmem:[#allocation9 + $0xb0] sm:$0xff]
        %v1071 = vld [vmem:[#allocation9 + $0xb8] sm:$0xff]
        %v1072 = vld [vmem:[#allocation9 + $0xc0] sm:$0xff]
        %v1073 = vld [vmem:[#allocation9 + $0xc8] sm:$0xff]
        %v1074 = vld [vmem:[#allocation9 + $0xd0] sm:$0xff]
        %v1075 = vld [vmem:[#allocation9 + $0xd8] sm:$0xff]
        %v1076 = vld [vmem:[#allocation9 + $0xe0] sm:$0xff]
        %v1077 = vld [vmem:[#allocation9 + $0xe8] sm:$0xff]
        %v1078 = vld [vmem:[#allocation9 + $0xf0] sm:$0xff]
        %v1079 = vld [vmem:[#allocation9 + $0xf8] sm:$0xff]
        %v1080 = vld [vmem:[#allocation9 + $0x100] sm:$0xff]
        %v1081 = vld [vmem:[#allocation9 + $0x108] sm:$0xff]
        %v1082 = vld [vmem:[#allocation9 + $0x110] sm:$0xff]
        %v1083 = vld [vmem:[#allocation9 + $0x118] sm:$0xff]
        %v1084 = vld [vmem:[#allocation9 + $0x120] sm:$0xff]
        %v1085 = vld [vmem:[#allocation9 + $0x128] sm:$0xff]
        %v1086 = vld [vmem:[#allocation9 + $0x130] sm:$0xff]
        %v1087 = vld [vmem:[#allocation9 + $0x138] sm:$0xff]
        %v1088 = vld [vmem:[#allocation9 + $0x140] sm:$0xff]
        %v1089 = vld [vmem:[#allocation9 + $0x148] sm:$0xff]
        %v1090 = vld [vmem:[#allocation9 + $0x150] sm:$0xff]
        %v1091 = vld [vmem:[#allocation9 + $0x158] sm:$0xff]
        %v1092 = vld [vmem:[#allocation9 + $0x160] sm:$0xff]
        %v1093 = vld [vmem:[#allocation9 + $0x168] sm:$0xff]
        %v1094 = vld [vmem:[#allocation9 + $0x170] sm:$0xff]
        %v1095 = vld [vmem:[#allocation9 + $0x178] sm:$0xff]
        %v1096 = vld [vmem:[#allocation9 + $0x180] sm:$0xff]
        %v1097 = vld [vmem:[#allocation9 + $0x188] sm:$0xff]
        %v1098 = vld [vmem:[#allocation9 + $0x190] sm:$0xff]
        %v1099 = vld [vmem:[#allocation9 + $0x198] sm:$0xff]
        %v1100 = vld [vmem:[#allocation9 + $0x1a0] sm:$0xff]
        %v1101 = vld [vmem:[#allocation9 + $0x1a8] sm:$0xff]
        %v1102 = vld [vmem:[#allocation9 + $0x1b0] sm:$0xff]
        %v1103 = vld [vmem:[#allocation9 + $0x1b8] sm:$0xff]
        %v1104 = vld [vmem:[#allocation9 + $0x1c0] sm:$0xff]
        %v1105 = vld [vmem:[#allocation9 + $0x1c8] sm:$0xff]
        %v1106 = vld [vmem:[#allocation9 + $0x1d0] sm:$0xff]
        %v1107 = vld [vmem:[#allocation9 + $0x1d8] sm:$0xff]
        %v1108 = vld [vmem:[#allocation9 + $0x1e0] sm:$0xff]
        %v1109 = vld [vmem:[#allocation9 + $0x1e8] sm:$0xff]
        %v1110 = vld [vmem:[#allocation9 + $0x1f0] sm:$0xff]
        %v1111 = vld [vmem:[#allocation9 + $0x1f8] sm:$0xff]
        %v1112 = vld [vmem:[#allocation9 + $0x200] sm:$0xff]
        %v1113 = vld [vmem:[#allocation9 + $0x208] sm:$0xff]
        %v1114 = vld [vmem:[#allocation9 + $0x210] sm:$0xff]
        %v1115 = vld [vmem:[#allocation9 + $0x218] sm:$0xff]
        %v1116 = vld [vmem:[#allocation9 + $0x220] sm:$0xff]
        %v1117 = vld [vmem:[#allocation9 + $0x228] sm:$0xff]
        %v1118 = vld [vmem:[#allocation9 + $0x230] sm:$0xff]
        %v1119 = vld [vmem:[#allocation9 + $0x238] sm:$0xff]
        %v1120 = vld [vmem:[#allocation9 + $0x240] sm:$0xff]
        %v1121 = vld [vmem:[#allocation9 + $0x248] sm:$0xff]
        %v1122 = vld [vmem:[#allocation9 + $0x250] sm:$0xff]
        %v1123 = vld [vmem:[#allocation9 + $0x258] sm:$0xff]
        %v1124 = vld [vmem:[#allocation9 + $0x260] sm:$0xff]
        %v1125 = vld [vmem:[#allocation9 + $0x268] sm:$0xff]
        %v1126 = vld [vmem:[#allocation9 + $0x270] sm:$0xff]
        %v1127 = vld [vmem:[#allocation9 + $0x278] sm:$0xff]
        %v1128 = vld [vmem:[#allocation9 + $0x280] sm:$0xff]
        %v1129 = vld [vmem:[#allocation9 + $0x288] sm:$0xff]
        %v1130 = vld [vmem:[#allocation9 + $0x290] sm:$0xff]
        %v1131 = vld [vmem:[#allocation9 + $0x298] sm:$0xff]
        %v1132 = vld [vmem:[#allocation9 + $0x2a0] sm:$0xff]
        %v1133 = vld [vmem:[#allocation9 + $0x2a8] sm:$0xff]
        %v1134 = vld [vmem:[#allocation9 + $0x2b0] sm:$0xff]
        %v1135 = vld [vmem:[#allocation9 + $0x2b8] sm:$0xff]
        %v1136 = vld [vmem:[#allocation9 + $0x2c0] sm:$0xff]
        %v1137 = vld [vmem:[#allocation9 + $0x2c8] sm:$0xff]
        %v1138 = vld [vmem:[#allocation9 + $0x2d0] sm:$0xff]
        %v1139 = vld [vmem:[#allocation9 + $0x2d8] sm:$0xff]
        %v1140 = vld [vmem:[#allocation9 + $0x2e0] sm:$0xff]
        %v1141 = vld [vmem:[#allocation9 + $0x2e8] sm:$0xff]
        %v1142 = vld [vmem:[#allocation9 + $0x2f0] sm:$0xff]
        %v1143 = vld [vmem:[#allocation9 + $0x2f8] sm:$0xff]
        %v1144 = vld [vmem:[#allocation9 + $0x300] sm:$0xff]
        %v1145 = vld [vmem:[#allocation9 + $0x308] sm:$0xff]
        %v1146 = vld [vmem:[#allocation9 + $0x310] sm:$0xff]
        %v1147 = vld [vmem:[#allocation9 + $0x318] sm:$0xff]
        %v1148 = vld [vmem:[#allocation9 + $0x320] sm:$0xff]
        %v1149 = vld [vmem:[#allocation9 + $0x328] sm:$0xff]
        %v1150 = vld [vmem:[#allocation9 + $0x330] sm:$0xff]
        %v1151 = vld [vmem:[#allocation9 + $0x338] sm:$0xff]
        %v1152 = vld [vmem:[#allocation9 + $0x340] sm:$0xff]
        %v1153 = vld [vmem:[#allocation9 + $0x348] sm:$0xff]
        %v1154 = vld [vmem:[#allocation9 + $0x350] sm:$0xff]
        %v1155 = vld [vmem:[#allocation9 + $0x358] sm:$0xff]
        %v1156 = vld [vmem:[#allocation9 + $0x360] sm:$0xff]
        %v1157 = vld [vmem:[#allocation9 + $0x368] sm:$0xff]
        %v1158 = vld [vmem:[#allocation9 + $0x370] sm:$0xff]
        %v1159 = vld [vmem:[#allocation9 + $0x378] sm:$0xff]
        %v1160 = vld [vmem:[#allocation9 + $0x380] sm:$0xff]
        %v1161 = vld [vmem:[#allocation9 + $0x388] sm:$0xff]
        %v1162 = vld [vmem:[#allocation9 + $0x390] sm:$0xff]
        %v1163 = vld [vmem:[#allocation9 + $0x398] sm:$0xff]
        %v1164 = vld [vmem:[#allocation9 + $0x3a0] sm:$0xff]
        %v1165 = vld [vmem:[#allocation9 + $0x3a8] sm:$0xff]
        %v1166 = vld [vmem:[#allocation9 + $0x3b0] sm:$0xff]
        %v1167 = vld [vmem:[#allocation9 + $0x3b8] sm:$0xff]
        %v1168 = vld [vmem:[#allocation9 + $0x3c0] sm:$0xff]
        %v1169 = vld [vmem:[#allocation9 + $0x3c8] sm:$0xff]
        %v1170 = vld [vmem:[#allocation9 + $0x3d0] sm:$0xff]
        %v1171 = vld [vmem:[#allocation9 + $0x3d8] sm:$0xff]
        %v1172 = vld [vmem:[#allocation9 + $0x3e0] sm:$0xff]
        %v1173 = vld [vmem:[#allocation9 + $0x3e8] sm:$0xff]
        %v1174 = vld [vmem:[#allocation9 + $0x3f0] sm:$0xff]
        %v1175 = vld [vmem:[#allocation9 + $0x3f8] sm:$0xff]
        %v1176 = vld [vmem:[#allocation9 + $0x400] sm:$0xff]
        %v1177 = vld [vmem:[#allocation9 + $0x408] sm:$0xff]
        %v1178 = vld [vmem:[#allocation9 + $0x410] sm:$0xff]
        %v1179 = vld [vmem:[#allocation9 + $0x418] sm:$0xff]
        %v1180 = vld [vmem:[#allocation9 + $0x420] sm:$0xff]
        %v1181 = vld [vmem:[#allocation9 + $0x428] sm:$0xff]
        %v1182 = vld [vmem:[#allocation9 + $0x430] sm:$0xff]
        %v1183 = vld [vmem:[#allocation9 + $0x438] sm:$0xff]
        %v1184 = vld [vmem:[#allocation9 + $0x440] sm:$0xff]
        %v1185 = vld [vmem:[#allocation9 + $0x448] sm:$0xff]
        %v1186 = vld [vmem:[#allocation9 + $0x450] sm:$0xff]
        %v1187 = vld [vmem:[#allocation9 + $0x458] sm:$0xff]
        %v1188 = vld [vmem:[#allocation9 + $0x460] sm:$0xff]
        %v1189 = vld [vmem:[#allocation9 + $0x468] sm:$0xff]
        %v1190 = vld [vmem:[#allocation9 + $0x470] sm:$0xff]
        %v1191 = vld [vmem:[#allocation9 + $0x478] sm:$0xff]
        %v1192 = vld [vmem:[#allocation9 + $0x480] sm:$0xff]
        %v1193 = vld [vmem:[#allocation9 + $0x488] sm:$0xff]
        %v1194 = vld [vmem:[#allocation9 + $0x490] sm:$0xff]
        %v1195 = vld [vmem:[#allocation9 + $0x498] sm:$0xff]
        %v1196 = vld [vmem:[#allocation9 + $0x4a0] sm:$0xff]
        %v1197 = vld [vmem:[#allocation9 + $0x4a8] sm:$0xff]
        %v1198 = vld [vmem:[#allocation9 + $0x4b0] sm:$0xff]
        %v1199 = vld [vmem:[#allocation9 + $0x4b8] sm:$0xff]
        %v1200 = vld [vmem:[#allocation9 + $0x4c0] sm:$0xff]
        %v1201 = vld [vmem:[#allocation9 + $0x4c8] sm:$0xff]
        %v1202 = vld [vmem:[#allocation9 + $0x4d0] sm:$0xff]
        %v1203 = vld [vmem:[#allocation9 + $0x4d8] sm:$0xff]
        %v1204 = vld [vmem:[#allocation9 + $0x4e0] sm:$0xff]
        %v1205 = vld [vmem:[#allocation9 + $0x4e8] sm:$0xff]
        %v1206 = vld [vmem:[#allocation9 + $0x4f0] sm:$0xff]
        %v1207 = vld [vmem:[#allocation9 + $0x4f8] sm:$0xff]
        %v1208 = vld [vmem:[#allocation9 + $0x500] sm:$0xff]
        %v1209 = vld [vmem:[#allocation9 + $0x508] sm:$0xff]
        %v1210 = vld [vmem:[#allocation9 + $0x510] sm:$0xff]
        %v1211 = vld [vmem:[#allocation9 + $0x518] sm:$0xff]
        %v1212 = vld [vmem:[#allocation9 + $0x520] sm:$0xff]
        %v1213 = vld [vmem:[#allocation9 + $0x528] sm:$0xff]
        %v1214 = vld [vmem:[#allocation9 + $0x530] sm:$0xff]
        %v1215 = vld [vmem:[#allocation9 + $0x538] sm:$0xff]
        %v1216 = vld [vmem:[#allocation9 + $0x540] sm:$0xff]
        %v1217 = vld [vmem:[#allocation9 + $0x548] sm:$0xff]
        %v1218 = vld [vmem:[#allocation9 + $0x550] sm:$0xff]
        %v1219 = vld [vmem:[#allocation9 + $0x558] sm:$0xff]
        %v1220 = vld [vmem:[#allocation9 + $0x560] sm:$0xff]
        %v1221 = vld [vmem:[#allocation9 + $0x568] sm:$0xff]
        %v1222 = vld [vmem:[#allocation9 + $0x570] sm:$0xff]
        %v1223 = vld [vmem:[#allocation9 + $0x578] sm:$0xff]
        %v1224 = vld [vmem:[#allocation9 + $0x580] sm:$0xff]
        %v1225 = vld [vmem:[#allocation9 + $0x588] sm:$0xff]
        %v1226 = vld [vmem:[#allocation9 + $0x590] sm:$0xff]
        %v1227 = vld [vmem:[#allocation9 + $0x598] sm:$0xff]
        %v1228 = vld [vmem:[#allocation9 + $0x5a0] sm:$0xff]
        %v1229 = vld [vmem:[#allocation9 + $0x5a8] sm:$0xff]
        %v1230 = vld [vmem:[#allocation9 + $0x5b0] sm:$0xff]
        %v1231 = vld [vmem:[#allocation9 + $0x5b8] sm:$0xff]
        %v1232 = vld [vmem:[#allocation9 + $0x5c0] sm:$0xff]
        %v1233 = vld [vmem:[#allocation9 + $0x5c8] sm:$0xff]
        %v1234 = vld [vmem:[#allocation9 + $0x5d0] sm:$0xff]
        %v1235 = vld [vmem:[#allocation9 + $0x5d8] sm:$0xff]
        %v1236 = vld [vmem:[#allocation9 + $0x5e0] sm:$0xff]
        %v1237 = vld [vmem:[#allocation9 + $0x5e8] sm:$0xff]
        %v1238 = vld [vmem:[#allocation9 + $0x5f0] sm:$0xff]
        %v1239 = vld [vmem:[#allocation9 + $0x5f8] sm:$0xff]
        %v1240 = vld [vmem:[#allocation9 + $0x600] sm:$0xff]
        %v1241 = vld [vmem:[#allocation9 + $0x608] sm:$0xff]
        %v1242 = vld [vmem:[#allocation9 + $0x610] sm:$0xff]
        %v1243 = vld [vmem:[#allocation9 + $0x618] sm:$0xff]
        %v1244 = vld [vmem:[#allocation9 + $0x620] sm:$0xff]
        %v1245 = vld [vmem:[#allocation9 + $0x628] sm:$0xff]
        %v1246 = vld [vmem:[#allocation9 + $0x630] sm:$0xff]
        %v1247 = vld [vmem:[#allocation9 + $0x638] sm:$0xff]
        %v1248 = vld [vmem:[#allocation9 + $0x640] sm:$0xff]
        %v1249 = vld [vmem:[#allocation9 + $0x648] sm:$0xff]
        %v1250 = vld [vmem:[#allocation9 + $0x650] sm:$0xff]
        %v1251 = vld [vmem:[#allocation9 + $0x658] sm:$0xff]
        %v1252 = vld [vmem:[#allocation9 + $0x660] sm:$0xff]
        %v1253 = vld [vmem:[#allocation9 + $0x668] sm:$0xff]
        %v1254 = vld [vmem:[#allocation9 + $0x670] sm:$0xff]
        %v1255 = vld [vmem:[#allocation9 + $0x678] sm:$0xff]
        %v1256 = vld [vmem:[#allocation9 + $0x680] sm:$0xff]
        %v1257 = vld [vmem:[#allocation9 + $0x688] sm:$0xff]
        %v1258 = vld [vmem:[#allocation9 + $0x690] sm:$0xff]
        %v1259 = vld [vmem:[#allocation9 + $0x698] sm:$0xff]
        %v1260 = vld [vmem:[#allocation9 + $0x6a0] sm:$0xff]
        %v1261 = vld [vmem:[#allocation9 + $0x6a8] sm:$0xff]
        %v1262 = vld [vmem:[#allocation9 + $0x6b0] sm:$0xff]
        %v1263 = vld [vmem:[#allocation9 + $0x6b8] sm:$0xff]
        %v1264 = vld [vmem:[#allocation9 + $0x6c0] sm:$0xff]
        %v1265 = vld [vmem:[#allocation9 + $0x6c8] sm:$0xff]
        %v1266 = vld [vmem:[#allocation9 + $0x6d0] sm:$0xff]
        %v1267 = vld [vmem:[#allocation9 + $0x6d8] sm:$0xff]
        %v1268 = vld [vmem:[#allocation9 + $0x6e0] sm:$0xff]
        %v1269 = vld [vmem:[#allocation9 + $0x6e8] sm:$0xff]
        %v1270 = vld [vmem:[#allocation9 + $0x6f0] sm:$0xff]
        %v1271 = vld [vmem:[#allocation9 + $0x6f8] sm:$0xff]
        %v1272 = vld [vmem:[#allocation9 + $0x700] sm:$0xff]
        %v1273 = vld [vmem:[#allocation9 + $0x708] sm:$0xff]
        %v1274 = vld [vmem:[#allocation9 + $0x710] sm:$0xff]
        %v1275 = vld [vmem:[#allocation9 + $0x718] sm:$0xff]
        %v1276 = vld [vmem:[#allocation9 + $0x720] sm:$0xff]
        %v1277 = vld [vmem:[#allocation9 + $0x728] sm:$0xff]
        %v1278 = vld [vmem:[#allocation9 + $0x730] sm:$0xff]
        %v1279 = vld [vmem:[#allocation9 + $0x738] sm:$0xff]
        %v1280 = vld [vmem:[#allocation9 + $0x740] sm:$0xff]
        %v1281 = vld [vmem:[#allocation9 + $0x748] sm:$0xff]
        %v1282 = vld [vmem:[#allocation9 + $0x750] sm:$0xff]
        %v1283 = vld [vmem:[#allocation9 + $0x758] sm:$0xff]
        %v1284 = vld [vmem:[#allocation9 + $0x760] sm:$0xff]
        %v1285 = vld [vmem:[#allocation9 + $0x768] sm:$0xff]
        %v1286 = vld [vmem:[#allocation9 + $0x770] sm:$0xff]
        %v1287 = vld [vmem:[#allocation9 + $0x778] sm:$0xff]
        %v1288 = vld [vmem:[#allocation9 + $0x780] sm:$0xff]
        %v1289 = vld [vmem:[#allocation9 + $0x788] sm:$0xff]
        %v1290 = vld [vmem:[#allocation9 + $0x790] sm:$0xff]
        %v1291 = vld [vmem:[#allocation9 + $0x798] sm:$0xff]
        %v1292 = vld [vmem:[#allocation9 + $0x7a0] sm:$0xff]
        %v1293 = vld [vmem:[#allocation9 + $0x7a8] sm:$0xff]
        %v1294 = vld [vmem:[#allocation9 + $0x7b0] sm:$0xff]
        %v1295 = vld [vmem:[#allocation9 + $0x7b8] sm:$0xff]
        %v1296 = vld [vmem:[#allocation9 + $0x7c0] sm:$0xff]
        %v1297 = vld [vmem:[#allocation9 + $0x7c8] sm:$0xff]
        %v1298 = vld [vmem:[#allocation9 + $0x7d0] sm:$0xff]
        %v1299 = vld [vmem:[#allocation9 + $0x7d8] sm:$0xff]
        %v1300 = vld [vmem:[#allocation9 + $0x7e0] sm:$0xff]
        %v1301 = vld [vmem:[#allocation9 + $0x7e8] sm:$0xff]
        %v1302 = vld [vmem:[#allocation9 + $0x7f0] sm:$0xff]
        %v1303 = vld [vmem:[#allocation9 + $0x7f8] sm:$0xff]
        %v1305 = vrot.slane %v1046, 2
        %1307 = vmatprep.subr.mxu0 %v1177
        %1308 = vmatpush1.msra.mxu0 %v1176
        %1309 = vmatprep.subr.mxu0 %v1185
        %1310 = vmatpush1.msra.mxu0 %v1184
        %1311 = vmatprep.subr.mxu0 %v1193
        %1312 = vmatpush1.msra.mxu0 %v1192
        %1313 = vmatprep.subr.mxu0 %v1201
        %1314 = vmatpush1.msra.mxu0 %v1200
        %1315 = vmatprep.subr.mxu0 %v1209
        %1316 = vmatpush1.msra.mxu0 %v1208
        %1317 = vmatprep.subr.mxu0 %v1217
        %1318 = vmatpush1.msra.mxu0 %v1216
        %1319 = vmatprep.subr.mxu0 %v1225
        %1320 = vmatpush1.msra.mxu0 %v1224
        %1321 = vmatprep.subr.mxu0 %v1233
        %1322 = vmatpush1.msra.mxu0 %v1232
        %1323 = vmatprep.subr.mxu0 %v1241
        %1324 = vmatpush1.msra.mxu0 %v1240
        %1325 = vmatprep.subr.mxu0 %v1249
        %1326 = vmatpush1.msra.mxu0 %v1248
        %1327 = vmatprep.subr.mxu0 %v1257
        %1328 = vmatpush1.msra.mxu0 %v1256
        %1329 = vmatprep.subr.mxu0 %v1265
        %1330 = vmatpush1.msra.mxu0 %v1264
        %1331 = vmatprep.subr.mxu0 %v1273
        %1332 = vmatpush1.msra.mxu0 %v1272
        %1333 = vmatprep.subr.mxu0 %v1281
        %1334 = vmatpush1.msra.mxu0 %v1280
        %1335 = vmatprep.subr.mxu0 %v1289
        %1336 = vmatpush1.msra.mxu0 %v1288
        %1337 = vmatprep.subr.mxu0 %v1297
        %1338 = vmatpush1.msra.mxu0 %v1296
        %1339 = vmatprep.subr.mxu0 0.0
        %1340 = vmatpush1.msra.mxu0 0.0
        %1341 = vmatprep.subr.mxu0 0.0
        %1342 = vmatpush1.msra.mxu0 0.0
        %1343 = vmatprep.subr.mxu0 0.0
        %1344 = vmatpush1.msra.mxu0 0.0
        %1345 = vmatprep.subr.mxu0 0.0
        %1346 = vmatpush1.msra.mxu0 0.0
        %1347 = vmatprep.subr.mxu0 0.0
        %1348 = vmatpush1.msra.mxu0 0.0
        %1349 = vmatprep.subr.mxu0 0.0
        %1350 = vmatpush1.msra.mxu0 0.0
        %1351 = vmatprep.subr.mxu0 0.0
        %1352 = vmatpush1.msra.mxu0 0.0
        %1353 = vmatprep.subr.mxu0 0.0
        %1354 = vmatpush1.msra.mxu0 0.0
        %1355 = vmatprep.subr.mxu0 0.0
        %1356 = vmatpush1.msra.mxu0 0.0
        %1357 = vmatprep.subr.mxu0 0.0
        %1358 = vmatpush1.msra.mxu0 0.0
        %1359 = vmatprep.subr.mxu0 0.0
        %1360 = vmatpush1.msra.mxu0 0.0
        %1361 = vmatprep.subr.mxu0 0.0
        %1362 = vmatpush1.msra.mxu0 0.0
        %1363 = vmatprep.subr.mxu0 0.0
        %1364 = vmatpush1.msra.mxu0 0.0
        %1365 = vmatprep.subr.mxu0 0.0
        %1366 = vmatpush1.msra.mxu0 0.0
        %1367 = vmatprep.subr.mxu0 0.0
        %1368 = vmatpush1.msra.mxu0 0.0
        %1369 = vmatprep.subr.mxu0 0.0
        %1370 = vmatpush1.msra.mxu0 0.0
        %1371 = vmatprep.mubr.f32.mxu0 0.0
        %1372 = vmatmul.mubr.f32.gmra.mrb[0].mxu0 %v1305
        %v1373 = vpop.f32.mrb[0].mxu0
        %v1374 = vadd.f32 0.0, %v1373
        %v1375 = vpop.f32.mrb[0].mxu0
        %v1376 = vadd.f32 0.0, %v1375
        %1377 = vdwg.mxu0
        %1378 = vmatprep.subr.mxu0 %v1179
        %1379 = vmatpush1.msra.mxu0 %v1178
        %1380 = vmatprep.subr.mxu0 %v1187
        %1381 = vmatpush1.msra.mxu0 %v1186
        %1382 = vmatprep.subr.mxu0 %v1195
        %1383 = vmatpush1.msra.mxu0 %v1194
        %1384 = vmatprep.subr.mxu0 %v1203
        %1385 = vmatpush1.msra.mxu0 %v1202
        %1386 = vmatprep.subr.mxu0 %v1211
        %1387 = vmatpush1.msra.mxu0 %v1210
        %1388 = vmatprep.subr.mxu0 %v1219
        %1389 = vmatpush1.msra.mxu0 %v1218
        %1390 = vmatprep.subr.mxu0 %v1227
        %1391 = vmatpush1.msra.mxu0 %v1226
        %1392 = vmatprep.subr.mxu0 %v1235
        %1393 = vmatpush1.msra.mxu0 %v1234
        %1394 = vmatprep.subr.mxu0 %v1243
        %1395 = vmatpush1.msra.mxu0 %v1242
        %1396 = vmatprep.subr.mxu0 %v1251
        %1397 = vmatpush1.msra.mxu0 %v1250
        %1398 = vmatprep.subr.mxu0 %v1259
        %1399 = vmatpush1.msra.mxu0 %v1258
        %1400 = vmatprep.subr.mxu0 %v1267
        %1401 = vmatpush1.msra.mxu0 %v1266
        %1402 = vmatprep.subr.mxu0 %v1275
        %1403 = vmatpush1.msra.mxu0 %v1274
        %1404 = vmatprep.subr.mxu0 %v1283
        %1405 = vmatpush1.msra.mxu0 %v1282
        %1406 = vmatprep.subr.mxu0 %v1291
        %1407 = vmatpush1.msra.mxu0 %v1290
        %1408 = vmatprep.subr.mxu0 %v1299
        %1409 = vmatpush1.msra.mxu0 %v1298
        %1410 = vmatprep.subr.mxu0 0.0
        %1411 = vmatpush1.msra.mxu0 0.0
        %1412 = vmatprep.subr.mxu0 0.0
        %1413 = vmatpush1.msra.mxu0 0.0
        %1414 = vmatprep.subr.mxu0 0.0
        %1415 = vmatpush1.msra.mxu0 0.0
        %1416 = vmatprep.subr.mxu0 0.0
        %1417 = vmatpush1.msra.mxu0 0.0
        %1418 = vmatprep.subr.mxu0 0.0
        %1419 = vmatpush1.msra.mxu0 0.0
        %1420 = vmatprep.subr.mxu0 0.0
        %1421 = vmatpush1.msra.mxu0 0.0
        %1422 = vmatprep.subr.mxu0 0.0
        %1423 = vmatpush1.msra.mxu0 0.0
        %1424 = vmatprep.subr.mxu0 0.0
        %1425 = vmatpush1.msra.mxu0 0.0
        %1426 = vmatprep.subr.mxu0 0.0
        %1427 = vmatpush1.msra.mxu0 0.0
        %1428 = vmatprep.subr.mxu0 0.0
        %1429 = vmatpush1.msra.mxu0 0.0
        %1430 = vmatprep.subr.mxu0 0.0
        %1431 = vmatpush1.msra.mxu0 0.0
        %1432 = vmatprep.subr.mxu0 0.0
        %1433 = vmatpush1.msra.mxu0 0.0
        %1434 = vmatprep.subr.mxu0 0.0
        %1435 = vmatpush1.msra.mxu0 0.0
        %1436 = vmatprep.subr.mxu0 0.0
        %1437 = vmatpush1.msra.mxu0 0.0
        %1438 = vmatprep.subr.mxu0 0.0
        %1439 = vmatpush1.msra.mxu0 0.0
        %1440 = vmatprep.subr.mxu0 0.0
        %1441 = vmatpush1.msra.mxu0 0.0
        %1442 = vmatprep.mubr.f32.mxu0 0.0
        %1443 = vmatmul.mubr.f32.gmra.mrb[0].mxu0 %v1305
        %v1444 = vpop.f32.mrb[0].mxu0
        %v1445 = vadd.f32 0.0, %v1444
        %v1446 = vpop.f32.mrb[0].mxu0
        %v1447 = vadd.f32 0.0, %v1446
        %1448 = vdwg.mxu0
        %1449 = vmatprep.subr.mxu0 %v1181
        %1450 = vmatpush1.msra.mxu0 %v1180
        %1451 = vmatprep.subr.mxu0 %v1189
        %1452 = vmatpush1.msra.mxu0 %v1188
        %1453 = vmatprep.subr.mxu0 %v1197
        %1454 = vmatpush1.msra.mxu0 %v1196
        %1455 = vmatprep.subr.mxu0 %v1205
        %1456 = vmatpush1.msra.mxu0 %v1204
        %1457 = vmatprep.subr.mxu0 %v1213
        %1458 = vmatpush1.msra.mxu0 %v1212
        %1459 = vmatprep.subr.mxu0 %v1221
        %1460 = vmatpush1.msra.mxu0 %v1220
        %1461 = vmatprep.subr.mxu0 %v1229
        %1462 = vmatpush1.msra.mxu0 %v1228
        %1463 = vmatprep.subr.mxu0 %v1237
        %1464 = vmatpush1.msra.mxu0 %v1236
        %1465 = vmatprep.subr.mxu0 %v1245
        %1466 = vmatpush1.msra.mxu0 %v1244
        %1467 = vmatprep.subr.mxu0 %v1253
        %1468 = vmatpush1.msra.mxu0 %v1252
        %1469 = vmatprep.subr.mxu0 %v1261
        %1470 = vmatpush1.msra.mxu0 %v1260
        %1471 = vmatprep.subr.mxu0 %v1269
        %1472 = vmatpush1.msra.mxu0 %v1268
        %1473 = vmatprep.subr.mxu0 %v1277
        %1474 = vmatpush1.msra.mxu0 %v1276
        %1475 = vmatprep.subr.mxu0 %v1285
        %1476 = vmatpush1.msra.mxu0 %v1284
        %1477 = vmatprep.subr.mxu0 %v1293
        %1478 = vmatpush1.msra.mxu0 %v1292
        %1479 = vmatprep.subr.mxu0 %v1301
        %1480 = vmatpush1.msra.mxu0 %v1300
        %1481 = vmatprep.subr.mxu0 0.0
        %1482 = vmatpush1.msra.mxu0 0.0
        %1483 = vmatprep.subr.mxu0 0.0
        %1484 = vmatpush1.msra.mxu0 0.0
        %1485 = vmatprep.subr.mxu0 0.0
        %1486 = vmatpush1.msra.mxu0 0.0
        %1487 = vmatprep.subr.mxu0 0.0
        %1488 = vmatpush1.msra.mxu0 0.0
        %1489 = vmatprep.subr.mxu0 0.0
        %1490 = vmatpush1.msra.mxu0 0.0
        %1491 = vmatprep.subr.mxu0 0.0
        %1492 = vmatpush1.msra.mxu0 0.0
        %1493 = vmatprep.subr.mxu0 0.0
        %1494 = vmatpush1.msra.mxu0 0.0
        %1495 = vmatprep.subr.mxu0 0.0
        %1496 = vmatpush1.msra.mxu0 0.0
        %1497 = vmatprep.subr.mxu0 0.0
        %1498 = vmatpush1.msra.mxu0 0.0
        %1499 = vmatprep.subr.mxu0 0.0
        %1500 = vmatpush1.msra.mxu0 0.0
        %1501 = vmatprep.subr.mxu0 0.0
        %1502 = vmatpush1.msra.mxu0 0.0
        %1503 = vmatprep.subr.mxu0 0.0
        %1504 = vmatpush1.msra.mxu0 0.0
        %1505 = vmatprep.subr.mxu0 0.0
        %1506 = vmatpush1.msra.mxu0 0.0
        %1507 = vmatprep.subr.mxu0 0.0
        %1508 = vmatpush1.msra.mxu0 0.0
        %1509 = vmatprep.subr.mxu0 0.0
        %1510 = vmatpush1.msra.mxu0 0.0
        %1511 = vmatprep.subr.mxu0 0.0
        %1512 = vmatpush1.msra.mxu0 0.0
        %1513 = vmatprep.mubr.f32.mxu0 0.0
        %1514 = vmatmul.mubr.f32.gmra.mrb[0].mxu0 %v1305
        %v1515 = vpop.f32.mrb[0].mxu0
        %v1516 = vadd.f32 0.0, %v1515
        %v1517 = vpop.f32.mrb[0].mxu0
        %v1518 = vadd.f32 0.0, %v1517
        %1519 = vdwg.mxu0
        %1520 = vmatprep.subr.mxu0 %v1183
        %1521 = vmatpush1.msra.mxu0 %v1182
        %1522 = vmatprep.subr.mxu0 %v1191
        %1523 = vmatpush1.msra.mxu0 %v1190
        %1524 = vmatprep.subr.mxu0 %v1199
        %1525 = vmatpush1.msra.mxu0 %v1198
        %1526 = vmatprep.subr.mxu0 %v1207
        %1527 = vmatpush1.msra.mxu0 %v1206
        %1528 = vmatprep.subr.mxu0 %v1215
        %1529 = vmatpush1.msra.mxu0 %v1214
        %1530 = vmatprep.subr.mxu0 %v1223
        %1531 = vmatpush1.msra.mxu0 %v1222
        %1532 = vmatprep.subr.mxu0 %v1231
        %1533 = vmatpush1.msra.mxu0 %v1230
        %1534 = vmatprep.subr.mxu0 %v1239
        %1535 = vmatpush1.msra.mxu0 %v1238
        %1536 = vmatprep.subr.mxu0 %v1247
        %1537 = vmatpush1.msra.mxu0 %v1246
        %1538 = vmatprep.subr.mxu0 %v1255
        %1539 = vmatpush1.msra.mxu0 %v1254
        %1540 = vmatprep.subr.mxu0 %v1263
        %1541 = vmatpush1.msra.mxu0 %v1262
        %1542 = vmatprep.subr.mxu0 %v1271
        %1543 = vmatpush1.msra.mxu0 %v1270
        %1544 = vmatprep.subr.mxu0 %v1279
        %1545 = vmatpush1.msra.mxu0 %v1278
        %1546 = vmatprep.subr.mxu0 %v1287
        %1547 = vmatpush1.msra.mxu0 %v1286
        %1548 = vmatprep.subr.mxu0 %v1295
        %1549 = vmatpush1.msra.mxu0 %v1294
        %1550 = vmatprep.subr.mxu0 %v1303
        %1551 = vmatpush1.msra.mxu0 %v1302
        %1552 = vmatprep.subr.mxu0 0.0
        %1553 = vmatpush1.msra.mxu0 0.0
        %1554 = vmatprep.subr.mxu0 0.0
        %1555 = vmatpush1.msra.mxu0 0.0
        %1556 = vmatprep.subr.mxu0 0.0
        %1557 = vmatpush1.msra.mxu0 0.0
        %1558 = vmatprep.subr.mxu0 0.0
        %1559 = vmatpush1.msra.mxu0 0.0
        %1560 = vmatprep.subr.mxu0 0.0
        %1561 = vmatpush1.msra.mxu0 0.0
        %1562 = vmatprep.subr.mxu0 0.0
        %1563 = vmatpush1.msra.mxu0 0.0
        %1564 = vmatprep.subr.mxu0 0.0
        %1565 = vmatpush1.msra.mxu0 0.0
        %1566 = vmatprep.subr.mxu0 0.0
        %1567 = vmatpush1.msra.mxu0 0.0
        %1568 = vmatprep.subr.mxu0 0.0
        %1569 = vmatpush1.msra.mxu0 0.0
        %1570 = vmatprep.subr.mxu0 0.0
        %1571 = vmatpush1.msra.mxu0 0.0
        %1572 = vmatprep.subr.mxu0 0.0
        %1573 = vmatpush1.msra.mxu0 0.0
        %1574 = vmatprep.subr.mxu0 0.0
        %1575 = vmatpush1.msra.mxu0 0.0
        %1576 = vmatprep.subr.mxu0 0.0
        %1577 = vmatpush1.msra.mxu0 0.0
        %1578 = vmatprep.subr.mxu0 0.0
        %1579 = vmatpush1.msra.mxu0 0.0
        %1580 = vmatprep.subr.mxu0 0.0
        %1581 = vmatpush1.msra.mxu0 0.0
        %1582 = vmatprep.subr.mxu0 0.0
        %1583 = vmatpush1.msra.mxu0 0.0
        %1584 = vmatprep.mubr.f32.mxu0 0.0
        %1585 = vmatmul.mubr.f32.gmra.mrb[0].mxu0 %v1305
        %v1586 = vpop.f32.mrb[0].mxu0
        %v1587 = vadd.f32 0.0, %v1586
        %v1588 = vpop.f32.mrb[0].mxu0
        %v1589 = vadd.f32 0.0, %v1588
        %1590 = vdwg.mxu0
        %1591 = vmatprep.subr.mxu0 %v1049
        %1592 = vmatpush1.msra.mxu0 %v1048
        %1593 = vmatprep.subr.mxu0 %v1057
        %1594 = vmatpush1.msra.mxu0 %v1056
        %1595 = vmatprep.subr.mxu0 %v1065
        %1596 = vmatpush1.msra.mxu0 %v1064
        %1597 = vmatprep.subr.mxu0 %v1073
        %1598 = vmatpush1.msra.mxu0 %v1072
        %1599 = vmatprep.subr.mxu0 %v1081
        %1600 = vmatpush1.msra.mxu0 %v1080
        %1601 = vmatprep.subr.mxu0 %v1089
        %1602 = vmatpush1.msra.mxu0 %v1088
        %1603 = vmatprep.subr.mxu0 %v1097
        %1604 = vmatpush1.msra.mxu0 %v1096
        %1605 = vmatprep.subr.mxu0 %v1105
        %1606 = vmatpush1.msra.mxu0 %v1104
        %1607 = vmatprep.subr.mxu0 %v1113
        %1608 = vmatpush1.msra.mxu0 %v1112
        %1609 = vmatprep.subr.mxu0 %v1121
        %1610 = vmatpush1.msra.mxu0 %v1120
        %1611 = vmatprep.subr.mxu0 %v1129
        %1612 = vmatpush1.msra.mxu0 %v1128
        %1613 = vmatprep.subr.mxu0 %v1137
        %1614 = vmatpush1.msra.mxu0 %v1136
        %1615 = vmatprep.subr.mxu0 %v1145
        %1616 = vmatpush1.msra.mxu0 %v1144
        %1617 = vmatprep.subr.mxu0 %v1153
        %1618 = vmatpush1.msra.mxu0 %v1152
        %1619 = vmatprep.subr.mxu0 %v1161
        %1620 = vmatpush1.msra.mxu0 %v1160
        %1621 = vmatprep.subr.mxu0 %v1169
        %1622 = vmatpush1.msra.mxu0 %v1168
        %1623 = vmatprep.subr.mxu0 0.0
        %1624 = vmatpush1.msra.mxu0 0.0
        %1625 = vmatprep.subr.mxu0 0.0
        %1626 = vmatpush1.msra.mxu0 0.0
        %1627 = vmatprep.subr.mxu0 0.0
        %1628 = vmatpush1.msra.mxu0 0.0
        %1629 = vmatprep.subr.mxu0 0.0
        %1630 = vmatpush1.msra.mxu0 0.0
        %1631 = vmatprep.subr.mxu0 0.0
        %1632 = vmatpush1.msra.mxu0 0.0
        %1633 = vmatprep.subr.mxu0 0.0
        %1634 = vmatpush1.msra.mxu0 0.0
        %1635 = vmatprep.subr.mxu0 0.0
        %1636 = vmatpush1.msra.mxu0 0.0
        %1637 = vmatprep.subr.mxu0 0.0
        %1638 = vmatpush1.msra.mxu0 0.0
        %1639 = vmatprep.subr.mxu0 0.0
        %1640 = vmatpush1.msra.mxu0 0.0
        %1641 = vmatprep.subr.mxu0 0.0
        %1642 = vmatpush1.msra.mxu0 0.0
        %1643 = vmatprep.subr.mxu0 0.0
        %1644 = vmatpush1.msra.mxu0 0.0
        %1645 = vmatprep.subr.mxu0 0.0
        %1646 = vmatpush1.msra.mxu0 0.0
        %1647 = vmatprep.subr.mxu0 0.0
        %1648 = vmatpush1.msra.mxu0 0.0
        %1649 = vmatprep.subr.mxu0 0.0
        %1650 = vmatpush1.msra.mxu0 0.0
        %1651 = vmatprep.subr.mxu0 0.0
        %1652 = vmatpush1.msra.mxu0 0.0
        %1653 = vmatprep.subr.mxu0 0.0
        %1654 = vmatpush1.msra.mxu0 0.0
        %1655 = vmatprep.mubr.f32.mxu0 0.0
        %1656 = vmatmul.mubr.f32.gmra.mrb[0].mxu0 %v1046
        %v1657 = vpop.f32.mrb[0].mxu0
        %v1658 = vadd.f32 %v1374, %v1657
        %v1659 = vpop.f32.mrb[0].mxu0
        %v1660 = vadd.f32 %v1376, %v1659
        %1661 = vdwg.mxu0
        %1662 = vmatprep.subr.mxu0 %v1051
        %1663 = vmatpush1.msra.mxu0 %v1050
        %1664 = vmatprep.subr.mxu0 %v1059
        %1665 = vmatpush1.msra.mxu0 %v1058
        %1666 = vmatprep.subr.mxu0 %v1067
        %1667 = vmatpush1.msra.mxu0 %v1066
        %1668 = vmatprep.subr.mxu0 %v1075
        %1669 = vmatpush1.msra.mxu0 %v1074
        %1670 = vmatprep.subr.mxu0 %v1083
        %1671 = vmatpush1.msra.mxu0 %v1082
        %1672 = vmatprep.subr.mxu0 %v1091
        %1673 = vmatpush1.msra.mxu0 %v1090
        %1674 = vmatprep.subr.mxu0 %v1099
        %1675 = vmatpush1.msra.mxu0 %v1098
        %1676 = vmatprep.subr.mxu0 %v1107
        %1677 = vmatpush1.msra.mxu0 %v1106
        %1678 = vmatprep.subr.mxu0 %v1115
        %1679 = vmatpush1.msra.mxu0 %v1114
        %1680 = vmatprep.subr.mxu0 %v1123
        %1681 = vmatpush1.msra.mxu0 %v1122
        %1682 = vmatprep.subr.mxu0 %v1131
        %1683 = vmatpush1.msra.mxu0 %v1130
        %1684 = vmatprep.subr.mxu0 %v1139
        %1685 = vmatpush1.msra.mxu0 %v1138
        %1686 = vmatprep.subr.mxu0 %v1147
        %1687 = vmatpush1.msra.mxu0 %v1146
        %1688 = vmatprep.subr.mxu0 %v1155
        %1689 = vmatpush1.msra.mxu0 %v1154
        %1690 = vmatprep.subr.mxu0 %v1163
        %1691 = vmatpush1.msra.mxu0 %v1162
        %1692 = vmatprep.subr.mxu0 %v1171
        %1693 = vmatpush1.msra.mxu0 %v1170
        %1694 = vmatprep.subr.mxu0 0.0
        %1695 = vmatpush1.msra.mxu0 0.0
        %1696 = vmatprep.subr.mxu0 0.0
        %1697 = vmatpush1.msra.mxu0 0.0
        %1698 = vmatprep.subr.mxu0 0.0
        %1699 = vmatpush1.msra.mxu0 0.0
        %1700 = vmatprep.subr.mxu0 0.0
        %1701 = vmatpush1.msra.mxu0 0.0
        %1702 = vmatprep.subr.mxu0 0.0
        %1703 = vmatpush1.msra.mxu0 0.0
        %1704 = vmatprep.subr.mxu0 0.0
        %1705 = vmatpush1.msra.mxu0 0.0
        %1706 = vmatprep.subr.mxu0 0.0
        %1707 = vmatpush1.msra.mxu0 0.0
        %1708 = vmatprep.subr.mxu0 0.0
        %1709 = vmatpush1.msra.mxu0 0.0
        %1710 = vmatprep.subr.mxu0 0.0
        %1711 = vmatpush1.msra.mxu0 0.0
        %1712 = vmatprep.subr.mxu0 0.0
        %1713 = vmatpush1.msra.mxu0 0.0
        %1714 = vmatprep.subr.mxu0 0.0
        %1715 = vmatpush1.msra.mxu0 0.0
        %1716 = vmatprep.subr.mxu0 0.0
        %1717 = vmatpush1.msra.mxu0 0.0
        %1718 = vmatprep.subr.mxu0 0.0
        %1719 = vmatpush1.msra.mxu0 0.0
        %1720 = vmatprep.subr.mxu0 0.0
        %1721 = vmatpush1.msra.mxu0 0.0
        %1722 = vmatprep.subr.mxu0 0.0
        %1723 = vmatpush1.msra.mxu0 0.0
        %1724 = vmatprep.subr.mxu0 0.0
        %1725 = vmatpush1.msra.mxu0 0.0
        %1726 = vmatprep.mubr.f32.mxu0 0.0
        %1727 = vmatmul.mubr.f32.gmra.mrb[0].mxu0 %v1046
        %v1728 = vpop.f32.mrb[0].mxu0
        %v1729 = vadd.f32 %v1445, %v1728
        %v1730 = vpop.f32.mrb[0].mxu0
        %v1731 = vadd.f32 %v1447, %v1730
        %1732 = vdwg.mxu0
        %1733 = vmatprep.subr.mxu0 %v1053
        %1734 = vmatpush1.msra.mxu0 %v1052
        %1735 = vmatprep.subr.mxu0 %v1061
        %1736 = vmatpush1.msra.mxu0 %v1060
        %1737 = vmatprep.subr.mxu0 %v1069
        %1738 = vmatpush1.msra.mxu0 %v1068
        %1739 = vmatprep.subr.mxu0 %v1077
        %1740 = vmatpush1.msra.mxu0 %v1076
        %1741 = vmatprep.subr.mxu0 %v1085
        %1742 = vmatpush1.msra.mxu0 %v1084
        %1743 = vmatprep.subr.mxu0 %v1093
        %1744 = vmatpush1.msra.mxu0 %v1092
        %1745 = vmatprep.subr.mxu0 %v1101
        %1746 = vmatpush1.msra.mxu0 %v1100
        %1747 = vmatprep.subr.mxu0 %v1109
        %1748 = vmatpush1.msra.mxu0 %v1108
        %1749 = vmatprep.subr.mxu0 %v1117
        %1750 = vmatpush1.msra.mxu0 %v1116
        %1751 = vmatprep.subr.mxu0 %v1125
        %1752 = vmatpush1.msra.mxu0 %v1124
        %1753 = vmatprep.subr.mxu0 %v1133
        %1754 = vmatpush1.msra.mxu0 %v1132
        %1755 = vmatprep.subr.mxu0 %v1141
        %1756 = vmatpush1.msra.mxu0 %v1140
        %1757 = vmatprep.subr.mxu0 %v1149
        %1758 = vmatpush1.msra.mxu0 %v1148
        %1759 = vmatprep.subr.mxu0 %v1157
        %1760 = vmatpush1.msra.mxu0 %v1156
        %1761 = vmatprep.subr.mxu0 %v1165
        %1762 = vmatpush1.msra.mxu0 %v1164
        %1763 = vmatprep.subr.mxu0 %v1173
        %1764 = vmatpush1.msra.mxu0 %v1172
        %1765 = vmatprep.subr.mxu0 0.0
        %1766 = vmatpush1.msra.mxu0 0.0
        %1767 = vmatprep.subr.mxu0 0.0
        %1768 = vmatpush1.msra.mxu0 0.0
        %1769 = vmatprep.subr.mxu0 0.0
        %1770 = vmatpush1.msra.mxu0 0.0
        %1771 = vmatprep.subr.mxu0 0.0
        %1772 = vmatpush1.msra.mxu0 0.0
        %1773 = vmatprep.subr.mxu0 0.0
        %1774 = vmatpush1.msra.mxu0 0.0
        %1775 = vmatprep.subr.mxu0 0.0
        %1776 = vmatpush1.msra.mxu0 0.0
        %1777 = vmatprep.subr.mxu0 0.0
        %1778 = vmatpush1.msra.mxu0 0.0
        %1779 = vmatprep.subr.mxu0 0.0
        %1780 = vmatpush1.msra.mxu0 0.0
        %1781 = vmatprep.subr.mxu0 0.0
        %1782 = vmatpush1.msra.mxu0 0.0
        %1783 = vmatprep.subr.mxu0 0.0
        %1784 = vmatpush1.msra.mxu0 0.0
        %1785 = vmatprep.subr.mxu0 0.0
        %1786 = vmatpush1.msra.mxu0 0.0
        %1787 = vmatprep.subr.mxu0 0.0
        %1788 = vmatpush1.msra.mxu0 0.0
        %1789 = vmatprep.subr.mxu0 0.0
        %1790 = vmatpush1.msra.mxu0 0.0
        %1791 = vmatprep.subr.mxu0 0.0
        %1792 = vmatpush1.msra.mxu0 0.0
        %1793 = vmatprep.subr.mxu0 0.0
        %1794 = vmatpush1.msra.mxu0 0.0
        %1795 = vmatprep.subr.mxu0 0.0
        %1796 = vmatpush1.msra.mxu0 0.0
        %1797 = vmatprep.mubr.f32.mxu0 0.0
        %1798 = vmatmul.mubr.f32.gmra.mrb[0].mxu0 %v1046
        %v1799 = vpop.f32.mrb[0].mxu0
        %v1800 = vadd.f32 %v1516, %v1799
        %v1801 = vpop.f32.mrb[0].mxu0
        %v1802 = vadd.f32 %v1518, %v1801
        %1803 = vdwg.mxu0
        %1804 = vmatprep.subr.mxu0 %v1055
        %1805 = vmatpush1.msra.mxu0 %v1054
        %1806 = vmatprep.subr.mxu0 %v1063
        %1807 = vmatpush1.msra.mxu0 %v1062
        %1808 = vmatprep.subr.mxu0 %v1071
        %1809 = vmatpush1.msra.mxu0 %v1070
        %1810 = vmatprep.subr.mxu0 %v1079
        %1811 = vmatpush1.msra.mxu0 %v1078
        %1812 = vmatprep.subr.mxu0 %v1087
        %1813 = vmatpush1.msra.mxu0 %v1086
        %1814 = vmatprep.subr.mxu0 %v1095
        %1815 = vmatpush1.msra.mxu0 %v1094
        %1816 = vmatprep.subr.mxu0 %v1103
        %1817 = vmatpush1.msra.mxu0 %v1102
        %1818 = vmatprep.subr.mxu0 %v1111
        %1819 = vmatpush1.msra.mxu0 %v1110
        %1820 = vmatprep.subr.mxu0 %v1119
        %1821 = vmatpush1.msra.mxu0 %v1118
        %1822 = vmatprep.subr.mxu0 %v1127
        %1823 = vmatpush1.msra.mxu0 %v1126
        %1824 = vmatprep.subr.mxu0 %v1135
        %1825 = vmatpush1.msra.mxu0 %v1134
        %1826 = vmatprep.subr.mxu0 %v1143
        %1827 = vmatpush1.msra.mxu0 %v1142
        %1828 = vmatprep.subr.mxu0 %v1151
        %1829 = vmatpush1.msra.mxu0 %v1150
        %1830 = vmatprep.subr.mxu0 %v1159
        %1831 = vmatpush1.msra.mxu0 %v1158
        %1832 = vmatprep.subr.mxu0 %v1167
        %1833 = vmatpush1.msra.mxu0 %v1166
        %1834 = vmatprep.subr.mxu0 %v1175
        %1835 = vmatpush1.msra.mxu0 %v1174
        %1836 = vmatprep.subr.mxu0 0.0
        %1837 = vmatpush1.msra.mxu0 0.0
        %1838 = vmatprep.subr.mxu0 0.0
        %1839 = vmatpush1.msra.mxu0 0.0
        %1840 = vmatprep.subr.mxu0 0.0
        %1841 = vmatpush1.msra.mxu0 0.0
        %1842 = vmatprep.subr.mxu0 0.0
        %1843 = vmatpush1.msra.mxu0 0.0
        %1844 = vmatprep.subr.mxu0 0.0
        %1845 = vmatpush1.msra.mxu0 0.0
        %1846 = vmatprep.subr.mxu0 0.0
        %1847 = vmatpush1.msra.mxu0 0.0
        %1848 = vmatprep.subr.mxu0 0.0
        %1849 = vmatpush1.msra.mxu0 0.0
        %1850 = vmatprep.subr.mxu0 0.0
        %1851 = vmatpush1.msra.mxu0 0.0
        %1852 = vmatprep.subr.mxu0 0.0
        %1853 = vmatpush1.msra.mxu0 0.0
        %1854 = vmatprep.subr.mxu0 0.0
        %1855 = vmatpush1.msra.mxu0 0.0
        %1856 = vmatprep.subr.mxu0 0.0
        %1857 = vmatpush1.msra.mxu0 0.0
        %1858 = vmatprep.subr.mxu0 0.0
        %1859 = vmatpush1.msra.mxu0 0.0
        %1860 = vmatprep.subr.mxu0 0.0
        %1861 = vmatpush1.msra.mxu0 0.0
        %1862 = vmatprep.subr.mxu0 0.0
        %1863 = vmatpush1.msra.mxu0 0.0
        %1864 = vmatprep.subr.mxu0 0.0
        %1865 = vmatpush1.msra.mxu0 0.0
        %1866 = vmatprep.subr.mxu0 0.0
        %1867 = vmatpush1.msra.mxu0 0.0
        %1868 = vmatprep.mubr.f32.mxu0 0.0
        %1869 = vmatmul.mubr.f32.gmra.mrb[0].mxu0 %v1046
        %v1870 = vpop.f32.mrb[0].mxu0
        %v1871 = vadd.f32 %v1587, %v1870
        %v1872 = vpop.f32.mrb[0].mxu0
        %v1873 = vadd.f32 %v1589, %v1872
        %1874 = vdwg.mxu0
        %v1875 = vld [vmem:[#allocation9 + $0x800] sm:$0xff]
        %v1876 = vld [vmem:[#allocation9 + $0x808] sm:$0xff]
        %v1877 = vld [vmem:[#allocation9 + $0x810] sm:$0xff]
        %v1878 = vld [vmem:[#allocation9 + $0x818] sm:$0xff]
        %v1879 = vld [vmem:[#allocation9 + $0x820] sm:$0xff]
        %v1880 = vld [vmem:[#allocation9 + $0x828] sm:$0xff]
        %v1881 = vld [vmem:[#allocation9 + $0x830] sm:$0xff]
        %v1882 = vld [vmem:[#allocation9 + $0x838] sm:$0xff]
        %v1883 = vld [vmem:[#allocation9 + $0x840] sm:$0xff]
        %v1884 = vld [vmem:[#allocation9 + $0x848] sm:$0xff]
        %v1885 = vld [vmem:[#allocation9 + $0x850] sm:$0xff]
        %v1886 = vld [vmem:[#allocation9 + $0x858] sm:$0xff]
        %v1887 = vld [vmem:[#allocation9 + $0x860] sm:$0xff]
        %v1888 = vld [vmem:[#allocation9 + $0x868] sm:$0xff]
        %v1889 = vld [vmem:[#allocation9 + $0x870] sm:$0xff]
        %v1890 = vld [vmem:[#allocation9 + $0x878] sm:$0xff]
        %v1891 = vld [vmem:[#allocation9 + $0x880] sm:$0xff]
        %v1892 = vld [vmem:[#allocation9 + $0x888] sm:$0xff]
        %v1893 = vld [vmem:[#allocation9 + $0x890] sm:$0xff]
        %v1894 = vld [vmem:[#allocation9 + $0x898] sm:$0xff]
        %v1895 = vld [vmem:[#allocation9 + $0x8a0] sm:$0xff]
        %v1896 = vld [vmem:[#allocation9 + $0x8a8] sm:$0xff]
        %v1897 = vld [vmem:[#allocation9 + $0x8b0] sm:$0xff]
        %v1898 = vld [vmem:[#allocation9 + $0x8b8] sm:$0xff]
        %v1899 = vld [vmem:[#allocation9 + $0x8c0] sm:$0xff]
        %v1900 = vld [vmem:[#allocation9 + $0x8c8] sm:$0xff]
        %v1901 = vld [vmem:[#allocation9 + $0x8d0] sm:$0xff]
        %v1902 = vld [vmem:[#allocation9 + $0x8d8] sm:$0xff]
        %v1903 = vld [vmem:[#allocation9 + $0x8e0] sm:$0xff]
        %v1904 = vld [vmem:[#allocation9 + $0x8e8] sm:$0xff]
        %v1905 = vld [vmem:[#allocation9 + $0x8f0] sm:$0xff]
        %v1906 = vld [vmem:[#allocation9 + $0x8f8] sm:$0xff]
        %v1907 = vld [vmem:[#allocation9 + $0x900] sm:$0xff]
        %v1908 = vld [vmem:[#allocation9 + $0x908] sm:$0xff]
        %v1909 = vld [vmem:[#allocation9 + $0x910] sm:$0xff]
        %v1910 = vld [vmem:[#allocation9 + $0x918] sm:$0xff]
        %v1911 = vld [vmem:[#allocation9 + $0x920] sm:$0xff]
        %v1912 = vld [vmem:[#allocation9 + $0x928] sm:$0xff]
        %v1913 = vld [vmem:[#allocation9 + $0x930] sm:$0xff]
        %v1914 = vld [vmem:[#allocation9 + $0x938] sm:$0xff]
        %v1915 = vld [vmem:[#allocation9 + $0x940] sm:$0xff]
        %v1916 = vld [vmem:[#allocation9 + $0x948] sm:$0xff]
        %v1917 = vld [vmem:[#allocation9 + $0x950] sm:$0xff]
        %v1918 = vld [vmem:[#allocation9 + $0x958] sm:$0xff]
        %v1919 = vld [vmem:[#allocation9 + $0x960] sm:$0xff]
        %v1920 = vld [vmem:[#allocation9 + $0x968] sm:$0xff]
        %v1921 = vld [vmem:[#allocation9 + $0x970] sm:$0xff]
        %v1922 = vld [vmem:[#allocation9 + $0x978] sm:$0xff]
        %v1923 = vld [vmem:[#allocation9 + $0x980] sm:$0xff]
        %v1924 = vld [vmem:[#allocation9 + $0x988] sm:$0xff]
        %v1925 = vld [vmem:[#allocation9 + $0x990] sm:$0xff]
        %v1926 = vld [vmem:[#allocation9 + $0x998] sm:$0xff]
        %v1927 = vld [vmem:[#allocation9 + $0x9a0] sm:$0xff]
        %v1928 = vld [vmem:[#allocation9 + $0x9a8] sm:$0xff]
        %v1929 = vld [vmem:[#allocation9 + $0x9b0] sm:$0xff]
        %v1930 = vld [vmem:[#allocation9 + $0x9b8] sm:$0xff]
        %v1931 = vld [vmem:[#allocation9 + $0x9c0] sm:$0xff]
        %v1932 = vld [vmem:[#allocation9 + $0x9c8] sm:$0xff]
        %v1933 = vld [vmem:[#allocation9 + $0x9d0] sm:$0xff]
        %v1934 = vld [vmem:[#allocation9 + $0x9d8] sm:$0xff]
        %v1935 = vld [vmem:[#allocation9 + $0x9e0] sm:$0xff]
        %v1936 = vld [vmem:[#allocation9 + $0x9e8] sm:$0xff]
        %v1937 = vld [vmem:[#allocation9 + $0x9f0] sm:$0xff]
        %v1938 = vld [vmem:[#allocation9 + $0x9f8] sm:$0xff]
        %v1939 = vld [vmem:[#allocation9 + $0xa00] sm:$0xff]
        %v1940 = vld [vmem:[#allocation9 + $0xa08] sm:$0xff]
        %v1941 = vld [vmem:[#allocation9 + $0xa10] sm:$0xff]
        %v1942 = vld [vmem:[#allocation9 + $0xa18] sm:$0xff]
        %v1943 = vld [vmem:[#allocation9 + $0xa20] sm:$0xff]
        %v1944 = vld [vmem:[#allocation9 + $0xa28] sm:$0xff]
        %v1945 = vld [vmem:[#allocation9 + $0xa30] sm:$0xff]
        %v1946 = vld [vmem:[#allocation9 + $0xa38] sm:$0xff]
        %v1947 = vld [vmem:[#allocation9 + $0xa40] sm:$0xff]
        %v1948 = vld [vmem:[#allocation9 + $0xa48] sm:$0xff]
        %v1949 = vld [vmem:[#allocation9 + $0xa50] sm:$0xff]
        %v1950 = vld [vmem:[#allocation9 + $0xa58] sm:$0xff]
        %v1951 = vld [vmem:[#allocation9 + $0xa60] sm:$0xff]
        %v1952 = vld [vmem:[#allocation9 + $0xa68] sm:$0xff]
        %v1953 = vld [vmem:[#allocation9 + $0xa70] sm:$0xff]
        %v1954 = vld [vmem:[#allocation9 + $0xa78] sm:$0xff]
        %v1955 = vld [vmem:[#allocation9 + $0xa80] sm:$0xff]
        %v1956 = vld [vmem:[#allocation9 + $0xa88] sm:$0xff]
        %v1957 = vld [vmem:[#allocation9 + $0xa90] sm:$0xff]
        %v1958 = vld [vmem:[#allocation9 + $0xa98] sm:$0xff]
        %v1959 = vld [vmem:[#allocation9 + $0xaa0] sm:$0xff]
        %v1960 = vld [vmem:[#allocation9 + $0xaa8] sm:$0xff]
        %v1961 = vld [vmem:[#allocation9 + $0xab0] sm:$0xff]
        %v1962 = vld [vmem:[#allocation9 + $0xab8] sm:$0xff]
        %v1963 = vld [vmem:[#allocation9 + $0xac0] sm:$0xff]
        %v1964 = vld [vmem:[#allocation9 + $0xac8] sm:$0xff]
        %v1965 = vld [vmem:[#allocation9 + $0xad0] sm:$0xff]
        %v1966 = vld [vmem:[#allocation9 + $0xad8] sm:$0xff]
        %v1967 = vld [vmem:[#allocation9 + $0xae0] sm:$0xff]
        %v1968 = vld [vmem:[#allocation9 + $0xae8] sm:$0xff]
        %v1969 = vld [vmem:[#allocation9 + $0xaf0] sm:$0xff]
        %v1970 = vld [vmem:[#allocation9 + $0xaf8] sm:$0xff]
        %v1971 = vld [vmem:[#allocation9 + $0xb00] sm:$0xff]
        %v1972 = vld [vmem:[#allocation9 + $0xb08] sm:$0xff]
        %v1973 = vld [vmem:[#allocation9 + $0xb10] sm:$0xff]
        %v1974 = vld [vmem:[#allocation9 + $0xb18] sm:$0xff]
        %v1975 = vld [vmem:[#allocation9 + $0xb20] sm:$0xff]
        %v1976 = vld [vmem:[#allocation9 + $0xb28] sm:$0xff]
        %v1977 = vld [vmem:[#allocation9 + $0xb30] sm:$0xff]
        %v1978 = vld [vmem:[#allocation9 + $0xb38] sm:$0xff]
        %v1979 = vld [vmem:[#allocation9 + $0xb40] sm:$0xff]
        %v1980 = vld [vmem:[#allocation9 + $0xb48] sm:$0xff]
        %v1981 = vld [vmem:[#allocation9 + $0xb50] sm:$0xff]
        %v1982 = vld [vmem:[#allocation9 + $0xb58] sm:$0xff]
        %v1983 = vld [vmem:[#allocation9 + $0xb60] sm:$0xff]
        %v1984 = vld [vmem:[#allocation9 + $0xb68] sm:$0xff]
        %v1985 = vld [vmem:[#allocation9 + $0xb70] sm:$0xff]
        %v1986 = vld [vmem:[#allocation9 + $0xb78] sm:$0xff]
        %v1987 = vld [vmem:[#allocation9 + $0xb80] sm:$0xff]
        %v1988 = vld [vmem:[#allocation9 + $0xb88] sm:$0xff]
        %v1989 = vld [vmem:[#allocation9 + $0xb90] sm:$0xff]
        %v1990 = vld [vmem:[#allocation9 + $0xb98] sm:$0xff]
        %v1991 = vld [vmem:[#allocation9 + $0xba0] sm:$0xff]
        %v1992 = vld [vmem:[#allocation9 + $0xba8] sm:$0xff]
        %v1993 = vld [vmem:[#allocation9 + $0xbb0] sm:$0xff]
        %v1994 = vld [vmem:[#allocation9 + $0xbb8] sm:$0xff]
        %v1995 = vld [vmem:[#allocation9 + $0xbc0] sm:$0xff]
        %v1996 = vld [vmem:[#allocation9 + $0xbc8] sm:$0xff]
        %v1997 = vld [vmem:[#allocation9 + $0xbd0] sm:$0xff]
        %v1998 = vld [vmem:[#allocation9 + $0xbd8] sm:$0xff]
        %v1999 = vld [vmem:[#allocation9 + $0xbe0] sm:$0xff]
        %v2000 = vld [vmem:[#allocation9 + $0xbe8] sm:$0xff]
        %v2001 = vld [vmem:[#allocation9 + $0xbf0] sm:$0xff]
        %v2002 = vld [vmem:[#allocation9 + $0xbf8] sm:$0xff]
        %v2003 = vrot.slane %v1046, 4
        %2005 = vmatprep.subr.mxu0 %v1876
        %2006 = vmatpush1.msra.mxu0 %v1875
        %2007 = vmatprep.subr.mxu0 %v1884
        %2008 = vmatpush1.msra.mxu0 %v1883
        %2009 = vmatprep.subr.mxu0 %v1892
        %2010 = vmatpush1.msra.mxu0 %v1891
        %2011 = vmatprep.subr.mxu0 %v1900
        %2012 = vmatpush1.msra.mxu0 %v1899
        %2013 = vmatprep.subr.mxu0 %v1908
        %2014 = vmatpush1.msra.mxu0 %v1907
        %2015 = vmatprep.subr.mxu0 %v1916
        %2016 = vmatpush1.msra.mxu0 %v1915
        %2017 = vmatprep.subr.mxu0 %v1924
        %2018 = vmatpush1.msra.mxu0 %v1923
        %2019 = vmatprep.subr.mxu0 %v1932
        %2020 = vmatpush1.msra.mxu0 %v1931
        %2021 = vmatprep.subr.mxu0 %v1940
        %2022 = vmatpush1.msra.mxu0 %v1939
        %2023 = vmatprep.subr.mxu0 %v1948
        %2024 = vmatpush1.msra.mxu0 %v1947
        %2025 = vmatprep.subr.mxu0 %v1956
        %2026 = vmatpush1.msra.mxu0 %v1955
        %2027 = vmatprep.subr.mxu0 %v1964
        %2028 = vmatpush1.msra.mxu0 %v1963
        %2029 = vmatprep.subr.mxu0 %v1972
        %2030 = vmatpush1.msra.mxu0 %v1971
        %2031 = vmatprep.subr.mxu0 %v1980
        %2032 = vmatpush1.msra.mxu0 %v1979
        %2033 = vmatprep.subr.mxu0 %v1988
        %2034 = vmatpush1.msra.mxu0 %v1987
        %2035 = vmatprep.subr.mxu0 %v1996
        %2036 = vmatpush1.msra.mxu0 %v1995
        %2037 = vmatprep.subr.mxu0 0.0
        %2038 = vmatpush1.msra.mxu0 0.0
        %2039 = vmatprep.subr.mxu0 0.0
        %2040 = vmatpush1.msra.mxu0 0.0
        %2041 = vmatprep.subr.mxu0 0.0
        %2042 = vmatpush1.msra.mxu0 0.0
        %2043 = vmatprep.subr.mxu0 0.0
        %2044 = vmatpush1.msra.mxu0 0.0
        %2045 = vmatprep.subr.mxu0 0.0
        %2046 = vmatpush1.msra.mxu0 0.0
        %2047 = vmatprep.subr.mxu0 0.0
        %2048 = vmatpush1.msra.mxu0 0.0
        %2049 = vmatprep.subr.mxu0 0.0
        %2050 = vmatpush1.msra.mxu0 0.0
        %2051 = vmatprep.subr.mxu0 0.0
        %2052 = vmatpush1.msra.mxu0 0.0
        %2053 = vmatprep.subr.mxu0 0.0
        %2054 = vmatpush1.msra.mxu0 0.0
        %2055 = vmatprep.subr.mxu0 0.0
        %2056 = vmatpush1.msra.mxu0 0.0
        %2057 = vmatprep.subr.mxu0 0.0
        %2058 = vmatpush1.msra.mxu0 0.0
        %2059 = vmatprep.subr.mxu0 0.0
        %2060 = vmatpush1.msra.mxu0 0.0
        %2061 = vmatprep.subr.mxu0 0.0
        %2062 = vmatpush1.msra.mxu0 0.0
        %2063 = vmatprep.subr.mxu0 0.0
        %2064 = vmatpush1.msra.mxu0 0.0
        %2065 = vmatprep.subr.mxu0 0.0
        %2066 = vmatpush1.msra.mxu0 0.0
        %2067 = vmatprep.subr.mxu0 0.0
        %2068 = vmatpush1.msra.mxu0 0.0
        %2069 = vmatprep.mubr.f32.mxu0 0.0
        %2070 = vmatmul.mubr.f32.gmra.mrb[0].mxu0 %v2003
        %v2071 = vpop.f32.mrb[0].mxu0
        %v2072 = vadd.f32 0.0, %v2071
        %v2073 = vpop.f32.mrb[0].mxu0
        %v2074 = vadd.f32 0.0, %v2073
        %2075 = vdwg.mxu0
        %2076 = vmatprep.subr.mxu0 %v1878
        %2077 = vmatpush1.msra.mxu0 %v1877
        %2078 = vmatprep.subr.mxu0 %v1886
        %2079 = vmatpush1.msra.mxu0 %v1885
        %2080 = vmatprep.subr.mxu0 %v1894
        %2081 = vmatpush1.msra.mxu0 %v1893
        %2082 = vmatprep.subr.mxu0 %v1902
        %2083 = vmatpush1.msra.mxu0 %v1901
        %2084 = vmatprep.subr.mxu0 %v1910
        %2085 = vmatpush1.msra.mxu0 %v1909
        %2086 = vmatprep.subr.mxu0 %v1918
        %2087 = vmatpush1.msra.mxu0 %v1917
        %2088 = vmatprep.subr.mxu0 %v1926
        %2089 = vmatpush1.msra.mxu0 %v1925
        %2090 = vmatprep.subr.mxu0 %v1934
        %2091 = vmatpush1.msra.mxu0 %v1933
        %2092 = vmatprep.subr.mxu0 %v1942
        %2093 = vmatpush1.msra.mxu0 %v1941
        %2094 = vmatprep.subr.mxu0 %v1950
        %2095 = vmatpush1.msra.mxu0 %v1949
        %2096 = vmatprep.subr.mxu0 %v1958
        %2097 = vmatpush1.msra.mxu0 %v1957
        %2098 = vmatprep.subr.mxu0 %v1966
        %2099 = vmatpush1.msra.mxu0 %v1965
        %2100 = vmatprep.subr.mxu0 %v1974
        %2101 = vmatpush1.msra.mxu0 %v1973
        %2102 = vmatprep.subr.mxu0 %v1982
        %2103 = vmatpush1.msra.mxu0 %v1981
        %2104 = vmatprep.subr.mxu0 %v1990
        %2105 = vmatpush1.msra.mxu0 %v1989
        %2106 = vmatprep.subr.mxu0 %v1998
        %2107 = vmatpush1.msra.mxu0 %v1997
        %2108 = vmatprep.subr.mxu0 0.0
        %2109 = vmatpush1.msra.mxu0 0.0
        %2110 = vmatprep.subr.mxu0 0.0
        %2111 = vmatpush1.msra.mxu0 0.0
        %2112 = vmatprep.subr.mxu0 0.0
        %2113 = vmatpush1.msra.mxu0 0.0
        %2114 = vmatprep.subr.mxu0 0.0
        %2115 = vmatpush1.msra.mxu0 0.0
        %2116 = vmatprep.subr.mxu0 0.0
        %2117 = vmatpush1.msra.mxu0 0.0
        %2118 = vmatprep.subr.mxu0 0.0
        %2119 = vmatpush1.msra.mxu0 0.0
        %2120 = vmatprep.subr.mxu0 0.0
        %2121 = vmatpush1.msra.mxu0 0.0
        %2122 = vmatprep.subr.mxu0 0.0
        %2123 = vmatpush1.msra.mxu0 0.0
        %2124 = vmatprep.subr.mxu0 0.0
        %2125 = vmatpush1.msra.mxu0 0.0
        %2126 = vmatprep.subr.mxu0 0.0
        %2127 = vmatpush1.msra.mxu0 0.0
        %2128 = vmatprep.subr.mxu0 0.0
        %2129 = vmatpush1.msra.mxu0 0.0
        %2130 = vmatprep.subr.mxu0 0.0
        %2131 = vmatpush1.msra.mxu0 0.0
        %2132 = vmatprep.subr.mxu0 0.0
        %2133 = vmatpush1.msra.mxu0 0.0
        %2134 = vmatprep.subr.mxu0 0.0
        %2135 = vmatpush1.msra.mxu0 0.0
        %2136 = vmatprep.subr.mxu0 0.0
        %2137 = vmatpush1.msra.mxu0 0.0
        %2138 = vmatprep.subr.mxu0 0.0
        %2139 = vmatpush1.msra.mxu0 0.0
        %2140 = vmatprep.mubr.f32.mxu0 0.0
        %2141 = vmatmul.mubr.f32.gmra.mrb[0].mxu0 %v2003
        %v2142 = vpop.f32.mrb[0].mxu0
        %v2143 = vadd.f32 0.0, %v2142
        %v2144 = vpop.f32.mrb[0].mxu0
        %v2145 = vadd.f32 0.0, %v2144
        %2146 = vdwg.mxu0
        %2147 = vmatprep.subr.mxu0 %v1880
        %2148 = vmatpush1.msra.mxu0 %v1879
        %2149 = vmatprep.subr.mxu0 %v1888
        %2150 = vmatpush1.msra.mxu0 %v1887
        %2151 = vmatprep.subr.mxu0 %v1896
        %2152 = vmatpush1.msra.mxu0 %v1895
        %2153 = vmatprep.subr.mxu0 %v1904
        %2154 = vmatpush1.msra.mxu0 %v1903
        %2155 = vmatprep.subr.mxu0 %v1912
        %2156 = vmatpush1.msra.mxu0 %v1911
        %2157 = vmatprep.subr.mxu0 %v1920
        %2158 = vmatpush1.msra.mxu0 %v1919
        %2159 = vmatprep.subr.mxu0 %v1928
        %2160 = vmatpush1.msra.mxu0 %v1927
        %2161 = vmatprep.subr.mxu0 %v1936
        %2162 = vmatpush1.msra.mxu0 %v1935
        %2163 = vmatprep.subr.mxu0 %v1944
        %2164 = vmatpush1.msra.mxu0 %v1943
        %2165 = vmatprep.subr.mxu0 %v1952
        %2166 = vmatpush1.msra.mxu0 %v1951
        %2167 = vmatprep.subr.mxu0 %v1960
        %2168 = vmatpush1.msra.mxu0 %v1959
        %2169 = vmatprep.subr.mxu0 %v1968
        %2170 = vmatpush1.msra.mxu0 %v1967
        %2171 = vmatprep.subr.mxu0 %v1976
        %2172 = vmatpush1.msra.mxu0 %v1975
        %2173 = vmatprep.subr.mxu0 %v1984
        %2174 = vmatpush1.msra.mxu0 %v1983
        %2175 = vmatprep.subr.mxu0 %v1992
        %2176 = vmatpush1.msra.mxu0 %v1991
        %2177 = vmatprep.subr.mxu0 %v2000
        %2178 = vmatpush1.msra.mxu0 %v1999
        %2179 = vmatprep.subr.mxu0 0.0
        %2180 = vmatpush1.msra.mxu0 0.0
        %2181 = vmatprep.subr.mxu0 0.0
        %2182 = vmatpush1.msra.mxu0 0.0
        %2183 = vmatprep.subr.mxu0 0.0
        %2184 = vmatpush1.msra.mxu0 0.0
        %2185 = vmatprep.subr.mxu0 0.0
        %2186 = vmatpush1.msra.mxu0 0.0
        %2187 = vmatprep.subr.mxu0 0.0
        %2188 = vmatpush1.msra.mxu0 0.0
        %2189 = vmatprep.subr.mxu0 0.0
        %2190 = vmatpush1.msra.mxu0 0.0
        %2191 = vmatprep.subr.mxu0 0.0
        %2192 = vmatpush1.msra.mxu0 0.0
        %2193 = vmatprep.subr.mxu0 0.0
        %2194 = vmatpush1.msra.mxu0 0.0
        %2195 = vmatprep.subr.mxu0 0.0
        %2196 = vmatpush1.msra.mxu0 0.0
        %2197 = vmatprep.subr.mxu0 0.0
        %2198 = vmatpush1.msra.mxu0 0.0
        %2199 = vmatprep.subr.mxu0 0.0
        %2200 = vmatpush1.msra.mxu0 0.0
        %2201 = vmatprep.subr.mxu0 0.0
        %2202 = vmatpush1.msra.mxu0 0.0
        %2203 = vmatprep.subr.mxu0 0.0
        %2204 = vmatpush1.msra.mxu0 0.0
        %2205 = vmatprep.subr.mxu0 0.0
        %2206 = vmatpush1.msra.mxu0 0.0
        %2207 = vmatprep.subr.mxu0 0.0
        %2208 = vmatpush1.msra.mxu0 0.0
        %2209 = vmatprep.subr.mxu0 0.0
        %2210 = vmatpush1.msra.mxu0 0.0
        %2211 = vmatprep.mubr.f32.mxu0 0.0
        %2212 = vmatmul.mubr.f32.gmra.mrb[0].mxu0 %v2003
        %v2213 = vpop.f32.mrb[0].mxu0
        %v2214 = vadd.f32 0.0, %v2213
        %v2215 = vpop.f32.mrb[0].mxu0
        %v2216 = vadd.f32 0.0, %v2215
        %2217 = vdwg.mxu0
        %2218 = vmatprep.subr.mxu0 %v1882
        %2219 = vmatpush1.msra.mxu0 %v1881
        %2220 = vmatprep.subr.mxu0 %v1890
        %2221 = vmatpush1.msra.mxu0 %v1889
        %2222 = vmatprep.subr.mxu0 %v1898
        %2223 = vmatpush1.msra.mxu0 %v1897
        %2224 = vmatprep.subr.mxu0 %v1906
        %2225 = vmatpush1.msra.mxu0 %v1905
        %2226 = vmatprep.subr.mxu0 %v1914
        %2227 = vmatpush1.msra.mxu0 %v1913
        %2228 = vmatprep.subr.mxu0 %v1922
        %2229 = vmatpush1.msra.mxu0 %v1921
        %2230 = vmatprep.subr.mxu0 %v1930
        %2231 = vmatpush1.msra.mxu0 %v1929
        %2232 = vmatprep.subr.mxu0 %v1938
        %2233 = vmatpush1.msra.mxu0 %v1937
        %2234 = vmatprep.subr.mxu0 %v1946
        %2235 = vmatpush1.msra.mxu0 %v1945
        %2236 = vmatprep.subr.mxu0 %v1954
        %2237 = vmatpush1.msra.mxu0 %v1953
        %2238 = vmatprep.subr.mxu0 %v1962
        %2239 = vmatpush1.msra.mxu0 %v1961
        %2240 = vmatprep.subr.mxu0 %v1970
        %2241 = vmatpush1.msra.mxu0 %v1969
        %2242 = vmatprep.subr.mxu0 %v1978
        %2243 = vmatpush1.msra.mxu0 %v1977
        %2244 = vmatprep.subr.mxu0 %v1986
        %2245 = vmatpush1.msra.mxu0 %v1985
        %2246 = vmatprep.subr.mxu0 %v1994
        %2247 = vmatpush1.msra.mxu0 %v1993
        %2248 = vmatprep.subr.mxu0 %v2002
        %2249 = vmatpush1.msra.mxu0 %v2001
        %2250 = vmatprep.subr.mxu0 0.0
        %2251 = vmatpush1.msra.mxu0 0.0
        %2252 = vmatprep.subr.mxu0 0.0
        %2253 = vmatpush1.msra.mxu0 0.0
        %2254 = vmatprep.subr.mxu0 0.0
        %2255 = vmatpush1.msra.mxu0 0.0
        %2256 = vmatprep.subr.mxu0 0.0
        %2257 = vmatpush1.msra.mxu0 0.0
        %2258 = vmatprep.subr.mxu0 0.0
        %2259 = vmatpush1.msra.mxu0 0.0
        %2260 = vmatprep.subr.mxu0 0.0
        %2261 = vmatpush1.msra.mxu0 0.0
        %2262 = vmatprep.subr.mxu0 0.0
        %2263 = vmatpush1.msra.mxu0 0.0
        %2264 = vmatprep.subr.mxu0 0.0
        %2265 = vmatpush1.msra.mxu0 0.0
        %2266 = vmatprep.subr.mxu0 0.0
        %2267 = vmatpush1.msra.mxu0 0.0
        %2268 = vmatprep.subr.mxu0 0.0
        %2269 = vmatpush1.msra.mxu0 0.0
        %2270 = vmatprep.subr.mxu0 0.0
        %2271 = vmatpush1.msra.mxu0 0.0
        %2272 = vmatprep.subr.mxu0 0.0
        %2273 = vmatpush1.msra.mxu0 0.0
        %2274 = vmatprep.subr.mxu0 0.0
        %2275 = vmatpush1.msra.mxu0 0.0
        %2276 = vmatprep.subr.mxu0 0.0
        %2277 = vmatpush1.msra.mxu0 0.0
        %2278 = vmatprep.subr.mxu0 0.0
        %2279 = vmatpush1.msra.mxu0 0.0
        %2280 = vmatprep.subr.mxu0 0.0
        %2281 = vmatpush1.msra.mxu0 0.0
        %2282 = vmatprep.mubr.f32.mxu0 0.0
        %2283 = vmatmul.mubr.f32.gmra.mrb[0].mxu0 %v2003
        %v2284 = vpop.f32.mrb[0].mxu0
        %v2285 = vadd.f32 0.0, %v2284
        %v2286 = vpop.f32.mrb[0].mxu0
        %v2287 = vadd.f32 0.0, %v2286
        %2288 = vdwg.mxu0
        %v2289 = vadd.f32 %v1658, %v2072
        %v2290 = vadd.f32 %v1660, %v2074
        %v2291 = vadd.f32 %v1729, %v2143
        %v2292 = vadd.f32 %v1731, %v2145
        %v2293 = vadd.f32 %v1800, %v2214
        %v2294 = vadd.f32 %v1802, %v2216
        %v2295 = vadd.f32 %v1871, %v2285
        %v2296 = vadd.f32 %v1873, %v2287
        %v2297 = vld [vmem:[#allocation9 + $0xc00] sm:$0xff]
        %v2298 = vld [vmem:[#allocation9 + $0xc08] sm:$0xff]
        %v2299 = vld [vmem:[#allocation9 + $0xc10] sm:$0xff]
        %v2300 = vld [vmem:[#allocation9 + $0xc18] sm:$0xff]
        %v2301 = vld [vmem:[#allocation9 + $0xc20] sm:$0xff]
        %v2302 = vld [vmem:[#allocation9 + $0xc28] sm:$0xff]
        %v2303 = vld [vmem:[#allocation9 + $0xc30] sm:$0xff]
        %v2304 = vld [vmem:[#allocation9 + $0xc38] sm:$0xff]
        %v2305 = vld [vmem:[#allocation9 + $0xc40] sm:$0xff]
        %v2306 = vld [vmem:[#allocation9 + $0xc48] sm:$0xff]
        %v2307 = vld [vmem:[#allocation9 + $0xc50] sm:$0xff]
        %v2308 = vld [vmem:[#allocation9 + $0xc58] sm:$0xff]
        %v2309 = vld [vmem:[#allocation9 + $0xc60] sm:$0xff]
        %v2310 = vld [vmem:[#allocation9 + $0xc68] sm:$0xff]
        %v2311 = vld [vmem:[#allocation9 + $0xc70] sm:$0xff]
        %v2312 = vld [vmem:[#allocation9 + $0xc78] sm:$0xff]
        %v2313 = vld [vmem:[#allocation9 + $0xc80] sm:$0xff]
        %v2314 = vld [vmem:[#allocation9 + $0xc88] sm:$0xff]
        %v2315 = vld [vmem:[#allocation9 + $0xc90] sm:$0xff]
        %v2316 = vld [vmem:[#allocation9 + $0xc98] sm:$0xff]
        %v2317 = vld [vmem:[#allocation9 + $0xca0] sm:$0xff]
        %v2318 = vld [vmem:[#allocation9 + $0xca8] sm:$0xff]
        %v2319 = vld [vmem:[#allocation9 + $0xcb0] sm:$0xff]
        %v2320 = vld [vmem:[#allocation9 + $0xcb8] sm:$0xff]
        %v2321 = vld [vmem:[#allocation9 + $0xcc0] sm:$0xff]
        %v2322 = vld [vmem:[#allocation9 + $0xcc8] sm:$0xff]
        %v2323 = vld [vmem:[#allocation9 + $0xcd0] sm:$0xff]
        %v2324 = vld [vmem:[#allocation9 + $0xcd8] sm:$0xff]
        %v2325 = vld [vmem:[#allocation9 + $0xce0] sm:$0xff]
        %v2326 = vld [vmem:[#allocation9 + $0xce8] sm:$0xff]
        %v2327 = vld [vmem:[#allocation9 + $0xcf0] sm:$0xff]
        %v2328 = vld [vmem:[#allocation9 + $0xcf8] sm:$0xff]
        %v2329 = vld [vmem:[#allocation9 + $0xd00] sm:$0xff]
        %v2330 = vld [vmem:[#allocation9 + $0xd08] sm:$0xff]
        %v2331 = vld [vmem:[#allocation9 + $0xd10] sm:$0xff]
        %v2332 = vld [vmem:[#allocation9 + $0xd18] sm:$0xff]
        %v2333 = vld [vmem:[#allocation9 + $0xd20] sm:$0xff]
        %v2334 = vld [vmem:[#allocation9 + $0xd28] sm:$0xff]
        %v2335 = vld [vmem:[#allocation9 + $0xd30] sm:$0xff]
        %v2336 = vld [vmem:[#allocation9 + $0xd38] sm:$0xff]
        %v2337 = vld [vmem:[#allocation9 + $0xd40] sm:$0xff]
        %v2338 = vld [vmem:[#allocation9 + $0xd48] sm:$0xff]
        %v2339 = vld [vmem:[#allocation9 + $0xd50] sm:$0xff]
        %v2340 = vld [vmem:[#allocation9 + $0xd58] sm:$0xff]
        %v2341 = vld [vmem:[#allocation9 + $0xd60] sm:$0xff]
        %v2342 = vld [vmem:[#allocation9 + $0xd68] sm:$0xff]
        %v2343 = vld [vmem:[#allocation9 + $0xd70] sm:$0xff]
        %v2344 = vld [vmem:[#allocation9 + $0xd78] sm:$0xff]
        %v2345 = vld [vmem:[#allocation9 + $0xd80] sm:$0xff]
        %v2346 = vld [vmem:[#allocation9 + $0xd88] sm:$0xff]
        %v2347 = vld [vmem:[#allocation9 + $0xd90] sm:$0xff]
        %v2348 = vld [vmem:[#allocation9 + $0xd98] sm:$0xff]
        %v2349 = vld [vmem:[#allocation9 + $0xda0] sm:$0xff]
        %v2350 = vld [vmem:[#allocation9 + $0xda8] sm:$0xff]
        %v2351 = vld [vmem:[#allocation9 + $0xdb0] sm:$0xff]
        %v2352 = vld [vmem:[#allocation9 + $0xdb8] sm:$0xff]
        %v2353 = vld [vmem:[#allocation9 + $0xdc0] sm:$0xff]
        %v2354 = vld [vmem:[#allocation9 + $0xdc8] sm:$0xff]
        %v2355 = vld [vmem:[#allocation9 + $0xdd0] sm:$0xff]
        %v2356 = vld [vmem:[#allocation9 + $0xdd8] sm:$0xff]
        %v2357 = vld [vmem:[#allocation9 + $0xde0] sm:$0xff]
        %v2358 = vld [vmem:[#allocation9 + $0xde8] sm:$0xff]
        %v2359 = vld [vmem:[#allocation9 + $0xdf0] sm:$0xff]
        %v2360 = vld [vmem:[#allocation9 + $0xdf8] sm:$0xff]
        %v2361 = vld [vmem:[#allocation9 + $0xe00] sm:$0xff]
        %v2362 = vld [vmem:[#allocation9 + $0xe08] sm:$0xff]
        %v2363 = vld [vmem:[#allocation9 + $0xe10] sm:$0xff]
        %v2364 = vld [vmem:[#allocation9 + $0xe18] sm:$0xff]
        %v2365 = vld [vmem:[#allocation9 + $0xe20] sm:$0xff]
        %v2366 = vld [vmem:[#allocation9 + $0xe28] sm:$0xff]
        %v2367 = vld [vmem:[#allocation9 + $0xe30] sm:$0xff]
        %v2368 = vld [vmem:[#allocation9 + $0xe38] sm:$0xff]
        %v2369 = vld [vmem:[#allocation9 + $0xe40] sm:$0xff]
        %v2370 = vld [vmem:[#allocation9 + $0xe48] sm:$0xff]
        %v2371 = vld [vmem:[#allocation9 + $0xe50] sm:$0xff]
        %v2372 = vld [vmem:[#allocation9 + $0xe58] sm:$0xff]
        %v2373 = vld [vmem:[#allocation9 + $0xe60] sm:$0xff]
        %v2374 = vld [vmem:[#allocation9 + $0xe68] sm:$0xff]
        %v2375 = vld [vmem:[#allocation9 + $0xe70] sm:$0xff]
        %v2376 = vld [vmem:[#allocation9 + $0xe78] sm:$0xff]
        %v2377 = vld [vmem:[#allocation9 + $0xe80] sm:$0xff]
        %v2378 = vld [vmem:[#allocation9 + $0xe88] sm:$0xff]
        %v2379 = vld [vmem:[#allocation9 + $0xe90] sm:$0xff]
        %v2380 = vld [vmem:[#allocation9 + $0xe98] sm:$0xff]
        %v2381 = vld [vmem:[#allocation9 + $0xea0] sm:$0xff]
        %v2382 = vld [vmem:[#allocation9 + $0xea8] sm:$0xff]
        %v2383 = vld [vmem:[#allocation9 + $0xeb0] sm:$0xff]
        %v2384 = vld [vmem:[#allocation9 + $0xeb8] sm:$0xff]
        %v2385 = vld [vmem:[#allocation9 + $0xec0] sm:$0xff]
        %v2386 = vld [vmem:[#allocation9 + $0xec8] sm:$0xff]
        %v2387 = vld [vmem:[#allocation9 + $0xed0] sm:$0xff]
        %v2388 = vld [vmem:[#allocation9 + $0xed8] sm:$0xff]
        %v2389 = vld [vmem:[#allocation9 + $0xee0] sm:$0xff]
        %v2390 = vld [vmem:[#allocation9 + $0xee8] sm:$0xff]
        %v2391 = vld [vmem:[#allocation9 + $0xef0] sm:$0xff]
        %v2392 = vld [vmem:[#allocation9 + $0xef8] sm:$0xff]
        %v2393 = vld [vmem:[#allocation9 + $0xf00] sm:$0xff]
        %v2394 = vld [vmem:[#allocation9 + $0xf08] sm:$0xff]
        %v2395 = vld [vmem:[#allocation9 + $0xf10] sm:$0xff]
        %v2396 = vld [vmem:[#allocation9 + $0xf18] sm:$0xff]
        %v2397 = vld [vmem:[#allocation9 + $0xf20] sm:$0xff]
        %v2398 = vld [vmem:[#allocation9 + $0xf28] sm:$0xff]
        %v2399 = vld [vmem:[#allocation9 + $0xf30] sm:$0xff]
        %v2400 = vld [vmem:[#allocation9 + $0xf38] sm:$0xff]
        %v2401 = vld [vmem:[#allocation9 + $0xf40] sm:$0xff]
        %v2402 = vld [vmem:[#allocation9 + $0xf48] sm:$0xff]
        %v2403 = vld [vmem:[#allocation9 + $0xf50] sm:$0xff]
        %v2404 = vld [vmem:[#allocation9 + $0xf58] sm:$0xff]
        %v2405 = vld [vmem:[#allocation9 + $0xf60] sm:$0xff]
        %v2406 = vld [vmem:[#allocation9 + $0xf68] sm:$0xff]
        %v2407 = vld [vmem:[#allocation9 + $0xf70] sm:$0xff]
        %v2408 = vld [vmem:[#allocation9 + $0xf78] sm:$0xff]
        %v2409 = vld [vmem:[#allocation9 + $0xf80] sm:$0xff]
        %v2410 = vld [vmem:[#allocation9 + $0xf88] sm:$0xff]
        %v2411 = vld [vmem:[#allocation9 + $0xf90] sm:$0xff]
        %v2412 = vld [vmem:[#allocation9 + $0xf98] sm:$0xff]
        %v2413 = vld [vmem:[#allocation9 + $0xfa0] sm:$0xff]
        %v2414 = vld [vmem:[#allocation9 + $0xfa8] sm:$0xff]
        %v2415 = vld [vmem:[#allocation9 + $0xfb0] sm:$0xff]
        %v2416 = vld [vmem:[#allocation9 + $0xfb8] sm:$0xff]
        %v2417 = vld [vmem:[#allocation9 + $0xfc0] sm:$0xff]
        %v2418 = vld [vmem:[#allocation9 + $0xfc8] sm:$0xff]
        %v2419 = vld [vmem:[#allocation9 + $0xfd0] sm:$0xff]
        %v2420 = vld [vmem:[#allocation9 + $0xfd8] sm:$0xff]
        %v2421 = vld [vmem:[#allocation9 + $0xfe0] sm:$0xff]
        %v2422 = vld [vmem:[#allocation9 + $0xfe8] sm:$0xff]
        %v2423 = vld [vmem:[#allocation9 + $0xff0] sm:$0xff]
        %v2424 = vld [vmem:[#allocation9 + $0xff8] sm:$0xff]
        %v2425 = vrot.slane %v1046, 6
        %2427 = vmatprep.subr.mxu0 %v2298
        %2428 = vmatpush1.msra.mxu0 %v2297
        %2429 = vmatprep.subr.mxu0 %v2306
        %2430 = vmatpush1.msra.mxu0 %v2305
        %2431 = vmatprep.subr.mxu0 %v2314
        %2432 = vmatpush1.msra.mxu0 %v2313
        %2433 = vmatprep.subr.mxu0 %v2322
        %2434 = vmatpush1.msra.mxu0 %v2321
        %2435 = vmatprep.subr.mxu0 %v2330
        %2436 = vmatpush1.msra.mxu0 %v2329
        %2437 = vmatprep.subr.mxu0 %v2338
        %2438 = vmatpush1.msra.mxu0 %v2337
        %2439 = vmatprep.subr.mxu0 %v2346
        %2440 = vmatpush1.msra.mxu0 %v2345
        %2441 = vmatprep.subr.mxu0 %v2354
        %2442 = vmatpush1.msra.mxu0 %v2353
        %2443 = vmatprep.subr.mxu0 %v2362
        %2444 = vmatpush1.msra.mxu0 %v2361
        %2445 = vmatprep.subr.mxu0 %v2370
        %2446 = vmatpush1.msra.mxu0 %v2369
        %2447 = vmatprep.subr.mxu0 %v2378
        %2448 = vmatpush1.msra.mxu0 %v2377
        %2449 = vmatprep.subr.mxu0 %v2386
        %2450 = vmatpush1.msra.mxu0 %v2385
        %2451 = vmatprep.subr.mxu0 %v2394
        %2452 = vmatpush1.msra.mxu0 %v2393
        %2453 = vmatprep.subr.mxu0 %v2402
        %2454 = vmatpush1.msra.mxu0 %v2401
        %2455 = vmatprep.subr.mxu0 %v2410
        %2456 = vmatpush1.msra.mxu0 %v2409
        %2457 = vmatprep.subr.mxu0 %v2418
        %2458 = vmatpush1.msra.mxu0 %v2417
        %2459 = vmatprep.subr.mxu0 0.0
        %2460 = vmatpush1.msra.mxu0 0.0
        %2461 = vmatprep.subr.mxu0 0.0
        %2462 = vmatpush1.msra.mxu0 0.0
        %2463 = vmatprep.subr.mxu0 0.0
        %2464 = vmatpush1.msra.mxu0 0.0
        %2465 = vmatprep.subr.mxu0 0.0
        %2466 = vmatpush1.msra.mxu0 0.0
        %2467 = vmatprep.subr.mxu0 0.0
        %2468 = vmatpush1.msra.mxu0 0.0
        %2469 = vmatprep.subr.mxu0 0.0
        %2470 = vmatpush1.msra.mxu0 0.0
        %2471 = vmatprep.subr.mxu0 0.0
        %2472 = vmatpush1.msra.mxu0 0.0
        %2473 = vmatprep.subr.mxu0 0.0
        %2474 = vmatpush1.msra.mxu0 0.0
        %2475 = vmatprep.subr.mxu0 0.0
        %2476 = vmatpush1.msra.mxu0 0.0
        %2477 = vmatprep.subr.mxu0 0.0
        %2478 = vmatpush1.msra.mxu0 0.0
        %2479 = vmatprep.subr.mxu0 0.0
        %2480 = vmatpush1.msra.mxu0 0.0
        %2481 = vmatprep.subr.mxu0 0.0
        %2482 = vmatpush1.msra.mxu0 0.0
        %2483 = vmatprep.subr.mxu0 0.0
        %2484 = vmatpush1.msra.mxu0 0.0
        %2485 = vmatprep.subr.mxu0 0.0
        %2486 = vmatpush1.msra.mxu0 0.0
        %2487 = vmatprep.subr.mxu0 0.0
        %2488 = vmatpush1.msra.mxu0 0.0
        %2489 = vmatprep.subr.mxu0 0.0
        %2490 = vmatpush1.msra.mxu0 0.0
        %2491 = vmatprep.mubr.f32.mxu0 0.0
        %2492 = vmatmul.mubr.f32.gmra.mrb[0].mxu0 %v2425
        %v2493 = vpop.f32.mrb[0].mxu0
        %v2494 = vadd.f32 0.0, %v2493
        %v2495 = vpop.f32.mrb[0].mxu0
        %v2496 = vadd.f32 0.0, %v2495
        %2497 = vdwg.mxu0
        %2498 = vmatprep.subr.mxu0 %v2300
        %2499 = vmatpush1.msra.mxu0 %v2299
        %2500 = vmatprep.subr.mxu0 %v2308
        %2501 = vmatpush1.msra.mxu0 %v2307
        %2502 = vmatprep.subr.mxu0 %v2316
        %2503 = vmatpush1.msra.mxu0 %v2315
        %2504 = vmatprep.subr.mxu0 %v2324
        %2505 = vmatpush1.msra.mxu0 %v2323
        %2506 = vmatprep.subr.mxu0 %v2332
        %2507 = vmatpush1.msra.mxu0 %v2331
        %2508 = vmatprep.subr.mxu0 %v2340
        %2509 = vmatpush1.msra.mxu0 %v2339
        %2510 = vmatprep.subr.mxu0 %v2348
        %2511 = vmatpush1.msra.mxu0 %v2347
        %2512 = vmatprep.subr.mxu0 %v2356
        %2513 = vmatpush1.msra.mxu0 %v2355
        %2514 = vmatprep.subr.mxu0 %v2364
        %2515 = vmatpush1.msra.mxu0 %v2363
        %2516 = vmatprep.subr.mxu0 %v2372
        %2517 = vmatpush1.msra.mxu0 %v2371
        %2518 = vmatprep.subr.mxu0 %v2380
        %2519 = vmatpush1.msra.mxu0 %v2379
        %2520 = vmatprep.subr.mxu0 %v2388
        %2521 = vmatpush1.msra.mxu0 %v2387
        %2522 = vmatprep.subr.mxu0 %v2396
        %2523 = vmatpush1.msra.mxu0 %v2395
        %2524 = vmatprep.subr.mxu0 %v2404
        %2525 = vmatpush1.msra.mxu0 %v2403
        %2526 = vmatprep.subr.mxu0 %v2412
        %2527 = vmatpush1.msra.mxu0 %v2411
        %2528 = vmatprep.subr.mxu0 %v2420
        %2529 = vmatpush1.msra.mxu0 %v2419
        %2530 = vmatprep.subr.mxu0 0.0
        %2531 = vmatpush1.msra.mxu0 0.0
        %2532 = vmatprep.subr.mxu0 0.0
        %2533 = vmatpush1.msra.mxu0 0.0
        %2534 = vmatprep.subr.mxu0 0.0
        %2535 = vmatpush1.msra.mxu0 0.0
        %2536 = vmatprep.subr.mxu0 0.0
        %2537 = vmatpush1.msra.mxu0 0.0
        %2538 = vmatprep.subr.mxu0 0.0
        %2539 = vmatpush1.msra.mxu0 0.0
        %2540 = vmatprep.subr.mxu0 0.0
        %2541 = vmatpush1.msra.mxu0 0.0
        %2542 = vmatprep.subr.mxu0 0.0
        %2543 = vmatpush1.msra.mxu0 0.0
        %2544 = vmatprep.subr.mxu0 0.0
        %2545 = vmatpush1.msra.mxu0 0.0
        %2546 = vmatprep.subr.mxu0 0.0
        %2547 = vmatpush1.msra.mxu0 0.0
        %2548 = vmatprep.subr.mxu0 0.0
        %2549 = vmatpush1.msra.mxu0 0.0
        %2550 = vmatprep.subr.mxu0 0.0
        %2551 = vmatpush1.msra.mxu0 0.0
        %2552 = vmatprep.subr.mxu0 0.0
        %2553 = vmatpush1.msra.mxu0 0.0
        %2554 = vmatprep.subr.mxu0 0.0
        %2555 = vmatpush1.msra.mxu0 0.0
        %2556 = vmatprep.subr.mxu0 0.0
        %2557 = vmatpush1.msra.mxu0 0.0
        %2558 = vmatprep.subr.mxu0 0.0
        %2559 = vmatpush1.msra.mxu0 0.0
        %2560 = vmatprep.subr.mxu0 0.0
        %2561 = vmatpush1.msra.mxu0 0.0
        %2562 = vmatprep.mubr.f32.mxu0 0.0
        %2563 = vmatmul.mubr.f32.gmra.mrb[0].mxu0 %v2425
        %v2564 = vpop.f32.mrb[0].mxu0
        %v2565 = vadd.f32 0.0, %v2564
        %v2566 = vpop.f32.mrb[0].mxu0
        %v2567 = vadd.f32 0.0, %v2566
        %2568 = vdwg.mxu0
        %2569 = vmatprep.subr.mxu0 %v2302
        %2570 = vmatpush1.msra.mxu0 %v2301
        %2571 = vmatprep.subr.mxu0 %v2310
        %2572 = vmatpush1.msra.mxu0 %v2309
        %2573 = vmatprep.subr.mxu0 %v2318
        %2574 = vmatpush1.msra.mxu0 %v2317
        %2575 = vmatprep.subr.mxu0 %v2326
        %2576 = vmatpush1.msra.mxu0 %v2325
        %2577 = vmatprep.subr.mxu0 %v2334
        %2578 = vmatpush1.msra.mxu0 %v2333
        %2579 = vmatprep.subr.mxu0 %v2342
        %2580 = vmatpush1.msra.mxu0 %v2341
        %2581 = vmatprep.subr.mxu0 %v2350
        %2582 = vmatpush1.msra.mxu0 %v2349
        %2583 = vmatprep.subr.mxu0 %v2358
        %2584 = vmatpush1.msra.mxu0 %v2357
        %2585 = vmatprep.subr.mxu0 %v2366
        %2586 = vmatpush1.msra.mxu0 %v2365
        %2587 = vmatprep.subr.mxu0 %v2374
        %2588 = vmatpush1.msra.mxu0 %v2373
        %2589 = vmatprep.subr.mxu0 %v2382
        %2590 = vmatpush1.msra.mxu0 %v2381
        %2591 = vmatprep.subr.mxu0 %v2390
        %2592 = vmatpush1.msra.mxu0 %v2389
        %2593 = vmatprep.subr.mxu0 %v2398
        %2594 = vmatpush1.msra.mxu0 %v2397
        %2595 = vmatprep.subr.mxu0 %v2406
        %2596 = vmatpush1.msra.mxu0 %v2405
        %2597 = vmatprep.subr.mxu0 %v2414
        %2598 = vmatpush1.msra.mxu0 %v2413
        %2599 = vmatprep.subr.mxu0 %v2422
        %2600 = vmatpush1.msra.mxu0 %v2421
        %2601 = vmatprep.subr.mxu0 0.0
        %2602 = vmatpush1.msra.mxu0 0.0
        %2603 = vmatprep.subr.mxu0 0.0
        %2604 = vmatpush1.msra.mxu0 0.0
        %2605 = vmatprep.subr.mxu0 0.0
        %2606 = vmatpush1.msra.mxu0 0.0
        %2607 = vmatprep.subr.mxu0 0.0
        %2608 = vmatpush1.msra.mxu0 0.0
        %2609 = vmatprep.subr.mxu0 0.0
        %2610 = vmatpush1.msra.mxu0 0.0
        %2611 = vmatprep.subr.mxu0 0.0
        %2612 = vmatpush1.msra.mxu0 0.0
        %2613 = vmatprep.subr.mxu0 0.0
        %2614 = vmatpush1.msra.mxu0 0.0
        %2615 = vmatprep.subr.mxu0 0.0
        %2616 = vmatpush1.msra.mxu0 0.0
        %2617 = vmatprep.subr.mxu0 0.0
        %2618 = vmatpush1.msra.mxu0 0.0
        %2619 = vmatprep.subr.mxu0 0.0
        %2620 = vmatpush1.msra.mxu0 0.0
        %2621 = vmatprep.subr.mxu0 0.0
        %2622 = vmatpush1.msra.mxu0 0.0
        %2623 = vmatprep.subr.mxu0 0.0
        %2624 = vmatpush1.msra.mxu0 0.0
        %2625 = vmatprep.subr.mxu0 0.0
        %2626 = vmatpush1.msra.mxu0 0.0
        %2627 = vmatprep.subr.mxu0 0.0
        %2628 = vmatpush1.msra.mxu0 0.0
        %2629 = vmatprep.subr.mxu0 0.0
        %2630 = vmatpush1.msra.mxu0 0.0
        %2631 = vmatprep.subr.mxu0 0.0
        %2632 = vmatpush1.msra.mxu0 0.0
        %2633 = vmatprep.mubr.f32.mxu0 0.0
        %2634 = vmatmul.mubr.f32.gmra.mrb[0].mxu0 %v2425
        %v2635 = vpop.f32.mrb[0].mxu0
        %v2636 = vadd.f32 0.0, %v2635
        %v2637 = vpop.f32.mrb[0].mxu0
        %v2638 = vadd.f32 0.0, %v2637
        %2639 = vdwg.mxu0
        %2640 = vmatprep.subr.mxu0 %v2304
        %2641 = vmatpush1.msra.mxu0 %v2303
        %2642 = vmatprep.subr.mxu0 %v2312
        %2643 = vmatpush1.msra.mxu0 %v2311
        %2644 = vmatprep.subr.mxu0 %v2320
        %2645 = vmatpush1.msra.mxu0 %v2319
        %2646 = vmatprep.subr.mxu0 %v2328
        %2647 = vmatpush1.msra.mxu0 %v2327
        %2648 = vmatprep.subr.mxu0 %v2336
        %2649 = vmatpush1.msra.mxu0 %v2335
        %2650 = vmatprep.subr.mxu0 %v2344
        %2651 = vmatpush1.msra.mxu0 %v2343
        %2652 = vmatprep.subr.mxu0 %v2352
        %2653 = vmatpush1.msra.mxu0 %v2351
        %2654 = vmatprep.subr.mxu0 %v2360
        %2655 = vmatpush1.msra.mxu0 %v2359
        %2656 = vmatprep.subr.mxu0 %v2368
        %2657 = vmatpush1.msra.mxu0 %v2367
        %2658 = vmatprep.subr.mxu0 %v2376
        %2659 = vmatpush1.msra.mxu0 %v2375
        %2660 = vmatprep.subr.mxu0 %v2384
        %2661 = vmatpush1.msra.mxu0 %v2383
        %2662 = vmatprep.subr.mxu0 %v2392
        %2663 = vmatpush1.msra.mxu0 %v2391
        %2664 = vmatprep.subr.mxu0 %v2400
        %2665 = vmatpush1.msra.mxu0 %v2399
        %2666 = vmatprep.subr.mxu0 %v2408
        %2667 = vmatpush1.msra.mxu0 %v2407
        %2668 = vmatprep.subr.mxu0 %v2416
        %2669 = vmatpush1.msra.mxu0 %v2415
        %2670 = vmatprep.subr.mxu0 %v2424
        %2671 = vmatpush1.msra.mxu0 %v2423
        %2672 = vmatprep.subr.mxu0 0.0
        %2673 = vmatpush1.msra.mxu0 0.0
        %2674 = vmatprep.subr.mxu0 0.0
        %2675 = vmatpush1.msra.mxu0 0.0
        %2676 = vmatprep.subr.mxu0 0.0
        %2677 = vmatpush1.msra.mxu0 0.0
        %2678 = vmatprep.subr.mxu0 0.0
        %2679 = vmatpush1.msra.mxu0 0.0
        %2680 = vmatprep.subr.mxu0 0.0
        %2681 = vmatpush1.msra.mxu0 0.0
        %2682 = vmatprep.subr.mxu0 0.0
        %2683 = vmatpush1.msra.mxu0 0.0
        %2684 = vmatprep.subr.mxu0 0.0
        %2685 = vmatpush1.msra.mxu0 0.0
        %2686 = vmatprep.subr.mxu0 0.0
        %2687 = vmatpush1.msra.mxu0 0.0
        %2688 = vmatprep.subr.mxu0 0.0
        %2689 = vmatpush1.msra.mxu0 0.0
        %2690 = vmatprep.subr.mxu0 0.0
        %2691 = vmatpush1.msra.mxu0 0.0
        %2692 = vmatprep.subr.mxu0 0.0
        %2693 = vmatpush1.msra.mxu0 0.0
        %2694 = vmatprep.subr.mxu0 0.0
        %2695 = vmatpush1.msra.mxu0 0.0
        %2696 = vmatprep.subr.mxu0 0.0
        %2697 = vmatpush1.msra.mxu0 0.0
        %2698 = vmatprep.subr.mxu0 0.0
        %2699 = vmatpush1.msra.mxu0 0.0
        %2700 = vmatprep.subr.mxu0 0.0
        %2701 = vmatpush1.msra.mxu0 0.0
        %2702 = vmatprep.subr.mxu0 0.0
        %2703 = vmatpush1.msra.mxu0 0.0
        %2704 = vmatprep.mubr.f32.mxu0 0.0
        %2705 = vmatmul.mubr.f32.gmra.mrb[0].mxu0 %v2425
        %v2706 = vpop.f32.mrb[0].mxu0
        %v2707 = vadd.f32 0.0, %v2706
        %v2708 = vpop.f32.mrb[0].mxu0
        %v2709 = vadd.f32 0.0, %v2708
        %2710 = vdwg.mxu0
        %v2711 = vadd.f32 %v2289, %v2494
        %v2712 = vadd.f32 %v2290, %v2496
        %v2713 = vadd.f32 %v2291, %v2565
        %v2714 = vadd.f32 %v2292, %v2567
        %v2715 = vadd.f32 %v2293, %v2636
        %v2716 = vadd.f32 %v2294, %v2638
        %v2717 = vadd.f32 %v2295, %v2707
        %v2718 = vadd.f32 %v2296, %v2709
        %v2719 = vld [vmem:[#allocation9 + $0x1000] sm:$0xff]
        %v2720 = vld [vmem:[#allocation9 + $0x1008] sm:$0xff]
        %v2721 = vld [vmem:[#allocation9 + $0x1010] sm:$0xff]
        %v2722 = vld [vmem:[#allocation9 + $0x1018] sm:$0xff]
        %v2723 = vld [vmem:[#allocation9 + $0x1020] sm:$0xff]
        %v2724 = vld [vmem:[#allocation9 + $0x1028] sm:$0xff]
        %v2725 = vld [vmem:[#allocation9 + $0x1030] sm:$0xff]
        %v2726 = vld [vmem:[#allocation9 + $0x1038] sm:$0xff]
        %v2727 = vld [vmem:[#allocation9 + $0x1040] sm:$0xff]
        %v2728 = vld [vmem:[#allocation9 + $0x1048] sm:$0xff]
        %v2729 = vld [vmem:[#allocation9 + $0x1050] sm:$0xff]
        %v2730 = vld [vmem:[#allocation9 + $0x1058] sm:$0xff]
        %v2731 = vld [vmem:[#allocation9 + $0x1060] sm:$0xff]
        %v2732 = vld [vmem:[#allocation9 + $0x1068] sm:$0xff]
        %v2733 = vld [vmem:[#allocation9 + $0x1070] sm:$0xff]
        %v2734 = vld [vmem:[#allocation9 + $0x1078] sm:$0xff]
        %v2735 = vld [vmem:[#allocation9 + $0x1080] sm:$0xff]
        %v2736 = vld [vmem:[#allocation9 + $0x1088] sm:$0xff]
        %v2737 = vld [vmem:[#allocation9 + $0x1090] sm:$0xff]
        %v2738 = vld [vmem:[#allocation9 + $0x1098] sm:$0xff]
        %v2739 = vld [vmem:[#allocation9 + $0x10a0] sm:$0xff]
        %v2740 = vld [vmem:[#allocation9 + $0x10a8] sm:$0xff]
        %v2741 = vld [vmem:[#allocation9 + $0x10b0] sm:$0xff]
        %v2742 = vld [vmem:[#allocation9 + $0x10b8] sm:$0xff]
        %v2743 = vld [vmem:[#allocation9 + $0x10c0] sm:$0xff]
        %v2744 = vld [vmem:[#allocation9 + $0x10c8] sm:$0xff]
        %v2745 = vld [vmem:[#allocation9 + $0x10d0] sm:$0xff]
        %v2746 = vld [vmem:[#allocation9 + $0x10d8] sm:$0xff]
        %v2747 = vld [vmem:[#allocation9 + $0x10e0] sm:$0xff]
        %v2748 = vld [vmem:[#allocation9 + $0x10e8] sm:$0xff]
        %v2749 = vld [vmem:[#allocation9 + $0x10f0] sm:$0xff]
        %v2750 = vld [vmem:[#allocation9 + $0x10f8] sm:$0xff]
        %v2751 = vld [vmem:[#allocation9 + $0x1100] sm:$0xff]
        %v2752 = vld [vmem:[#allocation9 + $0x1108] sm:$0xff]
        %v2753 = vld [vmem:[#allocation9 + $0x1110] sm:$0xff]
        %v2754 = vld [vmem:[#allocation9 + $0x1118] sm:$0xff]
        %v2755 = vld [vmem:[#allocation9 + $0x1120] sm:$0xff]
        %v2756 = vld [vmem:[#allocation9 + $0x1128] sm:$0xff]
        %v2757 = vld [vmem:[#allocation9 + $0x1130] sm:$0xff]
        %v2758 = vld [vmem:[#allocation9 + $0x1138] sm:$0xff]
        %v2759 = vld [vmem:[#allocation9 + $0x1140] sm:$0xff]
        %v2760 = vld [vmem:[#allocation9 + $0x1148] sm:$0xff]
        %v2761 = vld [vmem:[#allocation9 + $0x1150] sm:$0xff]
        %v2762 = vld [vmem:[#allocation9 + $0x1158] sm:$0xff]
        %v2763 = vld [vmem:[#allocation9 + $0x1160] sm:$0xff]
        %v2764 = vld [vmem:[#allocation9 + $0x1168] sm:$0xff]
        %v2765 = vld [vmem:[#allocation9 + $0x1170] sm:$0xff]
        %v2766 = vld [vmem:[#allocation9 + $0x1178] sm:$0xff]
        %v2767 = vld [vmem:[#allocation9 + $0x1180] sm:$0xff]
        %v2768 = vld [vmem:[#allocation9 + $0x1188] sm:$0xff]
        %v2769 = vld [vmem:[#allocation9 + $0x1190] sm:$0xff]
        %v2770 = vld [vmem:[#allocation9 + $0x1198] sm:$0xff]
        %v2771 = vld [vmem:[#allocation9 + $0x11a0] sm:$0xff]
        %v2772 = vld [vmem:[#allocation9 + $0x11a8] sm:$0xff]
        %v2773 = vld [vmem:[#allocation9 + $0x11b0] sm:$0xff]
        %v2774 = vld [vmem:[#allocation9 + $0x11b8] sm:$0xff]
        %v2775 = vld [vmem:[#allocation9 + $0x11c0] sm:$0xff]
        %v2776 = vld [vmem:[#allocation9 + $0x11c8] sm:$0xff]
        %v2777 = vld [vmem:[#allocation9 + $0x11d0] sm:$0xff]
        %v2778 = vld [vmem:[#allocation9 + $0x11d8] sm:$0xff]
        %v2779 = vld [vmem:[#allocation9 + $0x11e0] sm:$0xff]
        %v2780 = vld [vmem:[#allocation9 + $0x11e8] sm:$0xff]
        %v2781 = vld [vmem:[#allocation9 + $0x11f0] sm:$0xff]
        %v2782 = vld [vmem:[#allocation9 + $0x11f8] sm:$0xff]
        %v2783 = vld [vmem:[#allocation9 + $0x1200] sm:$0xff]
        %v2784 = vld [vmem:[#allocation9 + $0x1208] sm:$0xff]
        %v2785 = vld [vmem:[#allocation9 + $0x1210] sm:$0xff]
        %v2786 = vld [vmem:[#allocation9 + $0x1218] sm:$0xff]
        %v2787 = vld [vmem:[#allocation9 + $0x1220] sm:$0xff]
        %v2788 = vld [vmem:[#allocation9 + $0x1228] sm:$0xff]
        %v2789 = vld [vmem:[#allocation9 + $0x1230] sm:$0xff]
        %v2790 = vld [vmem:[#allocation9 + $0x1238] sm:$0xff]
        %v2791 = vld [vmem:[#allocation9 + $0x1240] sm:$0xff]
        %v2792 = vld [vmem:[#allocation9 + $0x1248] sm:$0xff]
        %v2793 = vld [vmem:[#allocation9 + $0x1250] sm:$0xff]
        %v2794 = vld [vmem:[#allocation9 + $0x1258] sm:$0xff]
        %v2795 = vld [vmem:[#allocation9 + $0x1260] sm:$0xff]
        %v2796 = vld [vmem:[#allocation9 + $0x1268] sm:$0xff]
        %v2797 = vld [vmem:[#allocation9 + $0x1270] sm:$0xff]
        %v2798 = vld [vmem:[#allocation9 + $0x1278] sm:$0xff]
        %v2799 = vld [vmem:[#allocation9 + $0x1280] sm:$0xff]
        %v2800 = vld [vmem:[#allocation9 + $0x1288] sm:$0xff]
        %v2801 = vld [vmem:[#allocation9 + $0x1290] sm:$0xff]
        %v2802 = vld [vmem:[#allocation9 + $0x1298] sm:$0xff]
        %v2803 = vld [vmem:[#allocation9 + $0x12a0] sm:$0xff]
        %v2804 = vld [vmem:[#allocation9 + $0x12a8] sm:$0xff]
        %v2805 = vld [vmem:[#allocation9 + $0x12b0] sm:$0xff]
        %v2806 = vld [vmem:[#allocation9 + $0x12b8] sm:$0xff]
        %v2807 = vld [vmem:[#allocation9 + $0x12c0] sm:$0xff]
        %v2808 = vld [vmem:[#allocation9 + $0x12c8] sm:$0xff]
        %v2809 = vld [vmem:[#allocation9 + $0x12d0] sm:$0xff]
        %v2810 = vld [vmem:[#allocation9 + $0x12d8] sm:$0xff]
        %v2811 = vld [vmem:[#allocation9 + $0x12e0] sm:$0xff]
        %v2812 = vld [vmem:[#allocation9 + $0x12e8] sm:$0xff]
        %v2813 = vld [vmem:[#allocation9 + $0x12f0] sm:$0xff]
        %v2814 = vld [vmem:[#allocation9 + $0x12f8] sm:$0xff]
        %v2815 = vld [vmem:[#allocation9 + $0x1300] sm:$0xff]
        %v2816 = vld [vmem:[#allocation9 + $0x1308] sm:$0xff]
        %v2817 = vld [vmem:[#allocation9 + $0x1310] sm:$0xff]
        %v2818 = vld [vmem:[#allocation9 + $0x1318] sm:$0xff]
        %v2819 = vld [vmem:[#allocation9 + $0x1320] sm:$0xff]
        %v2820 = vld [vmem:[#allocation9 + $0x1328] sm:$0xff]
        %v2821 = vld [vmem:[#allocation9 + $0x1330] sm:$0xff]
        %v2822 = vld [vmem:[#allocation9 + $0x1338] sm:$0xff]
        %v2823 = vld [vmem:[#allocation9 + $0x1340] sm:$0xff]
        %v2824 = vld [vmem:[#allocation9 + $0x1348] sm:$0xff]
        %v2825 = vld [vmem:[#allocation9 + $0x1350] sm:$0xff]
        %v2826 = vld [vmem:[#allocation9 + $0x1358] sm:$0xff]
        %v2827 = vld [vmem:[#allocation9 + $0x1360] sm:$0xff]
        %v2828 = vld [vmem:[#allocation9 + $0x1368] sm:$0xff]
        %v2829 = vld [vmem:[#allocation9 + $0x1370] sm:$0xff]
        %v2830 = vld [vmem:[#allocation9 + $0x1378] sm:$0xff]
        %v2831 = vld [vmem:[#allocation9 + $0x1380] sm:$0xff]
        %v2832 = vld [vmem:[#allocation9 + $0x1388] sm:$0xff]
        %v2833 = vld [vmem:[#allocation9 + $0x1390] sm:$0xff]
        %v2834 = vld [vmem:[#allocation9 + $0x1398] sm:$0xff]
        %v2835 = vld [vmem:[#allocation9 + $0x13a0] sm:$0xff]
        %v2836 = vld [vmem:[#allocation9 + $0x13a8] sm:$0xff]
        %v2837 = vld [vmem:[#allocation9 + $0x13b0] sm:$0xff]
        %v2838 = vld [vmem:[#allocation9 + $0x13b8] sm:$0xff]
        %v2839 = vld [vmem:[#allocation9 + $0x13c0] sm:$0xff]
        %v2840 = vld [vmem:[#allocation9 + $0x13c8] sm:$0xff]
        %v2841 = vld [vmem:[#allocation9 + $0x13d0] sm:$0xff]
        %v2842 = vld [vmem:[#allocation9 + $0x13d8] sm:$0xff]
        %v2843 = vld [vmem:[#allocation9 + $0x13e0] sm:$0xff]
        %v2844 = vld [vmem:[#allocation9 + $0x13e8] sm:$0xff]
        %v2845 = vld [vmem:[#allocation9 + $0x13f0] sm:$0xff]
        %v2846 = vld [vmem:[#allocation9 + $0x13f8] sm:$0xff]
        %2847 = vmatprep.subr.mxu0 %v2720
        %2848 = vmatpush1.msra.mxu0 %v2719
        %2849 = vmatprep.subr.mxu0 %v2728
        %2850 = vmatpush1.msra.mxu0 %v2727
        %2851 = vmatprep.subr.mxu0 %v2736
        %2852 = vmatpush1.msra.mxu0 %v2735
        %2853 = vmatprep.subr.mxu0 %v2744
        %2854 = vmatpush1.msra.mxu0 %v2743
        %2855 = vmatprep.subr.mxu0 %v2752
        %2856 = vmatpush1.msra.mxu0 %v2751
        %2857 = vmatprep.subr.mxu0 %v2760
        %2858 = vmatpush1.msra.mxu0 %v2759
        %2859 = vmatprep.subr.mxu0 %v2768
        %2860 = vmatpush1.msra.mxu0 %v2767
        %2861 = vmatprep.subr.mxu0 %v2776
        %2862 = vmatpush1.msra.mxu0 %v2775
        %2863 = vmatprep.subr.mxu0 %v2784
        %2864 = vmatpush1.msra.mxu0 %v2783
        %2865 = vmatprep.subr.mxu0 %v2792
        %2866 = vmatpush1.msra.mxu0 %v2791
        %2867 = vmatprep.subr.mxu0 %v2800
        %2868 = vmatpush1.msra.mxu0 %v2799
        %2869 = vmatprep.subr.mxu0 %v2808
        %2870 = vmatpush1.msra.mxu0 %v2807
        %2871 = vmatprep.subr.mxu0 %v2816
        %2872 = vmatpush1.msra.mxu0 %v2815
        %2873 = vmatprep.subr.mxu0 %v2824
        %2874 = vmatpush1.msra.mxu0 %v2823
        %2875 = vmatprep.subr.mxu0 %v2832
        %2876 = vmatpush1.msra.mxu0 %v2831
        %2877 = vmatprep.subr.mxu0 %v2840
        %2878 = vmatpush1.msra.mxu0 %v2839
        %2879 = vmatprep.subr.mxu0 0.0
        %2880 = vmatpush1.msra.mxu0 0.0
        %2881 = vmatprep.subr.mxu0 0.0
        %2882 = vmatpush1.msra.mxu0 0.0
        %2883 = vmatprep.subr.mxu0 0.0
        %2884 = vmatpush1.msra.mxu0 0.0
        %2885 = vmatprep.subr.mxu0 0.0
        %2886 = vmatpush1.msra.mxu0 0.0
        %2887 = vmatprep.subr.mxu0 0.0
        %2888 = vmatpush1.msra.mxu0 0.0
        %2889 = vmatprep.subr.mxu0 0.0
        %2890 = vmatpush1.msra.mxu0 0.0
        %2891 = vmatprep.subr.mxu0 0.0
        %2892 = vmatpush1.msra.mxu0 0.0
        %2893 = vmatprep.subr.mxu0 0.0
        %2894 = vmatpush1.msra.mxu0 0.0
        %2895 = vmatprep.subr.mxu0 0.0
        %2896 = vmatpush1.msra.mxu0 0.0
        %2897 = vmatprep.subr.mxu0 0.0
        %2898 = vmatpush1.msra.mxu0 0.0
        %2899 = vmatprep.subr.mxu0 0.0
        %2900 = vmatpush1.msra.mxu0 0.0
        %2901 = vmatprep.subr.mxu0 0.0
        %2902 = vmatpush1.msra.mxu0 0.0
        %2903 = vmatprep.subr.mxu0 0.0
        %2904 = vmatpush1.msra.mxu0 0.0
        %2905 = vmatprep.subr.mxu0 0.0
        %2906 = vmatpush1.msra.mxu0 0.0
        %2907 = vmatprep.subr.mxu0 0.0
        %2908 = vmatpush1.msra.mxu0 0.0
        %2909 = vmatprep.subr.mxu0 0.0
        %2910 = vmatpush1.msra.mxu0 0.0
        %2911 = vmatprep.mubr.f32.mxu0 0.0
        %2912 = vmatmul.mubr.f32.gmra.mrb[0].mxu0 %v1047
        %v2913 = vpop.f32.mrb[0].mxu0
        %v2914 = vadd.f32 0.0, %v2913
        %v2915 = vpop.f32.mrb[0].mxu0
        %v2916 = vadd.f32 0.0, %v2915
        %2917 = vdwg.mxu0
        %2918 = vmatprep.subr.mxu0 %v2722
        %2919 = vmatpush1.msra.mxu0 %v2721
        %2920 = vmatprep.subr.mxu0 %v2730
        %2921 = vmatpush1.msra.mxu0 %v2729
        %2922 = vmatprep.subr.mxu0 %v2738
        %2923 = vmatpush1.msra.mxu0 %v2737
        %2924 = vmatprep.subr.mxu0 %v2746
        %2925 = vmatpush1.msra.mxu0 %v2745
        %2926 = vmatprep.subr.mxu0 %v2754
        %2927 = vmatpush1.msra.mxu0 %v2753
        %2928 = vmatprep.subr.mxu0 %v2762
        %2929 = vmatpush1.msra.mxu0 %v2761
        %2930 = vmatprep.subr.mxu0 %v2770
        %2931 = vmatpush1.msra.mxu0 %v2769
        %2932 = vmatprep.subr.mxu0 %v2778
        %2933 = vmatpush1.msra.mxu0 %v2777
        %2934 = vmatprep.subr.mxu0 %v2786
        %2935 = vmatpush1.msra.mxu0 %v2785
        %2936 = vmatprep.subr.mxu0 %v2794
        %2937 = vmatpush1.msra.mxu0 %v2793
        %2938 = vmatprep.subr.mxu0 %v2802
        %2939 = vmatpush1.msra.mxu0 %v2801
        %2940 = vmatprep.subr.mxu0 %v2810
        %2941 = vmatpush1.msra.mxu0 %v2809
        %2942 = vmatprep.subr.mxu0 %v2818
        %2943 = vmatpush1.msra.mxu0 %v2817
        %2944 = vmatprep.subr.mxu0 %v2826
        %2945 = vmatpush1.msra.mxu0 %v2825
        %2946 = vmatprep.subr.mxu0 %v2834
        %2947 = vmatpush1.msra.mxu0 %v2833
        %2948 = vmatprep.subr.mxu0 %v2842
        %2949 = vmatpush1.msra.mxu0 %v2841
        %2950 = vmatprep.subr.mxu0 0.0
        %2951 = vmatpush1.msra.mxu0 0.0
        %2952 = vmatprep.subr.mxu0 0.0
        %2953 = vmatpush1.msra.mxu0 0.0
        %2954 = vmatprep.subr.mxu0 0.0
        %2955 = vmatpush1.msra.mxu0 0.0
        %2956 = vmatprep.subr.mxu0 0.0
        %2957 = vmatpush1.msra.mxu0 0.0
        %2958 = vmatprep.subr.mxu0 0.0
        %2959 = vmatpush1.msra.mxu0 0.0
        %2960 = vmatprep.subr.mxu0 0.0
        %2961 = vmatpush1.msra.mxu0 0.0
        %2962 = vmatprep.subr.mxu0 0.0
        %2963 = vmatpush1.msra.mxu0 0.0
        %2964 = vmatprep.subr.mxu0 0.0
        %2965 = vmatpush1.msra.mxu0 0.0
        %2966 = vmatprep.subr.mxu0 0.0
        %2967 = vmatpush1.msra.mxu0 0.0
        %2968 = vmatprep.subr.mxu0 0.0
        %2969 = vmatpush1.msra.mxu0 0.0
        %2970 = vmatprep.subr.mxu0 0.0
        %2971 = vmatpush1.msra.mxu0 0.0
        %2972 = vmatprep.subr.mxu0 0.0
        %2973 = vmatpush1.msra.mxu0 0.0
        %2974 = vmatprep.subr.mxu0 0.0
        %2975 = vmatpush1.msra.mxu0 0.0
        %2976 = vmatprep.subr.mxu0 0.0
        %2977 = vmatpush1.msra.mxu0 0.0
        %2978 = vmatprep.subr.mxu0 0.0
        %2979 = vmatpush1.msra.mxu0 0.0
        %2980 = vmatprep.subr.mxu0 0.0
        %2981 = vmatpush1.msra.mxu0 0.0
        %2982 = vmatprep.mubr.f32.mxu0 0.0
        %2983 = vmatmul.mubr.f32.gmra.mrb[0].mxu0 %v1047
        %v2984 = vpop.f32.mrb[0].mxu0
        %v2985 = vadd.f32 0.0, %v2984
        %v2986 = vpop.f32.mrb[0].mxu0
        %v2987 = vadd.f32 0.0, %v2986
        %2988 = vdwg.mxu0
        %2989 = vmatprep.subr.mxu0 %v2724
        %2990 = vmatpush1.msra.mxu0 %v2723
        %2991 = vmatprep.subr.mxu0 %v2732
        %2992 = vmatpush1.msra.mxu0 %v2731
        %2993 = vmatprep.subr.mxu0 %v2740
        %2994 = vmatpush1.msra.mxu0 %v2739
        %2995 = vmatprep.subr.mxu0 %v2748
        %2996 = vmatpush1.msra.mxu0 %v2747
        %2997 = vmatprep.subr.mxu0 %v2756
        %2998 = vmatpush1.msra.mxu0 %v2755
        %2999 = vmatprep.subr.mxu0 %v2764
        %3000 = vmatpush1.msra.mxu0 %v2763
        %3001 = vmatprep.subr.mxu0 %v2772
        %3002 = vmatpush1.msra.mxu0 %v2771
        %3003 = vmatprep.subr.mxu0 %v2780
        %3004 = vmatpush1.msra.mxu0 %v2779
        %3005 = vmatprep.subr.mxu0 %v2788
        %3006 = vmatpush1.msra.mxu0 %v2787
        %3007 = vmatprep.subr.mxu0 %v2796
        %3008 = vmatpush1.msra.mxu0 %v2795
        %3009 = vmatprep.subr.mxu0 %v2804
        %3010 = vmatpush1.msra.mxu0 %v2803
        %3011 = vmatprep.subr.mxu0 %v2812
        %3012 = vmatpush1.msra.mxu0 %v2811
        %3013 = vmatprep.subr.mxu0 %v2820
        %3014 = vmatpush1.msra.mxu0 %v2819
        %3015 = vmatprep.subr.mxu0 %v2828
        %3016 = vmatpush1.msra.mxu0 %v2827
        %3017 = vmatprep.subr.mxu0 %v2836
        %3018 = vmatpush1.msra.mxu0 %v2835
        %3019 = vmatprep.subr.mxu0 %v2844
        %3020 = vmatpush1.msra.mxu0 %v2843
        %3021 = vmatprep.subr.mxu0 0.0
        %3022 = vmatpush1.msra.mxu0 0.0
        %3023 = vmatprep.subr.mxu0 0.0
        %3024 = vmatpush1.msra.mxu0 0.0
        %3025 = vmatprep.subr.mxu0 0.0
        %3026 = vmatpush1.msra.mxu0 0.0
        %3027 = vmatprep.subr.mxu0 0.0
        %3028 = vmatpush1.msra.mxu0 0.0
        %3029 = vmatprep.subr.mxu0 0.0
        %3030 = vmatpush1.msra.mxu0 0.0
        %3031 = vmatprep.subr.mxu0 0.0
        %3032 = vmatpush1.msra.mxu0 0.0
        %3033 = vmatprep.subr.mxu0 0.0
        %3034 = vmatpush1.msra.mxu0 0.0
        %3035 = vmatprep.subr.mxu0 0.0
        %3036 = vmatpush1.msra.mxu0 0.0
        %3037 = vmatprep.subr.mxu0 0.0
        %3038 = vmatpush1.msra.mxu0 0.0
        %3039 = vmatprep.subr.mxu0 0.0
        %3040 = vmatpush1.msra.mxu0 0.0
        %3041 = vmatprep.subr.mxu0 0.0
        %3042 = vmatpush1.msra.mxu0 0.0
        %3043 = vmatprep.subr.mxu0 0.0
        %3044 = vmatpush1.msra.mxu0 0.0
        %3045 = vmatprep.subr.mxu0 0.0
        %3046 = vmatpush1.msra.mxu0 0.0
        %3047 = vmatprep.subr.mxu0 0.0
        %3048 = vmatpush1.msra.mxu0 0.0
        %3049 = vmatprep.subr.mxu0 0.0
        %3050 = vmatpush1.msra.mxu0 0.0
        %3051 = vmatprep.subr.mxu0 0.0
        %3052 = vmatpush1.msra.mxu0 0.0
        %3053 = vmatprep.mubr.f32.mxu0 0.0
        %3054 = vmatmul.mubr.f32.gmra.mrb[0].mxu0 %v1047
        %v3055 = vpop.f32.mrb[0].mxu0
        %v3056 = vadd.f32 0.0, %v3055
        %v3057 = vpop.f32.mrb[0].mxu0
        %v3058 = vadd.f32 0.0, %v3057
        %3059 = vdwg.mxu0
        %3060 = vmatprep.subr.mxu0 %v2726
        %3061 = vmatpush1.msra.mxu0 %v2725
        %3062 = vmatprep.subr.mxu0 %v2734
        %3063 = vmatpush1.msra.mxu0 %v2733
        %3064 = vmatprep.subr.mxu0 %v2742
        %3065 = vmatpush1.msra.mxu0 %v2741
        %3066 = vmatprep.subr.mxu0 %v2750
        %3067 = vmatpush1.msra.mxu0 %v2749
        %3068 = vmatprep.subr.mxu0 %v2758
        %3069 = vmatpush1.msra.mxu0 %v2757
        %3070 = vmatprep.subr.mxu0 %v2766
        %3071 = vmatpush1.msra.mxu0 %v2765
        %3072 = vmatprep.subr.mxu0 %v2774
        %3073 = vmatpush1.msra.mxu0 %v2773
        %3074 = vmatprep.subr.mxu0 %v2782
        %3075 = vmatpush1.msra.mxu0 %v2781
        %3076 = vmatprep.subr.mxu0 %v2790
        %3077 = vmatpush1.msra.mxu0 %v2789
        %3078 = vmatprep.subr.mxu0 %v2798
        %3079 = vmatpush1.msra.mxu0 %v2797
        %3080 = vmatprep.subr.mxu0 %v2806
        %3081 = vmatpush1.msra.mxu0 %v2805
        %3082 = vmatprep.subr.mxu0 %v2814
        %3083 = vmatpush1.msra.mxu0 %v2813
        %3084 = vmatprep.subr.mxu0 %v2822
        %3085 = vmatpush1.msra.mxu0 %v2821
        %3086 = vmatprep.subr.mxu0 %v2830
        %3087 = vmatpush1.msra.mxu0 %v2829
        %3088 = vmatprep.subr.mxu0 %v2838
        %3089 = vmatpush1.msra.mxu0 %v2837
        %3090 = vmatprep.subr.mxu0 %v2846
        %3091 = vmatpush1.msra.mxu0 %v2845
        %3092 = vmatprep.subr.mxu0 0.0
        %3093 = vmatpush1.msra.mxu0 0.0
        %3094 = vmatprep.subr.mxu0 0.0
        %3095 = vmatpush1.msra.mxu0 0.0
        %3096 = vmatprep.subr.mxu0 0.0
        %3097 = vmatpush1.msra.mxu0 0.0
        %3098 = vmatprep.subr.mxu0 0.0
        %3099 = vmatpush1.msra.mxu0 0.0
        %3100 = vmatprep.subr.mxu0 0.0
        %3101 = vmatpush1.msra.mxu0 0.0
        %3102 = vmatprep.subr.mxu0 0.0
        %3103 = vmatpush1.msra.mxu0 0.0
        %3104 = vmatprep.subr.mxu0 0.0
        %3105 = vmatpush1.msra.mxu0 0.0
        %3106 = vmatprep.subr.mxu0 0.0
        %3107 = vmatpush1.msra.mxu0 0.0
        %3108 = vmatprep.subr.mxu0 0.0
        %3109 = vmatpush1.msra.mxu0 0.0
        %3110 = vmatprep.subr.mxu0 0.0
        %3111 = vmatpush1.msra.mxu0 0.0
        %3112 = vmatprep.subr.mxu0 0.0
        %3113 = vmatpush1.msra.mxu0 0.0
        %3114 = vmatprep.subr.mxu0 0.0
        %3115 = vmatpush1.msra.mxu0 0.0
        %3116 = vmatprep.subr.mxu0 0.0
        %3117 = vmatpush1.msra.mxu0 0.0
        %3118 = vmatprep.subr.mxu0 0.0
        %3119 = vmatpush1.msra.mxu0 0.0
        %3120 = vmatprep.subr.mxu0 0.0
        %3121 = vmatpush1.msra.mxu0 0.0
        %3122 = vmatprep.subr.mxu0 0.0
        %3123 = vmatpush1.msra.mxu0 0.0
        %3124 = vmatprep.mubr.f32.mxu0 0.0
        %3125 = vmatmul.mubr.f32.gmra.mrb[0].mxu0 %v1047
        %v3126 = vpop.f32.mrb[0].mxu0
        %v3127 = vadd.f32 0.0, %v3126
        %v3128 = vpop.f32.mrb[0].mxu0
        %v3129 = vadd.f32 0.0, %v3128
        %3130 = vdwg.mxu0
        %v3131 = vadd.f32 %v2711, %v2914
        %v3132 = vadd.f32 %v2712, %v2916
        %v3133 = vadd.f32 %v2713, %v2985
        %v3134 = vadd.f32 %v2714, %v2987
        %v3135 = vadd.f32 %v2715, %v3056
        %v3136 = vadd.f32 %v2716, %v3058
        %v3137 = vadd.f32 %v2717, %v3127
        %v3138 = vadd.f32 %v2718, %v3129
        %v3139 = vld [vmem:[#allocation9 + $0x1400] sm:$0xff]
        %v3140 = vld [vmem:[#allocation9 + $0x1408] sm:$0xff]
        %v3141 = vld [vmem:[#allocation9 + $0x1410] sm:$0xff]
        %v3142 = vld [vmem:[#allocation9 + $0x1418] sm:$0xff]
        %v3143 = vld [vmem:[#allocation9 + $0x1420] sm:$0xff]
        %v3144 = vld [vmem:[#allocation9 + $0x1428] sm:$0xff]
        %v3145 = vld [vmem:[#allocation9 + $0x1430] sm:$0xff]
        %v3146 = vld [vmem:[#allocation9 + $0x1438] sm:$0xff]
        %v3147 = vld [vmem:[#allocation9 + $0x1440] sm:$0xff]
        %v3148 = vld [vmem:[#allocation9 + $0x1448] sm:$0xff]
        %v3149 = vld [vmem:[#allocation9 + $0x1450] sm:$0xff]
        %v3150 = vld [vmem:[#allocation9 + $0x1458] sm:$0xff]
        %v3151 = vld [vmem:[#allocation9 + $0x1460] sm:$0xff]
        %v3152 = vld [vmem:[#allocation9 + $0x1468] sm:$0xff]
        %v3153 = vld [vmem:[#allocation9 + $0x1470] sm:$0xff]
        %v3154 = vld [vmem:[#allocation9 + $0x1478] sm:$0xff]
        %v3155 = vld [vmem:[#allocation9 + $0x1480] sm:$0xff]
        %v3156 = vld [vmem:[#allocation9 + $0x1488] sm:$0xff]
        %v3157 = vld [vmem:[#allocation9 + $0x1490] sm:$0xff]
        %v3158 = vld [vmem:[#allocation9 + $0x1498] sm:$0xff]
        %v3159 = vld [vmem:[#allocation9 + $0x14a0] sm:$0xff]
        %v3160 = vld [vmem:[#allocation9 + $0x14a8] sm:$0xff]
        %v3161 = vld [vmem:[#allocation9 + $0x14b0] sm:$0xff]
        %v3162 = vld [vmem:[#allocation9 + $0x14b8] sm:$0xff]
        %v3163 = vld [vmem:[#allocation9 + $0x14c0] sm:$0xff]
        %v3164 = vld [vmem:[#allocation9 + $0x14c8] sm:$0xff]
        %v3165 = vld [vmem:[#allocation9 + $0x14d0] sm:$0xff]
        %v3166 = vld [vmem:[#allocation9 + $0x14d8] sm:$0xff]
        %v3167 = vld [vmem:[#allocation9 + $0x14e0] sm:$0xff]
        %v3168 = vld [vmem:[#allocation9 + $0x14e8] sm:$0xff]
        %v3169 = vld [vmem:[#allocation9 + $0x14f0] sm:$0xff]
        %v3170 = vld [vmem:[#allocation9 + $0x14f8] sm:$0xff]
        %v3171 = vld [vmem:[#allocation9 + $0x1500] sm:$0xff]
        %v3172 = vld [vmem:[#allocation9 + $0x1508] sm:$0xff]
        %v3173 = vld [vmem:[#allocation9 + $0x1510] sm:$0xff]
        %v3174 = vld [vmem:[#allocation9 + $0x1518] sm:$0xff]
        %v3175 = vld [vmem:[#allocation9 + $0x1520] sm:$0xff]
        %v3176 = vld [vmem:[#allocation9 + $0x1528] sm:$0xff]
        %v3177 = vld [vmem:[#allocation9 + $0x1530] sm:$0xff]
        %v3178 = vld [vmem:[#allocation9 + $0x1538] sm:$0xff]
        %v3179 = vld [vmem:[#allocation9 + $0x1540] sm:$0xff]
        %v3180 = vld [vmem:[#allocation9 + $0x1548] sm:$0xff]
        %v3181 = vld [vmem:[#allocation9 + $0x1550] sm:$0xff]
        %v3182 = vld [vmem:[#allocation9 + $0x1558] sm:$0xff]
        %v3183 = vld [vmem:[#allocation9 + $0x1560] sm:$0xff]
        %v3184 = vld [vmem:[#allocation9 + $0x1568] sm:$0xff]
        %v3185 = vld [vmem:[#allocation9 + $0x1570] sm:$0xff]
        %v3186 = vld [vmem:[#allocation9 + $0x1578] sm:$0xff]
        %v3187 = vld [vmem:[#allocation9 + $0x1580] sm:$0xff]
        %v3188 = vld [vmem:[#allocation9 + $0x1588] sm:$0xff]
        %v3189 = vld [vmem:[#allocation9 + $0x1590] sm:$0xff]
        %v3190 = vld [vmem:[#allocation9 + $0x1598] sm:$0xff]
        %v3191 = vld [vmem:[#allocation9 + $0x15a0] sm:$0xff]
        %v3192 = vld [vmem:[#allocation9 + $0x15a8] sm:$0xff]
        %v3193 = vld [vmem:[#allocation9 + $0x15b0] sm:$0xff]
        %v3194 = vld [vmem:[#allocation9 + $0x15b8] sm:$0xff]
        %v3195 = vld [vmem:[#allocation9 + $0x15c0] sm:$0xff]
        %v3196 = vld [vmem:[#allocation9 + $0x15c8] sm:$0xff]
        %v3197 = vld [vmem:[#allocation9 + $0x15d0] sm:$0xff]
        %v3198 = vld [vmem:[#allocation9 + $0x15d8] sm:$0xff]
        %v3199 = vld [vmem:[#allocation9 + $0x15e0] sm:$0xff]
        %v3200 = vld [vmem:[#allocation9 + $0x15e8] sm:$0xff]
        %v3201 = vld [vmem:[#allocation9 + $0x15f0] sm:$0xff]
        %v3202 = vld [vmem:[#allocation9 + $0x15f8] sm:$0xff]
        %v3203 = vld [vmem:[#allocation9 + $0x1600] sm:$0xff]
        %v3204 = vld [vmem:[#allocation9 + $0x1608] sm:$0xff]
        %v3205 = vld [vmem:[#allocation9 + $0x1610] sm:$0xff]
        %v3206 = vld [vmem:[#allocation9 + $0x1618] sm:$0xff]
        %v3207 = vld [vmem:[#allocation9 + $0x1620] sm:$0xff]
        %v3208 = vld [vmem:[#allocation9 + $0x1628] sm:$0xff]
        %v3209 = vld [vmem:[#allocation9 + $0x1630] sm:$0xff]
        %v3210 = vld [vmem:[#allocation9 + $0x1638] sm:$0xff]
        %v3211 = vld [vmem:[#allocation9 + $0x1640] sm:$0xff]
        %v3212 = vld [vmem:[#allocation9 + $0x1648] sm:$0xff]
        %v3213 = vld [vmem:[#allocation9 + $0x1650] sm:$0xff]
        %v3214 = vld [vmem:[#allocation9 + $0x1658] sm:$0xff]
        %v3215 = vld [vmem:[#allocation9 + $0x1660] sm:$0xff]
        %v3216 = vld [vmem:[#allocation9 + $0x1668] sm:$0xff]
        %v3217 = vld [vmem:[#allocation9 + $0x1670] sm:$0xff]
        %v3218 = vld [vmem:[#allocation9 + $0x1678] sm:$0xff]
        %v3219 = vld [vmem:[#allocation9 + $0x1680] sm:$0xff]
        %v3220 = vld [vmem:[#allocation9 + $0x1688] sm:$0xff]
        %v3221 = vld [vmem:[#allocation9 + $0x1690] sm:$0xff]
        %v3222 = vld [vmem:[#allocation9 + $0x1698] sm:$0xff]
        %v3223 = vld [vmem:[#allocation9 + $0x16a0] sm:$0xff]
        %v3224 = vld [vmem:[#allocation9 + $0x16a8] sm:$0xff]
        %v3225 = vld [vmem:[#allocation9 + $0x16b0] sm:$0xff]
        %v3226 = vld [vmem:[#allocation9 + $0x16b8] sm:$0xff]
        %v3227 = vld [vmem:[#allocation9 + $0x16c0] sm:$0xff]
        %v3228 = vld [vmem:[#allocation9 + $0x16c8] sm:$0xff]
        %v3229 = vld [vmem:[#allocation9 + $0x16d0] sm:$0xff]
        %v3230 = vld [vmem:[#allocation9 + $0x16d8] sm:$0xff]
        %v3231 = vld [vmem:[#allocation9 + $0x16e0] sm:$0xff]
        %v3232 = vld [vmem:[#allocation9 + $0x16e8] sm:$0xff]
        %v3233 = vld [vmem:[#allocation9 + $0x16f0] sm:$0xff]
        %v3234 = vld [vmem:[#allocation9 + $0x16f8] sm:$0xff]
        %v3235 = vld [vmem:[#allocation9 + $0x1700] sm:$0xff]
        %v3236 = vld [vmem:[#allocation9 + $0x1708] sm:$0xff]
        %v3237 = vld [vmem:[#allocation9 + $0x1710] sm:$0xff]
        %v3238 = vld [vmem:[#allocation9 + $0x1718] sm:$0xff]
        %v3239 = vld [vmem:[#allocation9 + $0x1720] sm:$0xff]
        %v3240 = vld [vmem:[#allocation9 + $0x1728] sm:$0xff]
        %v3241 = vld [vmem:[#allocation9 + $0x1730] sm:$0xff]
        %v3242 = vld [vmem:[#allocation9 + $0x1738] sm:$0xff]
        %v3243 = vld [vmem:[#allocation9 + $0x1740] sm:$0xff]
        %v3244 = vld [vmem:[#allocation9 + $0x1748] sm:$0xff]
        %v3245 = vld [vmem:[#allocation9 + $0x1750] sm:$0xff]
        %v3246 = vld [vmem:[#allocation9 + $0x1758] sm:$0xff]
        %v3247 = vld [vmem:[#allocation9 + $0x1760] sm:$0xff]
        %v3248 = vld [vmem:[#allocation9 + $0x1768] sm:$0xff]
        %v3249 = vld [vmem:[#allocation9 + $0x1770] sm:$0xff]
        %v3250 = vld [vmem:[#allocation9 + $0x1778] sm:$0xff]
        %v3251 = vld [vmem:[#allocation9 + $0x1780] sm:$0xff]
        %v3252 = vld [vmem:[#allocation9 + $0x1788] sm:$0xff]
        %v3253 = vld [vmem:[#allocation9 + $0x1790] sm:$0xff]
        %v3254 = vld [vmem:[#allocation9 + $0x1798] sm:$0xff]
        %v3255 = vld [vmem:[#allocation9 + $0x17a0] sm:$0xff]
        %v3256 = vld [vmem:[#allocation9 + $0x17a8] sm:$0xff]
        %v3257 = vld [vmem:[#allocation9 + $0x17b0] sm:$0xff]
        %v3258 = vld [vmem:[#allocation9 + $0x17b8] sm:$0xff]
        %v3259 = vld [vmem:[#allocation9 + $0x17c0] sm:$0xff]
        %v3260 = vld [vmem:[#allocation9 + $0x17c8] sm:$0xff]
        %v3261 = vld [vmem:[#allocation9 + $0x17d0] sm:$0xff]
        %v3262 = vld [vmem:[#allocation9 + $0x17d8] sm:$0xff]
        %v3263 = vld [vmem:[#allocation9 + $0x17e0] sm:$0xff]
        %v3264 = vld [vmem:[#allocation9 + $0x17e8] sm:$0xff]
        %v3265 = vld [vmem:[#allocation9 + $0x17f0] sm:$0xff]
        %v3266 = vld [vmem:[#allocation9 + $0x17f8] sm:$0xff]
        %v3268 = vrot.slane %v1047, 2
        %3270 = vmatprep.subr.mxu0 %v3140
        %3271 = vmatpush1.msra.mxu0 %v3139
        %3272 = vmatprep.subr.mxu0 %v3148
        %3273 = vmatpush1.msra.mxu0 %v3147
        %3274 = vmatprep.subr.mxu0 %v3156
        %3275 = vmatpush1.msra.mxu0 %v3155
        %3276 = vmatprep.subr.mxu0 %v3164
        %3277 = vmatpush1.msra.mxu0 %v3163
        %3278 = vmatprep.subr.mxu0 %v3172
        %3279 = vmatpush1.msra.mxu0 %v3171
        %3280 = vmatprep.subr.mxu0 %v3180
        %3281 = vmatpush1.msra.mxu0 %v3179
        %3282 = vmatprep.subr.mxu0 %v3188
        %3283 = vmatpush1.msra.mxu0 %v3187
        %3284 = vmatprep.subr.mxu0 %v3196
        %3285 = vmatpush1.msra.mxu0 %v3195
        %3286 = vmatprep.subr.mxu0 %v3204
        %3287 = vmatpush1.msra.mxu0 %v3203
        %3288 = vmatprep.subr.mxu0 %v3212
        %3289 = vmatpush1.msra.mxu0 %v3211
        %3290 = vmatprep.subr.mxu0 %v3220
        %3291 = vmatpush1.msra.mxu0 %v3219
        %3292 = vmatprep.subr.mxu0 %v3228
        %3293 = vmatpush1.msra.mxu0 %v3227
        %3294 = vmatprep.subr.mxu0 %v3236
        %3295 = vmatpush1.msra.mxu0 %v3235
        %3296 = vmatprep.subr.mxu0 %v3244
        %3297 = vmatpush1.msra.mxu0 %v3243
        %3298 = vmatprep.subr.mxu0 %v3252
        %3299 = vmatpush1.msra.mxu0 %v3251
        %3300 = vmatprep.subr.mxu0 %v3260
        %3301 = vmatpush1.msra.mxu0 %v3259
        %3302 = vmatprep.subr.mxu0 0.0
        %3303 = vmatpush1.msra.mxu0 0.0
        %3304 = vmatprep.subr.mxu0 0.0
        %3305 = vmatpush1.msra.mxu0 0.0
        %3306 = vmatprep.subr.mxu0 0.0
        %3307 = vmatpush1.msra.mxu0 0.0
        %3308 = vmatprep.subr.mxu0 0.0
        %3309 = vmatpush1.msra.mxu0 0.0
        %3310 = vmatprep.subr.mxu0 0.0
        %3311 = vmatpush1.msra.mxu0 0.0
        %3312 = vmatprep.subr.mxu0 0.0
        %3313 = vmatpush1.msra.mxu0 0.0
        %3314 = vmatprep.subr.mxu0 0.0
        %3315 = vmatpush1.msra.mxu0 0.0
        %3316 = vmatprep.subr.mxu0 0.0
        %3317 = vmatpush1.msra.mxu0 0.0
        %3318 = vmatprep.subr.mxu0 0.0
        %3319 = vmatpush1.msra.mxu0 0.0
        %3320 = vmatprep.subr.mxu0 0.0
        %3321 = vmatpush1.msra.mxu0 0.0
        %3322 = vmatprep.subr.mxu0 0.0
        %3323 = vmatpush1.msra.mxu0 0.0
        %3324 = vmatprep.subr.mxu0 0.0
        %3325 = vmatpush1.msra.mxu0 0.0
        %3326 = vmatprep.subr.mxu0 0.0
        %3327 = vmatpush1.msra.mxu0 0.0
        %3328 = vmatprep.subr.mxu0 0.0
        %3329 = vmatpush1.msra.mxu0 0.0
        %3330 = vmatprep.subr.mxu0 0.0
        %3331 = vmatpush1.msra.mxu0 0.0
        %3332 = vmatprep.subr.mxu0 0.0
        %3333 = vmatpush1.msra.mxu0 0.0
        %3334 = vmatprep.mubr.f32.mxu0 0.0
        %3335 = vmatmul.mubr.f32.gmra.mrb[0].mxu0 %v3268
        %v3336 = vpop.f32.mrb[0].mxu0
        %v3337 = vadd.f32 0.0, %v3336
        %v3338 = vpop.f32.mrb[0].mxu0
        %v3339 = vadd.f32 0.0, %v3338
        %3340 = vdwg.mxu0
        %3341 = vmatprep.subr.mxu0 %v3142
        %3342 = vmatpush1.msra.mxu0 %v3141
        %3343 = vmatprep.subr.mxu0 %v3150
        %3344 = vmatpush1.msra.mxu0 %v3149
        %3345 = vmatprep.subr.mxu0 %v3158
        %3346 = vmatpush1.msra.mxu0 %v3157
        %3347 = vmatprep.subr.mxu0 %v3166
        %3348 = vmatpush1.msra.mxu0 %v3165
        %3349 = vmatprep.subr.mxu0 %v3174
        %3350 = vmatpush1.msra.mxu0 %v3173
        %3351 = vmatprep.subr.mxu0 %v3182
        %3352 = vmatpush1.msra.mxu0 %v3181
        %3353 = vmatprep.subr.mxu0 %v3190
        %3354 = vmatpush1.msra.mxu0 %v3189
        %3355 = vmatprep.subr.mxu0 %v3198
        %3356 = vmatpush1.msra.mxu0 %v3197
        %3357 = vmatprep.subr.mxu0 %v3206
        %3358 = vmatpush1.msra.mxu0 %v3205
        %3359 = vmatprep.subr.mxu0 %v3214
        %3360 = vmatpush1.msra.mxu0 %v3213
        %3361 = vmatprep.subr.mxu0 %v3222
        %3362 = vmatpush1.msra.mxu0 %v3221
        %3363 = vmatprep.subr.mxu0 %v3230
        %3364 = vmatpush1.msra.mxu0 %v3229
        %3365 = vmatprep.subr.mxu0 %v3238
        %3366 = vmatpush1.msra.mxu0 %v3237
        %3367 = vmatprep.subr.mxu0 %v3246
        %3368 = vmatpush1.msra.mxu0 %v3245
        %3369 = vmatprep.subr.mxu0 %v3254
        %3370 = vmatpush1.msra.mxu0 %v3253
        %3371 = vmatprep.subr.mxu0 %v3262
        %3372 = vmatpush1.msra.mxu0 %v3261
        %3373 = vmatprep.subr.mxu0 0.0
        %3374 = vmatpush1.msra.mxu0 0.0
        %3375 = vmatprep.subr.mxu0 0.0
        %3376 = vmatpush1.msra.mxu0 0.0
        %3377 = vmatprep.subr.mxu0 0.0
        %3378 = vmatpush1.msra.mxu0 0.0
        %3379 = vmatprep.subr.mxu0 0.0
        %3380 = vmatpush1.msra.mxu0 0.0
        %3381 = vmatprep.subr.mxu0 0.0
        %3382 = vmatpush1.msra.mxu0 0.0
        %3383 = vmatprep.subr.mxu0 0.0
        %3384 = vmatpush1.msra.mxu0 0.0
        %3385 = vmatprep.subr.mxu0 0.0
        %3386 = vmatpush1.msra.mxu0 0.0
        %3387 = vmatprep.subr.mxu0 0.0
        %3388 = vmatpush1.msra.mxu0 0.0
        %3389 = vmatprep.subr.mxu0 0.0
        %3390 = vmatpush1.msra.mxu0 0.0
        %3391 = vmatprep.subr.mxu0 0.0
        %3392 = vmatpush1.msra.mxu0 0.0
        %3393 = vmatprep.subr.mxu0 0.0
        %3394 = vmatpush1.msra.mxu0 0.0
        %3395 = vmatprep.subr.mxu0 0.0
        %3396 = vmatpush1.msra.mxu0 0.0
        %3397 = vmatprep.subr.mxu0 0.0
        %3398 = vmatpush1.msra.mxu0 0.0
        %3399 = vmatprep.subr.mxu0 0.0
        %3400 = vmatpush1.msra.mxu0 0.0
        %3401 = vmatprep.subr.mxu0 0.0
        %3402 = vmatpush1.msra.mxu0 0.0
        %3403 = vmatprep.subr.mxu0 0.0
        %3404 = vmatpush1.msra.mxu0 0.0
        %3405 = vmatprep.mubr.f32.mxu0 0.0
        %3406 = vmatmul.mubr.f32.gmra.mrb[0].mxu0 %v3268
        %v3407 = vpop.f32.mrb[0].mxu0
        %v3408 = vadd.f32 0.0, %v3407
        %v3409 = vpop.f32.mrb[0].mxu0
        %v3410 = vadd.f32 0.0, %v3409
        %3411 = vdwg.mxu0
        %3412 = vmatprep.subr.mxu0 %v3144
        %3413 = vmatpush1.msra.mxu0 %v3143
        %3414 = vmatprep.subr.mxu0 %v3152
        %3415 = vmatpush1.msra.mxu0 %v3151
        %3416 = vmatprep.subr.mxu0 %v3160
        %3417 = vmatpush1.msra.mxu0 %v3159
        %3418 = vmatprep.subr.mxu0 %v3168
        %3419 = vmatpush1.msra.mxu0 %v3167
        %3420 = vmatprep.subr.mxu0 %v3176
        %3421 = vmatpush1.msra.mxu0 %v3175
        %3422 = vmatprep.subr.mxu0 %v3184
        %3423 = vmatpush1.msra.mxu0 %v3183
        %3424 = vmatprep.subr.mxu0 %v3192
        %3425 = vmatpush1.msra.mxu0 %v3191
        %3426 = vmatprep.subr.mxu0 %v3200
        %3427 = vmatpush1.msra.mxu0 %v3199
        %3428 = vmatprep.subr.mxu0 %v3208
        %3429 = vmatpush1.msra.mxu0 %v3207
        %3430 = vmatprep.subr.mxu0 %v3216
        %3431 = vmatpush1.msra.mxu0 %v3215
        %3432 = vmatprep.subr.mxu0 %v3224
        %3433 = vmatpush1.msra.mxu0 %v3223
        %3434 = vmatprep.subr.mxu0 %v3232
        %3435 = vmatpush1.msra.mxu0 %v3231
        %3436 = vmatprep.subr.mxu0 %v3240
        %3437 = vmatpush1.msra.mxu0 %v3239
        %3438 = vmatprep.subr.mxu0 %v3248
        %3439 = vmatpush1.msra.mxu0 %v3247
        %3440 = vmatprep.subr.mxu0 %v3256
        %3441 = vmatpush1.msra.mxu0 %v3255
        %3442 = vmatprep.subr.mxu0 %v3264
        %3443 = vmatpush1.msra.mxu0 %v3263
        %3444 = vmatprep.subr.mxu0 0.0
        %3445 = vmatpush1.msra.mxu0 0.0
        %3446 = vmatprep.subr.mxu0 0.0
        %3447 = vmatpush1.msra.mxu0 0.0
        %3448 = vmatprep.subr.mxu0 0.0
        %3449 = vmatpush1.msra.mxu0 0.0
        %3450 = vmatprep.subr.mxu0 0.0
        %3451 = vmatpush1.msra.mxu0 0.0
        %3452 = vmatprep.subr.mxu0 0.0
        %3453 = vmatpush1.msra.mxu0 0.0
        %3454 = vmatprep.subr.mxu0 0.0
        %3455 = vmatpush1.msra.mxu0 0.0
        %3456 = vmatprep.subr.mxu0 0.0
        %3457 = vmatpush1.msra.mxu0 0.0
        %3458 = vmatprep.subr.mxu0 0.0
        %3459 = vmatpush1.msra.mxu0 0.0
        %3460 = vmatprep.subr.mxu0 0.0
        %3461 = vmatpush1.msra.mxu0 0.0
        %3462 = vmatprep.subr.mxu0 0.0
        %3463 = vmatpush1.msra.mxu0 0.0
        %3464 = vmatprep.subr.mxu0 0.0
        %3465 = vmatpush1.msra.mxu0 0.0
        %3466 = vmatprep.subr.mxu0 0.0
        %3467 = vmatpush1.msra.mxu0 0.0
        %3468 = vmatprep.subr.mxu0 0.0
        %3469 = vmatpush1.msra.mxu0 0.0
        %3470 = vmatprep.subr.mxu0 0.0
        %3471 = vmatpush1.msra.mxu0 0.0
        %3472 = vmatprep.subr.mxu0 0.0
        %3473 = vmatpush1.msra.mxu0 0.0
        %3474 = vmatprep.subr.mxu0 0.0
        %3475 = vmatpush1.msra.mxu0 0.0
        %3476 = vmatprep.mubr.f32.mxu0 0.0
        %3477 = vmatmul.mubr.f32.gmra.mrb[0].mxu0 %v3268
        %v3478 = vpop.f32.mrb[0].mxu0
        %v3479 = vadd.f32 0.0, %v3478
        %v3480 = vpop.f32.mrb[0].mxu0
        %v3481 = vadd.f32 0.0, %v3480
        %3482 = vdwg.mxu0
        %3483 = vmatprep.subr.mxu0 %v3146
        %3484 = vmatpush1.msra.mxu0 %v3145
        %3485 = vmatprep.subr.mxu0 %v3154
        %3486 = vmatpush1.msra.mxu0 %v3153
        %3487 = vmatprep.subr.mxu0 %v3162
        %3488 = vmatpush1.msra.mxu0 %v3161
        %3489 = vmatprep.subr.mxu0 %v3170
        %3490 = vmatpush1.msra.mxu0 %v3169
        %3491 = vmatprep.subr.mxu0 %v3178
        %3492 = vmatpush1.msra.mxu0 %v3177
        %3493 = vmatprep.subr.mxu0 %v3186
        %3494 = vmatpush1.msra.mxu0 %v3185
        %3495 = vmatprep.subr.mxu0 %v3194
        %3496 = vmatpush1.msra.mxu0 %v3193
        %3497 = vmatprep.subr.mxu0 %v3202
        %3498 = vmatpush1.msra.mxu0 %v3201
        %3499 = vmatprep.subr.mxu0 %v3210
        %3500 = vmatpush1.msra.mxu0 %v3209
        %3501 = vmatprep.subr.mxu0 %v3218
        %3502 = vmatpush1.msra.mxu0 %v3217
        %3503 = vmatprep.subr.mxu0 %v3226
        %3504 = vmatpush1.msra.mxu0 %v3225
        %3505 = vmatprep.subr.mxu0 %v3234
        %3506 = vmatpush1.msra.mxu0 %v3233
        %3507 = vmatprep.subr.mxu0 %v3242
        %3508 = vmatpush1.msra.mxu0 %v3241
        %3509 = vmatprep.subr.mxu0 %v3250
        %3510 = vmatpush1.msra.mxu0 %v3249
        %3511 = vmatprep.subr.mxu0 %v3258
        %3512 = vmatpush1.msra.mxu0 %v3257
        %3513 = vmatprep.subr.mxu0 %v3266
        %3514 = vmatpush1.msra.mxu0 %v3265
        %3515 = vmatprep.subr.mxu0 0.0
        %3516 = vmatpush1.msra.mxu0 0.0
        %3517 = vmatprep.subr.mxu0 0.0
        %3518 = vmatpush1.msra.mxu0 0.0
        %3519 = vmatprep.subr.mxu0 0.0
        %3520 = vmatpush1.msra.mxu0 0.0
        %3521 = vmatprep.subr.mxu0 0.0
        %3522 = vmatpush1.msra.mxu0 0.0
        %3523 = vmatprep.subr.mxu0 0.0
        %3524 = vmatpush1.msra.mxu0 0.0
        %3525 = vmatprep.subr.mxu0 0.0
        %3526 = vmatpush1.msra.mxu0 0.0
        %3527 = vmatprep.subr.mxu0 0.0
        %3528 = vmatpush1.msra.mxu0 0.0
        %3529 = vmatprep.subr.mxu0 0.0
        %3530 = vmatpush1.msra.mxu0 0.0
        %3531 = vmatprep.subr.mxu0 0.0
        %3532 = vmatpush1.msra.mxu0 0.0
        %3533 = vmatprep.subr.mxu0 0.0
        %3534 = vmatpush1.msra.mxu0 0.0
        %3535 = vmatprep.subr.mxu0 0.0
        %3536 = vmatpush1.msra.mxu0 0.0
        %3537 = vmatprep.subr.mxu0 0.0
        %3538 = vmatpush1.msra.mxu0 0.0
        %3539 = vmatprep.subr.mxu0 0.0
        %3540 = vmatpush1.msra.mxu0 0.0
        %3541 = vmatprep.subr.mxu0 0.0
        %3542 = vmatpush1.msra.mxu0 0.0
        %3543 = vmatprep.subr.mxu0 0.0
        %3544 = vmatpush1.msra.mxu0 0.0
        %3545 = vmatprep.subr.mxu0 0.0
        %3546 = vmatpush1.msra.mxu0 0.0
        %3547 = vmatprep.mubr.f32.mxu0 0.0
        %3548 = vmatmul.mubr.f32.gmra.mrb[0].mxu0 %v3268
        %v3549 = vpop.f32.mrb[0].mxu0
        %v3550 = vadd.f32 0.0, %v3549
        %v3551 = vpop.f32.mrb[0].mxu0
        %v3552 = vadd.f32 0.0, %v3551
        %3553 = vdwg.mxu0
        %v3554 = vadd.f32 %v3131, %v3337
        %v3555 = vadd.f32 %v3132, %v3339
        %v3556 = vadd.f32 %v3133, %v3408
        %v3557 = vadd.f32 %v3134, %v3410
        %v3558 = vadd.f32 %v3135, %v3479
        %v3559 = vadd.f32 %v3136, %v3481
        %v3560 = vadd.f32 %v3137, %v3550
        %v3561 = vadd.f32 %v3138, %v3552
        %v3562 = vld [vmem:[#allocation9 + $0x1800] sm:$0xff]
        %v3563 = vld [vmem:[#allocation9 + $0x1808] sm:$0xff]
        %v3564 = vld [vmem:[#allocation9 + $0x1810] sm:$0xff]
        %v3565 = vld [vmem:[#allocation9 + $0x1818] sm:$0xff]
        %v3566 = vld [vmem:[#allocation9 + $0x1820] sm:$0xff]
        %v3567 = vld [vmem:[#allocation9 + $0x1828] sm:$0xff]
        %v3568 = vld [vmem:[#allocation9 + $0x1830] sm:$0xff]
        %v3569 = vld [vmem:[#allocation9 + $0x1838] sm:$0xff]
        %v3570 = vld [vmem:[#allocation9 + $0x1840] sm:$0xff]
        %v3571 = vld [vmem:[#allocation9 + $0x1848] sm:$0xff]
        %v3572 = vld [vmem:[#allocation9 + $0x1850] sm:$0xff]
        %v3573 = vld [vmem:[#allocation9 + $0x1858] sm:$0xff]
        %v3574 = vld [vmem:[#allocation9 + $0x1860] sm:$0xff]
        %v3575 = vld [vmem:[#allocation9 + $0x1868] sm:$0xff]
        %v3576 = vld [vmem:[#allocation9 + $0x1870] sm:$0xff]
        %v3577 = vld [vmem:[#allocation9 + $0x1878] sm:$0xff]
        %v3578 = vld [vmem:[#allocation9 + $0x1880] sm:$0xff]
        %v3579 = vld [vmem:[#allocation9 + $0x1888] sm:$0xff]
        %v3580 = vld [vmem:[#allocation9 + $0x1890] sm:$0xff]
        %v3581 = vld [vmem:[#allocation9 + $0x1898] sm:$0xff]
        %v3582 = vld [vmem:[#allocation9 + $0x18a0] sm:$0xff]
        %v3583 = vld [vmem:[#allocation9 + $0x18a8] sm:$0xff]
        %v3584 = vld [vmem:[#allocation9 + $0x18b0] sm:$0xff]
        %v3585 = vld [vmem:[#allocation9 + $0x18b8] sm:$0xff]
        %v3586 = vld [vmem:[#allocation9 + $0x18c0] sm:$0xff]
        %v3587 = vld [vmem:[#allocation9 + $0x18c8] sm:$0xff]
        %v3588 = vld [vmem:[#allocation9 + $0x18d0] sm:$0xff]
        %v3589 = vld [vmem:[#allocation9 + $0x18d8] sm:$0xff]
        %v3590 = vld [vmem:[#allocation9 + $0x18e0] sm:$0xff]
        %v3591 = vld [vmem:[#allocation9 + $0x18e8] sm:$0xff]
        %v3592 = vld [vmem:[#allocation9 + $0x18f0] sm:$0xff]
        %v3593 = vld [vmem:[#allocation9 + $0x18f8] sm:$0xff]
        %v3594 = vld [vmem:[#allocation9 + $0x1900] sm:$0xff]
        %v3595 = vld [vmem:[#allocation9 + $0x1908] sm:$0xff]
        %v3596 = vld [vmem:[#allocation9 + $0x1910] sm:$0xff]
        %v3597 = vld [vmem:[#allocation9 + $0x1918] sm:$0xff]
        %v3598 = vld [vmem:[#allocation9 + $0x1920] sm:$0xff]
        %v3599 = vld [vmem:[#allocation9 + $0x1928] sm:$0xff]
        %v3600 = vld [vmem:[#allocation9 + $0x1930] sm:$0xff]
        %v3601 = vld [vmem:[#allocation9 + $0x1938] sm:$0xff]
        %v3602 = vld [vmem:[#allocation9 + $0x1940] sm:$0xff]
        %v3603 = vld [vmem:[#allocation9 + $0x1948] sm:$0xff]
        %v3604 = vld [vmem:[#allocation9 + $0x1950] sm:$0xff]
        %v3605 = vld [vmem:[#allocation9 + $0x1958] sm:$0xff]
        %v3606 = vld [vmem:[#allocation9 + $0x1960] sm:$0xff]
        %v3607 = vld [vmem:[#allocation9 + $0x1968] sm:$0xff]
        %v3608 = vld [vmem:[#allocation9 + $0x1970] sm:$0xff]
        %v3609 = vld [vmem:[#allocation9 + $0x1978] sm:$0xff]
        %v3610 = vld [vmem:[#allocation9 + $0x1980] sm:$0xff]
        %v3611 = vld [vmem:[#allocation9 + $0x1988] sm:$0xff]
        %v3612 = vld [vmem:[#allocation9 + $0x1990] sm:$0xff]
        %v3613 = vld [vmem:[#allocation9 + $0x1998] sm:$0xff]
        %v3614 = vld [vmem:[#allocation9 + $0x19a0] sm:$0xff]
        %v3615 = vld [vmem:[#allocation9 + $0x19a8] sm:$0xff]
        %v3616 = vld [vmem:[#allocation9 + $0x19b0] sm:$0xff]
        %v3617 = vld [vmem:[#allocation9 + $0x19b8] sm:$0xff]
        %v3618 = vld [vmem:[#allocation9 + $0x19c0] sm:$0xff]
        %v3619 = vld [vmem:[#allocation9 + $0x19c8] sm:$0xff]
        %v3620 = vld [vmem:[#allocation9 + $0x19d0] sm:$0xff]
        %v3621 = vld [vmem:[#allocation9 + $0x19d8] sm:$0xff]
        %v3622 = vld [vmem:[#allocation9 + $0x19e0] sm:$0xff]
        %v3623 = vld [vmem:[#allocation9 + $0x19e8] sm:$0xff]
        %v3624 = vld [vmem:[#allocation9 + $0x19f0] sm:$0xff]
        %v3625 = vld [vmem:[#allocation9 + $0x19f8] sm:$0xff]
        %v3626 = vld [vmem:[#allocation9 + $0x1a00] sm:$0xff]
        %v3627 = vld [vmem:[#allocation9 + $0x1a08] sm:$0xff]
        %v3628 = vld [vmem:[#allocation9 + $0x1a10] sm:$0xff]
        %v3629 = vld [vmem:[#allocation9 + $0x1a18] sm:$0xff]
        %v3630 = vld [vmem:[#allocation9 + $0x1a20] sm:$0xff]
        %v3631 = vld [vmem:[#allocation9 + $0x1a28] sm:$0xff]
        %v3632 = vld [vmem:[#allocation9 + $0x1a30] sm:$0xff]
        %v3633 = vld [vmem:[#allocation9 + $0x1a38] sm:$0xff]
        %v3634 = vld [vmem:[#allocation9 + $0x1a40] sm:$0xff]
        %v3635 = vld [vmem:[#allocation9 + $0x1a48] sm:$0xff]
        %v3636 = vld [vmem:[#allocation9 + $0x1a50] sm:$0xff]
        %v3637 = vld [vmem:[#allocation9 + $0x1a58] sm:$0xff]
        %v3638 = vld [vmem:[#allocation9 + $0x1a60] sm:$0xff]
        %v3639 = vld [vmem:[#allocation9 + $0x1a68] sm:$0xff]
        %v3640 = vld [vmem:[#allocation9 + $0x1a70] sm:$0xff]
        %v3641 = vld [vmem:[#allocation9 + $0x1a78] sm:$0xff]
        %v3642 = vld [vmem:[#allocation9 + $0x1a80] sm:$0xff]
        %v3643 = vld [vmem:[#allocation9 + $0x1a88] sm:$0xff]
        %v3644 = vld [vmem:[#allocation9 + $0x1a90] sm:$0xff]
        %v3645 = vld [vmem:[#allocation9 + $0x1a98] sm:$0xff]
        %v3646 = vld [vmem:[#allocation9 + $0x1aa0] sm:$0xff]
        %v3647 = vld [vmem:[#allocation9 + $0x1aa8] sm:$0xff]
        %v3648 = vld [vmem:[#allocation9 + $0x1ab0] sm:$0xff]
        %v3649 = vld [vmem:[#allocation9 + $0x1ab8] sm:$0xff]
        %v3650 = vld [vmem:[#allocation9 + $0x1ac0] sm:$0xff]
        %v3651 = vld [vmem:[#allocation9 + $0x1ac8] sm:$0xff]
        %v3652 = vld [vmem:[#allocation9 + $0x1ad0] sm:$0xff]
        %v3653 = vld [vmem:[#allocation9 + $0x1ad8] sm:$0xff]
        %v3654 = vld [vmem:[#allocation9 + $0x1ae0] sm:$0xff]
        %v3655 = vld [vmem:[#allocation9 + $0x1ae8] sm:$0xff]
        %v3656 = vld [vmem:[#allocation9 + $0x1af0] sm:$0xff]
        %v3657 = vld [vmem:[#allocation9 + $0x1af8] sm:$0xff]
        %v3658 = vld [vmem:[#allocation9 + $0x1b00] sm:$0xff]
        %v3659 = vld [vmem:[#allocation9 + $0x1b08] sm:$0xff]
        %v3660 = vld [vmem:[#allocation9 + $0x1b10] sm:$0xff]
        %v3661 = vld [vmem:[#allocation9 + $0x1b18] sm:$0xff]
        %v3662 = vld [vmem:[#allocation9 + $0x1b20] sm:$0xff]
        %v3663 = vld [vmem:[#allocation9 + $0x1b28] sm:$0xff]
        %v3664 = vld [vmem:[#allocation9 + $0x1b30] sm:$0xff]
        %v3665 = vld [vmem:[#allocation9 + $0x1b38] sm:$0xff]
        %v3666 = vld [vmem:[#allocation9 + $0x1b40] sm:$0xff]
        %v3667 = vld [vmem:[#allocation9 + $0x1b48] sm:$0xff]
        %v3668 = vld [vmem:[#allocation9 + $0x1b50] sm:$0xff]
        %v3669 = vld [vmem:[#allocation9 + $0x1b58] sm:$0xff]
        %v3670 = vld [vmem:[#allocation9 + $0x1b60] sm:$0xff]
        %v3671 = vld [vmem:[#allocation9 + $0x1b68] sm:$0xff]
        %v3672 = vld [vmem:[#allocation9 + $0x1b70] sm:$0xff]
        %v3673 = vld [vmem:[#allocation9 + $0x1b78] sm:$0xff]
        %v3674 = vld [vmem:[#allocation9 + $0x1b80] sm:$0xff]
        %v3675 = vld [vmem:[#allocation9 + $0x1b88] sm:$0xff]
        %v3676 = vld [vmem:[#allocation9 + $0x1b90] sm:$0xff]
        %v3677 = vld [vmem:[#allocation9 + $0x1b98] sm:$0xff]
        %v3678 = vld [vmem:[#allocation9 + $0x1ba0] sm:$0xff]
        %v3679 = vld [vmem:[#allocation9 + $0x1ba8] sm:$0xff]
        %v3680 = vld [vmem:[#allocation9 + $0x1bb0] sm:$0xff]
        %v3681 = vld [vmem:[#allocation9 + $0x1bb8] sm:$0xff]
        %v3682 = vld [vmem:[#allocation9 + $0x1bc0] sm:$0xff]
        %v3683 = vld [vmem:[#allocation9 + $0x1bc8] sm:$0xff]
        %v3684 = vld [vmem:[#allocation9 + $0x1bd0] sm:$0xff]
        %v3685 = vld [vmem:[#allocation9 + $0x1bd8] sm:$0xff]
        %v3686 = vld [vmem:[#allocation9 + $0x1be0] sm:$0xff]
        %v3687 = vld [vmem:[#allocation9 + $0x1be8] sm:$0xff]
        %v3688 = vld [vmem:[#allocation9 + $0x1bf0] sm:$0xff]
        %v3689 = vld [vmem:[#allocation9 + $0x1bf8] sm:$0xff]
        %v3690 = vrot.slane %v1047, 4
        %3692 = vmatprep.subr.mxu0 %v3563
        %3693 = vmatpush1.msra.mxu0 %v3562
        %3694 = vmatprep.subr.mxu0 %v3571
        %3695 = vmatpush1.msra.mxu0 %v3570
        %3696 = vmatprep.subr.mxu0 %v3579
        %3697 = vmatpush1.msra.mxu0 %v3578
        %3698 = vmatprep.subr.mxu0 %v3587
        %3699 = vmatpush1.msra.mxu0 %v3586
        %3700 = vmatprep.subr.mxu0 %v3595
        %3701 = vmatpush1.msra.mxu0 %v3594
        %3702 = vmatprep.subr.mxu0 %v3603
        %3703 = vmatpush1.msra.mxu0 %v3602
        %3704 = vmatprep.subr.mxu0 %v3611
        %3705 = vmatpush1.msra.mxu0 %v3610
        %3706 = vmatprep.subr.mxu0 %v3619
        %3707 = vmatpush1.msra.mxu0 %v3618
        %3708 = vmatprep.subr.mxu0 %v3627
        %3709 = vmatpush1.msra.mxu0 %v3626
        %3710 = vmatprep.subr.mxu0 %v3635
        %3711 = vmatpush1.msra.mxu0 %v3634
        %3712 = vmatprep.subr.mxu0 %v3643
        %3713 = vmatpush1.msra.mxu0 %v3642
        %3714 = vmatprep.subr.mxu0 %v3651
        %3715 = vmatpush1.msra.mxu0 %v3650
        %3716 = vmatprep.subr.mxu0 %v3659
        %3717 = vmatpush1.msra.mxu0 %v3658
        %3718 = vmatprep.subr.mxu0 %v3667
        %3719 = vmatpush1.msra.mxu0 %v3666
        %3720 = vmatprep.subr.mxu0 %v3675
        %3721 = vmatpush1.msra.mxu0 %v3674
        %3722 = vmatprep.subr.mxu0 %v3683
        %3723 = vmatpush1.msra.mxu0 %v3682
        %3724 = vmatprep.subr.mxu0 0.0
        %3725 = vmatpush1.msra.mxu0 0.0
        %3726 = vmatprep.subr.mxu0 0.0
        %3727 = vmatpush1.msra.mxu0 0.0
        %3728 = vmatprep.subr.mxu0 0.0
        %3729 = vmatpush1.msra.mxu0 0.0
        %3730 = vmatprep.subr.mxu0 0.0
        %3731 = vmatpush1.msra.mxu0 0.0
        %3732 = vmatprep.subr.mxu0 0.0
        %3733 = vmatpush1.msra.mxu0 0.0
        %3734 = vmatprep.subr.mxu0 0.0
        %3735 = vmatpush1.msra.mxu0 0.0
        %3736 = vmatprep.subr.mxu0 0.0
        %3737 = vmatpush1.msra.mxu0 0.0
        %3738 = vmatprep.subr.mxu0 0.0
        %3739 = vmatpush1.msra.mxu0 0.0
        %3740 = vmatprep.subr.mxu0 0.0
        %3741 = vmatpush1.msra.mxu0 0.0
        %3742 = vmatprep.subr.mxu0 0.0
        %3743 = vmatpush1.msra.mxu0 0.0
        %3744 = vmatprep.subr.mxu0 0.0
        %3745 = vmatpush1.msra.mxu0 0.0
        %3746 = vmatprep.subr.mxu0 0.0
        %3747 = vmatpush1.msra.mxu0 0.0
        %3748 = vmatprep.subr.mxu0 0.0
        %3749 = vmatpush1.msra.mxu0 0.0
        %3750 = vmatprep.subr.mxu0 0.0
        %3751 = vmatpush1.msra.mxu0 0.0
        %3752 = vmatprep.subr.mxu0 0.0
        %3753 = vmatpush1.msra.mxu0 0.0
        %3754 = vmatprep.subr.mxu0 0.0
        %3755 = vmatpush1.msra.mxu0 0.0
        %3756 = vmatprep.mubr.f32.mxu0 0.0
        %3757 = vmatmul.mubr.f32.gmra.mrb[0].mxu0 %v3690
        %v3758 = vpop.f32.mrb[0].mxu0
        %v3759 = vadd.f32 0.0, %v3758
        %v3760 = vpop.f32.mrb[0].mxu0
        %v3761 = vadd.f32 0.0, %v3760
        %3762 = vdwg.mxu0
        %3763 = vmatprep.subr.mxu0 %v3565
        %3764 = vmatpush1.msra.mxu0 %v3564
        %3765 = vmatprep.subr.mxu0 %v3573
        %3766 = vmatpush1.msra.mxu0 %v3572
        %3767 = vmatprep.subr.mxu0 %v3581
        %3768 = vmatpush1.msra.mxu0 %v3580
        %3769 = vmatprep.subr.mxu0 %v3589
        %3770 = vmatpush1.msra.mxu0 %v3588
        %3771 = vmatprep.subr.mxu0 %v3597
        %3772 = vmatpush1.msra.mxu0 %v3596
        %3773 = vmatprep.subr.mxu0 %v3605
        %3774 = vmatpush1.msra.mxu0 %v3604
        %3775 = vmatprep.subr.mxu0 %v3613
        %3776 = vmatpush1.msra.mxu0 %v3612
        %3777 = vmatprep.subr.mxu0 %v3621
        %3778 = vmatpush1.msra.mxu0 %v3620
        %3779 = vmatprep.subr.mxu0 %v3629
        %3780 = vmatpush1.msra.mxu0 %v3628
        %3781 = vmatprep.subr.mxu0 %v3637
        %3782 = vmatpush1.msra.mxu0 %v3636
        %3783 = vmatprep.subr.mxu0 %v3645
        %3784 = vmatpush1.msra.mxu0 %v3644
        %3785 = vmatprep.subr.mxu0 %v3653
        %3786 = vmatpush1.msra.mxu0 %v3652
        %3787 = vmatprep.subr.mxu0 %v3661
        %3788 = vmatpush1.msra.mxu0 %v3660
        %3789 = vmatprep.subr.mxu0 %v3669
        %3790 = vmatpush1.msra.mxu0 %v3668
        %3791 = vmatprep.subr.mxu0 %v3677
        %3792 = vmatpush1.msra.mxu0 %v3676
        %3793 = vmatprep.subr.mxu0 %v3685
        %3794 = vmatpush1.msra.mxu0 %v3684
        %3795 = vmatprep.subr.mxu0 0.0
        %3796 = vmatpush1.msra.mxu0 0.0
        %3797 = vmatprep.subr.mxu0 0.0
        %3798 = vmatpush1.msra.mxu0 0.0
        %3799 = vmatprep.subr.mxu0 0.0
        %3800 = vmatpush1.msra.mxu0 0.0
        %3801 = vmatprep.subr.mxu0 0.0
        %3802 = vmatpush1.msra.mxu0 0.0
        %3803 = vmatprep.subr.mxu0 0.0
        %3804 = vmatpush1.msra.mxu0 0.0
        %3805 = vmatprep.subr.mxu0 0.0
        %3806 = vmatpush1.msra.mxu0 0.0
        %3807 = vmatprep.subr.mxu0 0.0
        %3808 = vmatpush1.msra.mxu0 0.0
        %3809 = vmatprep.subr.mxu0 0.0
        %3810 = vmatpush1.msra.mxu0 0.0
        %3811 = vmatprep.subr.mxu0 0.0
        %3812 = vmatpush1.msra.mxu0 0.0
        %3813 = vmatprep.subr.mxu0 0.0
        %3814 = vmatpush1.msra.mxu0 0.0
        %3815 = vmatprep.subr.mxu0 0.0
        %3816 = vmatpush1.msra.mxu0 0.0
        %3817 = vmatprep.subr.mxu0 0.0
        %3818 = vmatpush1.msra.mxu0 0.0
        %3819 = vmatprep.subr.mxu0 0.0
        %3820 = vmatpush1.msra.mxu0 0.0
        %3821 = vmatprep.subr.mxu0 0.0
        %3822 = vmatpush1.msra.mxu0 0.0
        %3823 = vmatprep.subr.mxu0 0.0
        %3824 = vmatpush1.msra.mxu0 0.0
        %3825 = vmatprep.subr.mxu0 0.0
        %3826 = vmatpush1.msra.mxu0 0.0
        %3827 = vmatprep.mubr.f32.mxu0 0.0
        %3828 = vmatmul.mubr.f32.gmra.mrb[0].mxu0 %v3690
        %v3829 = vpop.f32.mrb[0].mxu0
        %v3830 = vadd.f32 0.0, %v3829
        %v3831 = vpop.f32.mrb[0].mxu0
        %v3832 = vadd.f32 0.0, %v3831
        %3833 = vdwg.mxu0
        %3834 = vmatprep.subr.mxu0 %v3567
        %3835 = vmatpush1.msra.mxu0 %v3566
        %3836 = vmatprep.subr.mxu0 %v3575
        %3837 = vmatpush1.msra.mxu0 %v3574
        %3838 = vmatprep.subr.mxu0 %v3583
        %3839 = vmatpush1.msra.mxu0 %v3582
        %3840 = vmatprep.subr.mxu0 %v3591
        %3841 = vmatpush1.msra.mxu0 %v3590
        %3842 = vmatprep.subr.mxu0 %v3599
        %3843 = vmatpush1.msra.mxu0 %v3598
        %3844 = vmatprep.subr.mxu0 %v3607
        %3845 = vmatpush1.msra.mxu0 %v3606
        %3846 = vmatprep.subr.mxu0 %v3615
        %3847 = vmatpush1.msra.mxu0 %v3614
        %3848 = vmatprep.subr.mxu0 %v3623
        %3849 = vmatpush1.msra.mxu0 %v3622
        %3850 = vmatprep.subr.mxu0 %v3631
        %3851 = vmatpush1.msra.mxu0 %v3630
        %3852 = vmatprep.subr.mxu0 %v3639
        %3853 = vmatpush1.msra.mxu0 %v3638
        %3854 = vmatprep.subr.mxu0 %v3647
        %3855 = vmatpush1.msra.mxu0 %v3646
        %3856 = vmatprep.subr.mxu0 %v3655
        %3857 = vmatpush1.msra.mxu0 %v3654
        %3858 = vmatprep.subr.mxu0 %v3663
        %3859 = vmatpush1.msra.mxu0 %v3662
        %3860 = vmatprep.subr.mxu0 %v3671
        %3861 = vmatpush1.msra.mxu0 %v3670
        %3862 = vmatprep.subr.mxu0 %v3679
        %3863 = vmatpush1.msra.mxu0 %v3678
        %3864 = vmatprep.subr.mxu0 %v3687
        %3865 = vmatpush1.msra.mxu0 %v3686
        %3866 = vmatprep.subr.mxu0 0.0
        %3867 = vmatpush1.msra.mxu0 0.0
        %3868 = vmatprep.subr.mxu0 0.0
        %3869 = vmatpush1.msra.mxu0 0.0
        %3870 = vmatprep.subr.mxu0 0.0
        %3871 = vmatpush1.msra.mxu0 0.0
        %3872 = vmatprep.subr.mxu0 0.0
        %3873 = vmatpush1.msra.mxu0 0.0
        %3874 = vmatprep.subr.mxu0 0.0
        %3875 = vmatpush1.msra.mxu0 0.0
        %3876 = vmatprep.subr.mxu0 0.0
        %3877 = vmatpush1.msra.mxu0 0.0
        %3878 = vmatprep.subr.mxu0 0.0
        %3879 = vmatpush1.msra.mxu0 0.0
        %3880 = vmatprep.subr.mxu0 0.0
        %3881 = vmatpush1.msra.mxu0 0.0
        %3882 = vmatprep.subr.mxu0 0.0
        %3883 = vmatpush1.msra.mxu0 0.0
        %3884 = vmatprep.subr.mxu0 0.0
        %3885 = vmatpush1.msra.mxu0 0.0
        %3886 = vmatprep.subr.mxu0 0.0
        %3887 = vmatpush1.msra.mxu0 0.0
        %3888 = vmatprep.subr.mxu0 0.0
        %3889 = vmatpush1.msra.mxu0 0.0
        %3890 = vmatprep.subr.mxu0 0.0
        %3891 = vmatpush1.msra.mxu0 0.0
        %3892 = vmatprep.subr.mxu0 0.0
        %3893 = vmatpush1.msra.mxu0 0.0
        %3894 = vmatprep.subr.mxu0 0.0
        %3895 = vmatpush1.msra.mxu0 0.0
        %3896 = vmatprep.subr.mxu0 0.0
        %3897 = vmatpush1.msra.mxu0 0.0
        %3898 = vmatprep.mubr.f32.mxu0 0.0
        %3899 = vmatmul.mubr.f32.gmra.mrb[0].mxu0 %v3690
        %v3900 = vpop.f32.mrb[0].mxu0
        %v3901 = vadd.f32 0.0, %v3900
        %v3902 = vpop.f32.mrb[0].mxu0
        %v3903 = vadd.f32 0.0, %v3902
        %3904 = vdwg.mxu0
        %3905 = vmatprep.subr.mxu0 %v3569
        %3906 = vmatpush1.msra.mxu0 %v3568
        %3907 = vmatprep.subr.mxu0 %v3577
        %3908 = vmatpush1.msra.mxu0 %v3576
        %3909 = vmatprep.subr.mxu0 %v3585
        %3910 = vmatpush1.msra.mxu0 %v3584
        %3911 = vmatprep.subr.mxu0 %v3593
        %3912 = vmatpush1.msra.mxu0 %v3592
        %3913 = vmatprep.subr.mxu0 %v3601
        %3914 = vmatpush1.msra.mxu0 %v3600
        %3915 = vmatprep.subr.mxu0 %v3609
        %3916 = vmatpush1.msra.mxu0 %v3608
        %3917 = vmatprep.subr.mxu0 %v3617
        %3918 = vmatpush1.msra.mxu0 %v3616
        %3919 = vmatprep.subr.mxu0 %v3625
        %3920 = vmatpush1.msra.mxu0 %v3624
        %3921 = vmatprep.subr.mxu0 %v3633
        %3922 = vmatpush1.msra.mxu0 %v3632
        %3923 = vmatprep.subr.mxu0 %v3641
        %3924 = vmatpush1.msra.mxu0 %v3640
        %3925 = vmatprep.subr.mxu0 %v3649
        %3926 = vmatpush1.msra.mxu0 %v3648
        %3927 = vmatprep.subr.mxu0 %v3657
        %3928 = vmatpush1.msra.mxu0 %v3656
        %3929 = vmatprep.subr.mxu0 %v3665
        %3930 = vmatpush1.msra.mxu0 %v3664
        %3931 = vmatprep.subr.mxu0 %v3673
        %3932 = vmatpush1.msra.mxu0 %v3672
        %3933 = vmatprep.subr.mxu0 %v3681
        %3934 = vmatpush1.msra.mxu0 %v3680
        %3935 = vmatprep.subr.mxu0 %v3689
        %3936 = vmatpush1.msra.mxu0 %v3688
        %3937 = vmatprep.subr.mxu0 0.0
        %3938 = vmatpush1.msra.mxu0 0.0
        %3939 = vmatprep.subr.mxu0 0.0
        %3940 = vmatpush1.msra.mxu0 0.0
        %3941 = vmatprep.subr.mxu0 0.0
        %3942 = vmatpush1.msra.mxu0 0.0
        %3943 = vmatprep.subr.mxu0 0.0
        %3944 = vmatpush1.msra.mxu0 0.0
        %3945 = vmatprep.subr.mxu0 0.0
        %3946 = vmatpush1.msra.mxu0 0.0
        %3947 = vmatprep.subr.mxu0 0.0
        %3948 = vmatpush1.msra.mxu0 0.0
        %3949 = vmatprep.subr.mxu0 0.0
        %3950 = vmatpush1.msra.mxu0 0.0
        %3951 = vmatprep.subr.mxu0 0.0
        %3952 = vmatpush1.msra.mxu0 0.0
        %3953 = vmatprep.subr.mxu0 0.0
        %3954 = vmatpush1.msra.mxu0 0.0
        %3955 = vmatprep.subr.mxu0 0.0
        %3956 = vmatpush1.msra.mxu0 0.0
        %3957 = vmatprep.subr.mxu0 0.0
        %3958 = vmatpush1.msra.mxu0 0.0
        %3959 = vmatprep.subr.mxu0 0.0
        %3960 = vmatpush1.msra.mxu0 0.0
        %3961 = vmatprep.subr.mxu0 0.0
        %3962 = vmatpush1.msra.mxu0 0.0
        %3963 = vmatprep.subr.mxu0 0.0
        %3964 = vmatpush1.msra.mxu0 0.0
        %3965 = vmatprep.subr.mxu0 0.0
        %3966 = vmatpush1.msra.mxu0 0.0
        %3967 = vmatprep.subr.mxu0 0.0
        %3968 = vmatpush1.msra.mxu0 0.0
        %3969 = vmatprep.mubr.f32.mxu0 0.0
        %3970 = vmatmul.mubr.f32.gmra.mrb[0].mxu0 %v3690
        %v3971 = vpop.f32.mrb[0].mxu0
        %v3972 = vadd.f32 0.0, %v3971
        %v3973 = vpop.f32.mrb[0].mxu0
        %v3974 = vadd.f32 0.0, %v3973
        %3975 = vdwg.mxu0
        %v3976 = vadd.f32 %v3554, %v3759
        %v3977 = vadd.f32 %v3555, %v3761
        %v3978 = vadd.f32 %v3556, %v3830
        %v3979 = vadd.f32 %v3557, %v3832
        %v3980 = vadd.f32 %v3558, %v3901
        %v3981 = vadd.f32 %v3559, %v3903
        %v3982 = vadd.f32 %v3560, %v3972
        %v3983 = vadd.f32 %v3561, %v3974
        %v3984 = vld [vmem:[#allocation9 + $0x1c00] sm:$0xff]
        %v3985 = vld [vmem:[#allocation9 + $0x1c08] sm:$0xff]
        %v3986 = vld [vmem:[#allocation9 + $0x1c10] sm:$0xff]
        %v3987 = vld [vmem:[#allocation9 + $0x1c18] sm:$0xff]
        %v3988 = vld [vmem:[#allocation9 + $0x1c20] sm:$0xff]
        %v3989 = vld [vmem:[#allocation9 + $0x1c28] sm:$0xff]
        %v3990 = vld [vmem:[#allocation9 + $0x1c30] sm:$0xff]
        %v3991 = vld [vmem:[#allocation9 + $0x1c38] sm:$0xff]
        %v3992 = vld [vmem:[#allocation9 + $0x1c40] sm:$0xff]
        %v3993 = vld [vmem:[#allocation9 + $0x1c48] sm:$0xff]
        %v3994 = vld [vmem:[#allocation9 + $0x1c50] sm:$0xff]
        %v3995 = vld [vmem:[#allocation9 + $0x1c58] sm:$0xff]
        %v3996 = vld [vmem:[#allocation9 + $0x1c60] sm:$0xff]
        %v3997 = vld [vmem:[#allocation9 + $0x1c68] sm:$0xff]
        %v3998 = vld [vmem:[#allocation9 + $0x1c70] sm:$0xff]
        %v3999 = vld [vmem:[#allocation9 + $0x1c78] sm:$0xff]
        %v4000 = vld [vmem:[#allocation9 + $0x1c80] sm:$0xff]
        %v4001 = vld [vmem:[#allocation9 + $0x1c88] sm:$0xff]
        %v4002 = vld [vmem:[#allocation9 + $0x1c90] sm:$0xff]
        %v4003 = vld [vmem:[#allocation9 + $0x1c98] sm:$0xff]
        %v4004 = vld [vmem:[#allocation9 + $0x1ca0] sm:$0xff]
        %v4005 = vld [vmem:[#allocation9 + $0x1ca8] sm:$0xff]
        %v4006 = vld [vmem:[#allocation9 + $0x1cb0] sm:$0xff]
        %v4007 = vld [vmem:[#allocation9 + $0x1cb8] sm:$0xff]
        %v4008 = vld [vmem:[#allocation9 + $0x1cc0] sm:$0xff]
        %v4009 = vld [vmem:[#allocation9 + $0x1cc8] sm:$0xff]
        %v4010 = vld [vmem:[#allocation9 + $0x1cd0] sm:$0xff]
        %v4011 = vld [vmem:[#allocation9 + $0x1cd8] sm:$0xff]
        %v4012 = vld [vmem:[#allocation9 + $0x1ce0] sm:$0xff]
        %v4013 = vld [vmem:[#allocation9 + $0x1ce8] sm:$0xff]
        %v4014 = vld [vmem:[#allocation9 + $0x1cf0] sm:$0xff]
        %v4015 = vld [vmem:[#allocation9 + $0x1cf8] sm:$0xff]
        %v4016 = vld [vmem:[#allocation9 + $0x1d00] sm:$0xff]
        %v4017 = vld [vmem:[#allocation9 + $0x1d08] sm:$0xff]
        %v4018 = vld [vmem:[#allocation9 + $0x1d10] sm:$0xff]
        %v4019 = vld [vmem:[#allocation9 + $0x1d18] sm:$0xff]
        %v4020 = vld [vmem:[#allocation9 + $0x1d20] sm:$0xff]
        %v4021 = vld [vmem:[#allocation9 + $0x1d28] sm:$0xff]
        %v4022 = vld [vmem:[#allocation9 + $0x1d30] sm:$0xff]
        %v4023 = vld [vmem:[#allocation9 + $0x1d38] sm:$0xff]
        %v4024 = vld [vmem:[#allocation9 + $0x1d40] sm:$0xff]
        %v4025 = vld [vmem:[#allocation9 + $0x1d48] sm:$0xff]
        %v4026 = vld [vmem:[#allocation9 + $0x1d50] sm:$0xff]
        %v4027 = vld [vmem:[#allocation9 + $0x1d58] sm:$0xff]
        %v4028 = vld [vmem:[#allocation9 + $0x1d60] sm:$0xff]
        %v4029 = vld [vmem:[#allocation9 + $0x1d68] sm:$0xff]
        %v4030 = vld [vmem:[#allocation9 + $0x1d70] sm:$0xff]
        %v4031 = vld [vmem:[#allocation9 + $0x1d78] sm:$0xff]
        %v4032 = vld [vmem:[#allocation9 + $0x1d80] sm:$0xff]
        %v4033 = vld [vmem:[#allocation9 + $0x1d88] sm:$0xff]
        %v4034 = vld [vmem:[#allocation9 + $0x1d90] sm:$0xff]
        %v4035 = vld [vmem:[#allocation9 + $0x1d98] sm:$0xff]
        %v4036 = vld [vmem:[#allocation9 + $0x1da0] sm:$0xff]
        %v4037 = vld [vmem:[#allocation9 + $0x1da8] sm:$0xff]
        %v4038 = vld [vmem:[#allocation9 + $0x1db0] sm:$0xff]
        %v4039 = vld [vmem:[#allocation9 + $0x1db8] sm:$0xff]
        %v4040 = vld [vmem:[#allocation9 + $0x1dc0] sm:$0xff]
        %v4041 = vld [vmem:[#allocation9 + $0x1dc8] sm:$0xff]
        %v4042 = vld [vmem:[#allocation9 + $0x1dd0] sm:$0xff]
        %v4043 = vld [vmem:[#allocation9 + $0x1dd8] sm:$0xff]
        %v4044 = vld [vmem:[#allocation9 + $0x1de0] sm:$0xff]
        %v4045 = vld [vmem:[#allocation9 + $0x1de8] sm:$0xff]
        %v4046 = vld [vmem:[#allocation9 + $0x1df0] sm:$0xff]
        %v4047 = vld [vmem:[#allocation9 + $0x1df8] sm:$0xff]
        %v4048 = vld [vmem:[#allocation9 + $0x1e00] sm:$0xff]
        %v4049 = vld [vmem:[#allocation9 + $0x1e08] sm:$0xff]
        %v4050 = vld [vmem:[#allocation9 + $0x1e10] sm:$0xff]
        %v4051 = vld [vmem:[#allocation9 + $0x1e18] sm:$0xff]
        %v4052 = vld [vmem:[#allocation9 + $0x1e20] sm:$0xff]
        %v4053 = vld [vmem:[#allocation9 + $0x1e28] sm:$0xff]
        %v4054 = vld [vmem:[#allocation9 + $0x1e30] sm:$0xff]
        %v4055 = vld [vmem:[#allocation9 + $0x1e38] sm:$0xff]
        %v4056 = vld [vmem:[#allocation9 + $0x1e40] sm:$0xff]
        %v4057 = vld [vmem:[#allocation9 + $0x1e48] sm:$0xff]
        %v4058 = vld [vmem:[#allocation9 + $0x1e50] sm:$0xff]
        %v4059 = vld [vmem:[#allocation9 + $0x1e58] sm:$0xff]
        %v4060 = vld [vmem:[#allocation9 + $0x1e60] sm:$0xff]
        %v4061 = vld [vmem:[#allocation9 + $0x1e68] sm:$0xff]
        %v4062 = vld [vmem:[#allocation9 + $0x1e70] sm:$0xff]
        %v4063 = vld [vmem:[#allocation9 + $0x1e78] sm:$0xff]
        %v4064 = vld [vmem:[#allocation9 + $0x1e80] sm:$0xff]
        %v4065 = vld [vmem:[#allocation9 + $0x1e88] sm:$0xff]
        %v4066 = vld [vmem:[#allocation9 + $0x1e90] sm:$0xff]
        %v4067 = vld [vmem:[#allocation9 + $0x1e98] sm:$0xff]
        %v4068 = vld [vmem:[#allocation9 + $0x1ea0] sm:$0xff]
        %v4069 = vld [vmem:[#allocation9 + $0x1ea8] sm:$0xff]
        %v4070 = vld [vmem:[#allocation9 + $0x1eb0] sm:$0xff]
        %v4071 = vld [vmem:[#allocation9 + $0x1eb8] sm:$0xff]
        %v4072 = vld [vmem:[#allocation9 + $0x1ec0] sm:$0xff]
        %v4073 = vld [vmem:[#allocation9 + $0x1ec8] sm:$0xff]
        %v4074 = vld [vmem:[#allocation9 + $0x1ed0] sm:$0xff]
        %v4075 = vld [vmem:[#allocation9 + $0x1ed8] sm:$0xff]
        %v4076 = vld [vmem:[#allocation9 + $0x1ee0] sm:$0xff]
        %v4077 = vld [vmem:[#allocation9 + $0x1ee8] sm:$0xff]
        %v4078 = vld [vmem:[#allocation9 + $0x1ef0] sm:$0xff]
        %v4079 = vld [vmem:[#allocation9 + $0x1ef8] sm:$0xff]
        %v4080 = vld [vmem:[#allocation9 + $0x1f00] sm:$0xff]
        %v4081 = vld [vmem:[#allocation9 + $0x1f08] sm:$0xff]
        %v4082 = vld [vmem:[#allocation9 + $0x1f10] sm:$0xff]
        %v4083 = vld [vmem:[#allocation9 + $0x1f18] sm:$0xff]
        %v4084 = vld [vmem:[#allocation9 + $0x1f20] sm:$0xff]
        %v4085 = vld [vmem:[#allocation9 + $0x1f28] sm:$0xff]
        %v4086 = vld [vmem:[#allocation9 + $0x1f30] sm:$0xff]
        %v4087 = vld [vmem:[#allocation9 + $0x1f38] sm:$0xff]
        %v4088 = vld [vmem:[#allocation9 + $0x1f40] sm:$0xff]
        %v4089 = vld [vmem:[#allocation9 + $0x1f48] sm:$0xff]
        %v4090 = vld [vmem:[#allocation9 + $0x1f50] sm:$0xff]
        %v4091 = vld [vmem:[#allocation9 + $0x1f58] sm:$0xff]
        %v4092 = vld [vmem:[#allocation9 + $0x1f60] sm:$0xff]
        %v4093 = vld [vmem:[#allocation9 + $0x1f68] sm:$0xff]
        %v4094 = vld [vmem:[#allocation9 + $0x1f70] sm:$0xff]
        %v4095 = vld [vmem:[#allocation9 + $0x1f78] sm:$0xff]
        %v4096 = vld [vmem:[#allocation9 + $0x1f80] sm:$0xff]
        %v4097 = vld [vmem:[#allocation9 + $0x1f88] sm:$0xff]
        %v4098 = vld [vmem:[#allocation9 + $0x1f90] sm:$0xff]
        %v4099 = vld [vmem:[#allocation9 + $0x1f98] sm:$0xff]
        %v4100 = vld [vmem:[#allocation9 + $0x1fa0] sm:$0xff]
        %v4101 = vld [vmem:[#allocation9 + $0x1fa8] sm:$0xff]
        %v4102 = vld [vmem:[#allocation9 + $0x1fb0] sm:$0xff]
        %v4103 = vld [vmem:[#allocation9 + $0x1fb8] sm:$0xff]
        %v4104 = vld [vmem:[#allocation9 + $0x1fc0] sm:$0xff]
        %v4105 = vld [vmem:[#allocation9 + $0x1fc8] sm:$0xff]
        %v4106 = vld [vmem:[#allocation9 + $0x1fd0] sm:$0xff]
        %v4107 = vld [vmem:[#allocation9 + $0x1fd8] sm:$0xff]
        %v4108 = vld [vmem:[#allocation9 + $0x1fe0] sm:$0xff]
        %v4109 = vld [vmem:[#allocation9 + $0x1fe8] sm:$0xff]
        %v4110 = vld [vmem:[#allocation9 + $0x1ff0] sm:$0xff]
        %v4111 = vld [vmem:[#allocation9 + $0x1ff8] sm:$0xff]
        %v4112 = vrot.slane %v1047, 6
        %4114 = vmatprep.subr.mxu0 %v3985
        %4115 = vmatpush1.msra.mxu0 %v3984
        %4116 = vmatprep.subr.mxu0 %v3993
        %4117 = vmatpush1.msra.mxu0 %v3992
        %4118 = vmatprep.subr.mxu0 %v4001
        %4119 = vmatpush1.msra.mxu0 %v4000
        %4120 = vmatprep.subr.mxu0 %v4009
        %4121 = vmatpush1.msra.mxu0 %v4008
        %4122 = vmatprep.subr.mxu0 %v4017
        %4123 = vmatpush1.msra.mxu0 %v4016
        %4124 = vmatprep.subr.mxu0 %v4025
        %4125 = vmatpush1.msra.mxu0 %v4024
        %4126 = vmatprep.subr.mxu0 %v4033
        %4127 = vmatpush1.msra.mxu0 %v4032
        %4128 = vmatprep.subr.mxu0 %v4041
        %4129 = vmatpush1.msra.mxu0 %v4040
        %4130 = vmatprep.subr.mxu0 %v4049
        %4131 = vmatpush1.msra.mxu0 %v4048
        %4132 = vmatprep.subr.mxu0 %v4057
        %4133 = vmatpush1.msra.mxu0 %v4056
        %4134 = vmatprep.subr.mxu0 %v4065
        %4135 = vmatpush1.msra.mxu0 %v4064
        %4136 = vmatprep.subr.mxu0 %v4073
        %4137 = vmatpush1.msra.mxu0 %v4072
        %4138 = vmatprep.subr.mxu0 %v4081
        %4139 = vmatpush1.msra.mxu0 %v4080
        %4140 = vmatprep.subr.mxu0 %v4089
        %4141 = vmatpush1.msra.mxu0 %v4088
        %4142 = vmatprep.subr.mxu0 %v4097
        %4143 = vmatpush1.msra.mxu0 %v4096
        %4144 = vmatprep.subr.mxu0 %v4105
        %4145 = vmatpush1.msra.mxu0 %v4104
        %4146 = vmatprep.subr.mxu0 0.0
        %4147 = vmatpush1.msra.mxu0 0.0
        %4148 = vmatprep.subr.mxu0 0.0
        %4149 = vmatpush1.msra.mxu0 0.0
        %4150 = vmatprep.subr.mxu0 0.0
        %4151 = vmatpush1.msra.mxu0 0.0
        %4152 = vmatprep.subr.mxu0 0.0
        %4153 = vmatpush1.msra.mxu0 0.0
        %4154 = vmatprep.subr.mxu0 0.0
        %4155 = vmatpush1.msra.mxu0 0.0
        %4156 = vmatprep.subr.mxu0 0.0
        %4157 = vmatpush1.msra.mxu0 0.0
        %4158 = vmatprep.subr.mxu0 0.0
        %4159 = vmatpush1.msra.mxu0 0.0
        %4160 = vmatprep.subr.mxu0 0.0
        %4161 = vmatpush1.msra.mxu0 0.0
        %4162 = vmatprep.subr.mxu0 0.0
        %4163 = vmatpush1.msra.mxu0 0.0
        %4164 = vmatprep.subr.mxu0 0.0
        %4165 = vmatpush1.msra.mxu0 0.0
        %4166 = vmatprep.subr.mxu0 0.0
        %4167 = vmatpush1.msra.mxu0 0.0
        %4168 = vmatprep.subr.mxu0 0.0
        %4169 = vmatpush1.msra.mxu0 0.0
        %4170 = vmatprep.subr.mxu0 0.0
        %4171 = vmatpush1.msra.mxu0 0.0
        %4172 = vmatprep.subr.mxu0 0.0
        %4173 = vmatpush1.msra.mxu0 0.0
        %4174 = vmatprep.subr.mxu0 0.0
        %4175 = vmatpush1.msra.mxu0 0.0
        %4176 = vmatprep.subr.mxu0 0.0
        %4177 = vmatpush1.msra.mxu0 0.0
        %4178 = vmatprep.mubr.f32.mxu0 0.0
        %4179 = vmatmul.mubr.f32.gmra.mrb[0].mxu0 %v4112
        %v4180 = vpop.f32.mrb[0].mxu0
        %v4181 = vadd.f32 0.0, %v4180
        %v4182 = vpop.f32.mrb[0].mxu0
        %v4183 = vadd.f32 0.0, %v4182
        %4184 = vdwg.mxu0
        %4185 = vmatprep.subr.mxu0 %v3987
        %4186 = vmatpush1.msra.mxu0 %v3986
        %4187 = vmatprep.subr.mxu0 %v3995
        %4188 = vmatpush1.msra.mxu0 %v3994
        %4189 = vmatprep.subr.mxu0 %v4003
        %4190 = vmatpush1.msra.mxu0 %v4002
        %4191 = vmatprep.subr.mxu0 %v4011
        %4192 = vmatpush1.msra.mxu0 %v4010
        %4193 = vmatprep.subr.mxu0 %v4019
        %4194 = vmatpush1.msra.mxu0 %v4018
        %4195 = vmatprep.subr.mxu0 %v4027
        %4196 = vmatpush1.msra.mxu0 %v4026
        %4197 = vmatprep.subr.mxu0 %v4035
        %4198 = vmatpush1.msra.mxu0 %v4034
        %4199 = vmatprep.subr.mxu0 %v4043
        %4200 = vmatpush1.msra.mxu0 %v4042
        %4201 = vmatprep.subr.mxu0 %v4051
        %4202 = vmatpush1.msra.mxu0 %v4050
        %4203 = vmatprep.subr.mxu0 %v4059
        %4204 = vmatpush1.msra.mxu0 %v4058
        %4205 = vmatprep.subr.mxu0 %v4067
        %4206 = vmatpush1.msra.mxu0 %v4066
        %4207 = vmatprep.subr.mxu0 %v4075
        %4208 = vmatpush1.msra.mxu0 %v4074
        %4209 = vmatprep.subr.mxu0 %v4083
        %4210 = vmatpush1.msra.mxu0 %v4082
        %4211 = vmatprep.subr.mxu0 %v4091
        %4212 = vmatpush1.msra.mxu0 %v4090
        %4213 = vmatprep.subr.mxu0 %v4099
        %4214 = vmatpush1.msra.mxu0 %v4098
        %4215 = vmatprep.subr.mxu0 %v4107
        %4216 = vmatpush1.msra.mxu0 %v4106
        %4217 = vmatprep.subr.mxu0 0.0
        %4218 = vmatpush1.msra.mxu0 0.0
        %4219 = vmatprep.subr.mxu0 0.0
        %4220 = vmatpush1.msra.mxu0 0.0
        %4221 = vmatprep.subr.mxu0 0.0
        %4222 = vmatpush1.msra.mxu0 0.0
        %4223 = vmatprep.subr.mxu0 0.0
        %4224 = vmatpush1.msra.mxu0 0.0
        %4225 = vmatprep.subr.mxu0 0.0
        %4226 = vmatpush1.msra.mxu0 0.0
        %4227 = vmatprep.subr.mxu0 0.0
        %4228 = vmatpush1.msra.mxu0 0.0
        %4229 = vmatprep.subr.mxu0 0.0
        %4230 = vmatpush1.msra.mxu0 0.0
        %4231 = vmatprep.subr.mxu0 0.0
        %4232 = vmatpush1.msra.mxu0 0.0
        %4233 = vmatprep.subr.mxu0 0.0
        %4234 = vmatpush1.msra.mxu0 0.0
        %4235 = vmatprep.subr.mxu0 0.0
        %4236 = vmatpush1.msra.mxu0 0.0
        %4237 = vmatprep.subr.mxu0 0.0
        %4238 = vmatpush1.msra.mxu0 0.0
        %4239 = vmatprep.subr.mxu0 0.0
        %4240 = vmatpush1.msra.mxu0 0.0
        %4241 = vmatprep.subr.mxu0 0.0
        %4242 = vmatpush1.msra.mxu0 0.0
        %4243 = vmatprep.subr.mxu0 0.0
        %4244 = vmatpush1.msra.mxu0 0.0
        %4245 = vmatprep.subr.mxu0 0.0
        %4246 = vmatpush1.msra.mxu0 0.0
        %4247 = vmatprep.subr.mxu0 0.0
        %4248 = vmatpush1.msra.mxu0 0.0
        %4249 = vmatprep.mubr.f32.mxu0 0.0
        %4250 = vmatmul.mubr.f32.gmra.mrb[0].mxu0 %v4112
        %v4251 = vpop.f32.mrb[0].mxu0
        %v4252 = vadd.f32 0.0, %v4251
        %v4253 = vpop.f32.mrb[0].mxu0
        %v4254 = vadd.f32 0.0, %v4253
        %4255 = vdwg.mxu0
        %4256 = vmatprep.subr.mxu0 %v3989
        %4257 = vmatpush1.msra.mxu0 %v3988
        %4258 = vmatprep.subr.mxu0 %v3997
        %4259 = vmatpush1.msra.mxu0 %v3996
        %4260 = vmatprep.subr.mxu0 %v4005
        %4261 = vmatpush1.msra.mxu0 %v4004
        %4262 = vmatprep.subr.mxu0 %v4013
        %4263 = vmatpush1.msra.mxu0 %v4012
        %4264 = vmatprep.subr.mxu0 %v4021
        %4265 = vmatpush1.msra.mxu0 %v4020
        %4266 = vmatprep.subr.mxu0 %v4029
        %4267 = vmatpush1.msra.mxu0 %v4028
        %4268 = vmatprep.subr.mxu0 %v4037
        %4269 = vmatpush1.msra.mxu0 %v4036
        %4270 = vmatprep.subr.mxu0 %v4045
        %4271 = vmatpush1.msra.mxu0 %v4044
        %4272 = vmatprep.subr.mxu0 %v4053
        %4273 = vmatpush1.msra.mxu0 %v4052
        %4274 = vmatprep.subr.mxu0 %v4061
        %4275 = vmatpush1.msra.mxu0 %v4060
        %4276 = vmatprep.subr.mxu0 %v4069
        %4277 = vmatpush1.msra.mxu0 %v4068
        %4278 = vmatprep.subr.mxu0 %v4077
        %4279 = vmatpush1.msra.mxu0 %v4076
        %4280 = vmatprep.subr.mxu0 %v4085
        %4281 = vmatpush1.msra.mxu0 %v4084
        %4282 = vmatprep.subr.mxu0 %v4093
        %4283 = vmatpush1.msra.mxu0 %v4092
        %4284 = vmatprep.subr.mxu0 %v4101
        %4285 = vmatpush1.msra.mxu0 %v4100
        %4286 = vmatprep.subr.mxu0 %v4109
        %4287 = vmatpush1.msra.mxu0 %v4108
        %4288 = vmatprep.subr.mxu0 0.0
        %4289 = vmatpush1.msra.mxu0 0.0
        %4290 = vmatprep.subr.mxu0 0.0
        %4291 = vmatpush1.msra.mxu0 0.0
        %4292 = vmatprep.subr.mxu0 0.0
        %4293 = vmatpush1.msra.mxu0 0.0
        %4294 = vmatprep.subr.mxu0 0.0
        %4295 = vmatpush1.msra.mxu0 0.0
        %4296 = vmatprep.subr.mxu0 0.0
        %4297 = vmatpush1.msra.mxu0 0.0
        %4298 = vmatprep.subr.mxu0 0.0
        %4299 = vmatpush1.msra.mxu0 0.0
        %4300 = vmatprep.subr.mxu0 0.0
        %4301 = vmatpush1.msra.mxu0 0.0
        %4302 = vmatprep.subr.mxu0 0.0
        %4303 = vmatpush1.msra.mxu0 0.0
        %4304 = vmatprep.subr.mxu0 0.0
        %4305 = vmatpush1.msra.mxu0 0.0
        %4306 = vmatprep.subr.mxu0 0.0
        %4307 = vmatpush1.msra.mxu0 0.0
        %4308 = vmatprep.subr.mxu0 0.0
        %4309 = vmatpush1.msra.mxu0 0.0
        %4310 = vmatprep.subr.mxu0 0.0
        %4311 = vmatpush1.msra.mxu0 0.0
        %4312 = vmatprep.subr.mxu0 0.0
        %4313 = vmatpush1.msra.mxu0 0.0
        %4314 = vmatprep.subr.mxu0 0.0
        %4315 = vmatpush1.msra.mxu0 0.0
        %4316 = vmatprep.subr.mxu0 0.0
        %4317 = vmatpush1.msra.mxu0 0.0
        %4318 = vmatprep.subr.mxu0 0.0
        %4319 = vmatpush1.msra.mxu0 0.0
        %4320 = vmatprep.mubr.f32.mxu0 0.0
        %4321 = vmatmul.mubr.f32.gmra.mrb[0].mxu0 %v4112
        %v4322 = vpop.f32.mrb[0].mxu0
        %v4323 = vadd.f32 0.0, %v4322
        %v4324 = vpop.f32.mrb[0].mxu0
        %v4325 = vadd.f32 0.0, %v4324
        %4326 = vdwg.mxu0
        %4327 = vmatprep.subr.mxu0 %v3991
        %4328 = vmatpush1.msra.mxu0 %v3990
        %4329 = vmatprep.subr.mxu0 %v3999
        %4330 = vmatpush1.msra.mxu0 %v3998
        %4331 = vmatprep.subr.mxu0 %v4007
        %4332 = vmatpush1.msra.mxu0 %v4006
        %4333 = vmatprep.subr.mxu0 %v4015
        %4334 = vmatpush1.msra.mxu0 %v4014
        %4335 = vmatprep.subr.mxu0 %v4023
        %4336 = vmatpush1.msra.mxu0 %v4022
        %4337 = vmatprep.subr.mxu0 %v4031
        %4338 = vmatpush1.msra.mxu0 %v4030
        %4339 = vmatprep.subr.mxu0 %v4039
        %4340 = vmatpush1.msra.mxu0 %v4038
        %4341 = vmatprep.subr.mxu0 %v4047
        %4342 = vmatpush1.msra.mxu0 %v4046
        %4343 = vmatprep.subr.mxu0 %v4055
        %4344 = vmatpush1.msra.mxu0 %v4054
        %4345 = vmatprep.subr.mxu0 %v4063
        %4346 = vmatpush1.msra.mxu0 %v4062
        %4347 = vmatprep.subr.mxu0 %v4071
        %4348 = vmatpush1.msra.mxu0 %v4070
        %4349 = vmatprep.subr.mxu0 %v4079
        %4350 = vmatpush1.msra.mxu0 %v4078
        %4351 = vmatprep.subr.mxu0 %v4087
        %4352 = vmatpush1.msra.mxu0 %v4086
        %4353 = vmatprep.subr.mxu0 %v4095
        %4354 = vmatpush1.msra.mxu0 %v4094
        %4355 = vmatprep.subr.mxu0 %v4103
        %4356 = vmatpush1.msra.mxu0 %v4102
        %4357 = vmatprep.subr.mxu0 %v4111
        %4358 = vmatpush1.msra.mxu0 %v4110
        %4359 = vmatprep.subr.mxu0 0.0
        %4360 = vmatpush1.msra.mxu0 0.0
        %4361 = vmatprep.subr.mxu0 0.0
        %4362 = vmatpush1.msra.mxu0 0.0
        %4363 = vmatprep.subr.mxu0 0.0
        %4364 = vmatpush1.msra.mxu0 0.0
        %4365 = vmatprep.subr.mxu0 0.0
        %4366 = vmatpush1.msra.mxu0 0.0
        %4367 = vmatprep.subr.mxu0 0.0
        %4368 = vmatpush1.msra.mxu0 0.0
        %4369 = vmatprep.subr.mxu0 0.0
        %4370 = vmatpush1.msra.mxu0 0.0
        %4371 = vmatprep.subr.mxu0 0.0
        %4372 = vmatpush1.msra.mxu0 0.0
        %4373 = vmatprep.subr.mxu0 0.0
        %4374 = vmatpush1.msra.mxu0 0.0
        %4375 = vmatprep.subr.mxu0 0.0
        %4376 = vmatpush1.msra.mxu0 0.0
        %4377 = vmatprep.subr.mxu0 0.0
        %4378 = vmatpush1.msra.mxu0 0.0
        %4379 = vmatprep.subr.mxu0 0.0
        %4380 = vmatpush1.msra.mxu0 0.0
        %4381 = vmatprep.subr.mxu0 0.0
        %4382 = vmatpush1.msra.mxu0 0.0
        %4383 = vmatprep.subr.mxu0 0.0
        %4384 = vmatpush1.msra.mxu0 0.0
        %4385 = vmatprep.subr.mxu0 0.0
        %4386 = vmatpush1.msra.mxu0 0.0
        %4387 = vmatprep.subr.mxu0 0.0
        %4388 = vmatpush1.msra.mxu0 0.0
        %4389 = vmatprep.subr.mxu0 0.0
        %4390 = vmatpush1.msra.mxu0 0.0
        %4391 = vmatprep.mubr.f32.mxu0 0.0
        %4392 = vmatmul.mubr.f32.gmra.mrb[0].mxu0 %v4112
        %v4393 = vpop.f32.mrb[0].mxu0
        %v4394 = vadd.f32 0.0, %v4393
        %v4395 = vpop.f32.mrb[0].mxu0
        %v4396 = vadd.f32 0.0, %v4395
        %4397 = vdwg.mxu0
        %v4398 = vadd.f32 %v3976, %v4181
        %v4399 = vadd.f32 %v3977, %v4183
        %v4400 = vadd.f32 %v3978, %v4252
        %v4401 = vadd.f32 %v3979, %v4254
        %v4402 = vadd.f32 %v3980, %v4323
        %v4403 = vadd.f32 %v3981, %v4325
        %v4404 = vadd.f32 %v3982, %v4394
        %v4405 = vadd.f32 %v3983, %v4396
        %v4406 = vld [vmem:[#allocation10] sm:$0xff]
        %v4408 = vlaneseq
        %v4409 = vshrl.u32 %v4408, 7
        %v4410 = vsub.s32 0, %v4409
        %v4411 = vrot.slane %v4406, %v4410
        %v4412 = vlaneseq
        %v4413 = vshrl.u32 %v4412, 7
        %v4414 = vsub.s32 1, %v4413
        %v4415 = vrot.slane %v4406, %v4414
        %v4416 = vlaneseq
        %v4417 = vshrl.u32 %v4416, 7
        %v4418 = vsub.s32 2, %v4417
        %v4419 = vrot.slane %v4406, %v4418
        %v4420 = vlaneseq
        %v4421 = vshrl.u32 %v4420, 7
        %v4422 = vsub.s32 3, %v4421
        %v4423 = vrot.slane %v4406, %v4422
        %v4424 = vlaneseq
        %v4425 = vshrl.u32 %v4424, 7
        %v4426 = vsub.s32 4, %v4425
        %v4427 = vrot.slane %v4406, %v4426
        %v4428 = vlaneseq
        %v4429 = vshrl.u32 %v4428, 7
        %v4430 = vsub.s32 5, %v4429
        %v4431 = vrot.slane %v4406, %v4430
        %v4432 = vlaneseq
        %v4433 = vshrl.u32 %v4432, 7
        %v4434 = vsub.s32 6, %v4433
        %v4435 = vrot.slane %v4406, %v4434
        %v4436 = vlaneseq
        %v4437 = vshrl.u32 %v4436, 7
        %v4438 = vsub.s32 7, %v4437
        %v4439 = vrot.slane %v4406, %v4438
        %v4448 = vadd.f32 %v4398, %v4411
        %v4449 = vadd.f32 %v4399, %v4415
        %v4450 = vadd.f32 %v4400, %v4419
        %v4451 = vadd.f32 %v4401, %v4423
        %v4452 = vadd.f32 %v4402, %v4427
        %v4453 = vadd.f32 %v4403, %v4431
        %v4454 = vadd.f32 %v4404, %v4435
        %v4455 = vadd.f32 %v4405, %v4439
        %v4456 = vmax.f32 %v4448, 0.0
        %v4457 = vmax.f32 %v4449, 0.0
        %v4458 = vmax.f32 %v4450, 0.0
        %v4459 = vmax.f32 %v4451, 0.0
        %v4460 = vmax.f32 %v4452, 0.0
        %v4461 = vmax.f32 %v4453, 0.0
        %v4462 = vmax.f32 %v4454, 0.0
        %v4463 = vmax.f32 %v4455, 0.0
        %v4464 = vld [vmem:[#allocation12] sm:$0xff]
        %v4465 = vld [vmem:[#allocation12 + $0x8] sm:$0xff]
        %v4466 = vld [vmem:[#allocation12 + $0x10] sm:$0xff]
        %v4467 = vld [vmem:[#allocation12 + $0x18] sm:$0xff]
        %v4468 = vld [vmem:[#allocation12 + $0x20] sm:$0xff]
        %v4469 = vld [vmem:[#allocation12 + $0x28] sm:$0xff]
        %v4470 = vld [vmem:[#allocation12 + $0x30] sm:$0xff]
        %v4471 = vld [vmem:[#allocation12 + $0x38] sm:$0xff]
        %v4472 = vld [vmem:[#allocation12 + $0x40] sm:$0xff]
        %v4473 = vld [vmem:[#allocation12 + $0x48] sm:$0xff]
        %v4474 = vld [vmem:[#allocation12 + $0x50] sm:$0xff]
        %v4475 = vld [vmem:[#allocation12 + $0x58] sm:$0xff]
        %v4476 = vld [vmem:[#allocation12 + $0x60] sm:$0xff]
        %v4477 = vld [vmem:[#allocation12 + $0x68] sm:$0xff]
        %v4478 = vld [vmem:[#allocation12 + $0x70] sm:$0xff]
        %v4479 = vld [vmem:[#allocation12 + $0x78] sm:$0xff]
        %v4480 = vld [vmem:[#allocation12 + $0x80] sm:$0xff]
        %v4481 = vld [vmem:[#allocation12 + $0x88] sm:$0xff]
        %v4482 = vld [vmem:[#allocation12 + $0x90] sm:$0xff]
        %v4483 = vld [vmem:[#allocation12 + $0x98] sm:$0xff]
        %v4484 = vld [vmem:[#allocation12 + $0xa0] sm:$0xff]
        %v4485 = vld [vmem:[#allocation12 + $0xa8] sm:$0xff]
        %v4486 = vld [vmem:[#allocation12 + $0xb0] sm:$0xff]
        %v4487 = vld [vmem:[#allocation12 + $0xb8] sm:$0xff]
        %v4488 = vld [vmem:[#allocation12 + $0xc0] sm:$0xff]
        %v4489 = vld [vmem:[#allocation12 + $0xc8] sm:$0xff]
        %v4490 = vld [vmem:[#allocation12 + $0xd0] sm:$0xff]
        %v4491 = vld [vmem:[#allocation12 + $0xd8] sm:$0xff]
        %v4492 = vld [vmem:[#allocation12 + $0xe0] sm:$0xff]
        %v4493 = vld [vmem:[#allocation12 + $0xe8] sm:$0xff]
        %v4494 = vld [vmem:[#allocation12 + $0xf0] sm:$0xff]
        %v4495 = vld [vmem:[#allocation12 + $0xf8] sm:$0xff]
        %v4496 = vld [vmem:[#allocation12 + $0x100] sm:$0xff]
        %v4497 = vld [vmem:[#allocation12 + $0x108] sm:$0xff]
        %v4498 = vld [vmem:[#allocation12 + $0x110] sm:$0xff]
        %v4499 = vld [vmem:[#allocation12 + $0x118] sm:$0xff]
        %v4500 = vld [vmem:[#allocation12 + $0x120] sm:$0xff]
        %v4501 = vld [vmem:[#allocation12 + $0x128] sm:$0xff]
        %v4502 = vld [vmem:[#allocation12 + $0x130] sm:$0xff]
        %v4503 = vld [vmem:[#allocation12 + $0x138] sm:$0xff]
        %v4504 = vld [vmem:[#allocation12 + $0x140] sm:$0xff]
        %v4505 = vld [vmem:[#allocation12 + $0x148] sm:$0xff]
        %v4506 = vld [vmem:[#allocation12 + $0x150] sm:$0xff]
        %v4507 = vld [vmem:[#allocation12 + $0x158] sm:$0xff]
        %v4508 = vld [vmem:[#allocation12 + $0x160] sm:$0xff]
        %v4509 = vld [vmem:[#allocation12 + $0x168] sm:$0xff]
        %v4510 = vld [vmem:[#allocation12 + $0x170] sm:$0xff]
        %v4511 = vld [vmem:[#allocation12 + $0x178] sm:$0xff]
        %v4512 = vld [vmem:[#allocation12 + $0x180] sm:$0xff]
        %v4513 = vld [vmem:[#allocation12 + $0x188] sm:$0xff]
        %v4514 = vld [vmem:[#allocation12 + $0x190] sm:$0xff]
        %v4515 = vld [vmem:[#allocation12 + $0x198] sm:$0xff]
        %v4516 = vld [vmem:[#allocation12 + $0x1a0] sm:$0xff]
        %v4517 = vld [vmem:[#allocation12 + $0x1a8] sm:$0xff]
        %v4518 = vld [vmem:[#allocation12 + $0x1b0] sm:$0xff]
        %v4519 = vld [vmem:[#allocation12 + $0x1b8] sm:$0xff]
        %v4520 = vld [vmem:[#allocation12 + $0x1c0] sm:$0xff]
        %v4521 = vld [vmem:[#allocation12 + $0x1c8] sm:$0xff]
        %v4522 = vld [vmem:[#allocation12 + $0x1d0] sm:$0xff]
        %v4523 = vld [vmem:[#allocation12 + $0x1d8] sm:$0xff]
        %v4524 = vld [vmem:[#allocation12 + $0x1e0] sm:$0xff]
        %v4525 = vld [vmem:[#allocation12 + $0x1e8] sm:$0xff]
        %v4526 = vld [vmem:[#allocation12 + $0x1f0] sm:$0xff]
        %v4527 = vld [vmem:[#allocation12 + $0x1f8] sm:$0xff]
        %v4528 = vld [vmem:[#allocation12 + $0x200] sm:$0xff]
        %v4529 = vld [vmem:[#allocation12 + $0x208] sm:$0xff]
        %v4530 = vld [vmem:[#allocation12 + $0x210] sm:$0xff]
        %v4531 = vld [vmem:[#allocation12 + $0x218] sm:$0xff]
        %v4532 = vld [vmem:[#allocation12 + $0x220] sm:$0xff]
        %v4533 = vld [vmem:[#allocation12 + $0x228] sm:$0xff]
        %v4534 = vld [vmem:[#allocation12 + $0x230] sm:$0xff]
        %v4535 = vld [vmem:[#allocation12 + $0x238] sm:$0xff]
        %v4536 = vld [vmem:[#allocation12 + $0x240] sm:$0xff]
        %v4537 = vld [vmem:[#allocation12 + $0x248] sm:$0xff]
        %v4538 = vld [vmem:[#allocation12 + $0x250] sm:$0xff]
        %v4539 = vld [vmem:[#allocation12 + $0x258] sm:$0xff]
        %v4540 = vld [vmem:[#allocation12 + $0x260] sm:$0xff]
        %v4541 = vld [vmem:[#allocation12 + $0x268] sm:$0xff]
        %v4542 = vld [vmem:[#allocation12 + $0x270] sm:$0xff]
        %v4543 = vld [vmem:[#allocation12 + $0x278] sm:$0xff]
        %v4544 = vld [vmem:[#allocation12 + $0x280] sm:$0xff]
        %v4545 = vld [vmem:[#allocation12 + $0x288] sm:$0xff]
        %v4546 = vld [vmem:[#allocation12 + $0x290] sm:$0xff]
        %v4547 = vld [vmem:[#allocation12 + $0x298] sm:$0xff]
        %v4548 = vld [vmem:[#allocation12 + $0x2a0] sm:$0xff]
        %v4549 = vld [vmem:[#allocation12 + $0x2a8] sm:$0xff]
        %v4550 = vld [vmem:[#allocation12 + $0x2b0] sm:$0xff]
        %v4551 = vld [vmem:[#allocation12 + $0x2b8] sm:$0xff]
        %v4552 = vld [vmem:[#allocation12 + $0x2c0] sm:$0xff]
        %v4553 = vld [vmem:[#allocation12 + $0x2c8] sm:$0xff]
        %v4554 = vld [vmem:[#allocation12 + $0x2d0] sm:$0xff]
        %v4555 = vld [vmem:[#allocation12 + $0x2d8] sm:$0xff]
        %v4556 = vld [vmem:[#allocation12 + $0x2e0] sm:$0xff]
        %v4557 = vld [vmem:[#allocation12 + $0x2e8] sm:$0xff]
        %v4558 = vld [vmem:[#allocation12 + $0x2f0] sm:$0xff]
        %v4559 = vld [vmem:[#allocation12 + $0x2f8] sm:$0xff]
        %v4560 = vld [vmem:[#allocation12 + $0x300] sm:$0xff]
        %v4561 = vld [vmem:[#allocation12 + $0x308] sm:$0xff]
        %v4562 = vld [vmem:[#allocation12 + $0x310] sm:$0xff]
        %v4563 = vld [vmem:[#allocation12 + $0x318] sm:$0xff]
        %v4564 = vld [vmem:[#allocation12 + $0x320] sm:$0xff]
        %v4565 = vld [vmem:[#allocation12 + $0x328] sm:$0xff]
        %v4566 = vld [vmem:[#allocation12 + $0x330] sm:$0xff]
        %v4567 = vld [vmem:[#allocation12 + $0x338] sm:$0xff]
        %v4568 = vld [vmem:[#allocation12 + $0x340] sm:$0xff]
        %v4569 = vld [vmem:[#allocation12 + $0x348] sm:$0xff]
        %v4570 = vld [vmem:[#allocation12 + $0x350] sm:$0xff]
        %v4571 = vld [vmem:[#allocation12 + $0x358] sm:$0xff]
        %v4572 = vld [vmem:[#allocation12 + $0x360] sm:$0xff]
        %v4573 = vld [vmem:[#allocation12 + $0x368] sm:$0xff]
        %v4574 = vld [vmem:[#allocation12 + $0x370] sm:$0xff]
        %v4575 = vld [vmem:[#allocation12 + $0x378] sm:$0xff]
        %v4576 = vld [vmem:[#allocation12 + $0x380] sm:$0xff]
        %v4577 = vld [vmem:[#allocation12 + $0x388] sm:$0xff]
        %v4578 = vld [vmem:[#allocation12 + $0x390] sm:$0xff]
        %v4579 = vld [vmem:[#allocation12 + $0x398] sm:$0xff]
        %v4580 = vld [vmem:[#allocation12 + $0x3a0] sm:$0xff]
        %v4581 = vld [vmem:[#allocation12 + $0x3a8] sm:$0xff]
        %v4582 = vld [vmem:[#allocation12 + $0x3b0] sm:$0xff]
        %v4583 = vld [vmem:[#allocation12 + $0x3b8] sm:$0xff]
        %v4584 = vld [vmem:[#allocation12 + $0x3c0] sm:$0xff]
        %v4585 = vld [vmem:[#allocation12 + $0x3c8] sm:$0xff]
        %v4586 = vld [vmem:[#allocation12 + $0x3d0] sm:$0xff]
        %v4587 = vld [vmem:[#allocation12 + $0x3d8] sm:$0xff]
        %v4588 = vld [vmem:[#allocation12 + $0x3e0] sm:$0xff]
        %v4589 = vld [vmem:[#allocation12 + $0x3e8] sm:$0xff]
        %v4590 = vld [vmem:[#allocation12 + $0x3f0] sm:$0xff]
        %v4591 = vld [vmem:[#allocation12 + $0x3f8] sm:$0xff]
        %v4592 = vld [vmem:[#allocation13] sm:$0x1]
        %v4594 = vlaneseq
        %v4595 = vshrl.u32 %v4594, 7
        %v4596 = vsub.s32 0, %v4595
        %v4597 = vrot.slane %v4592, %v4596
        %4599 = vmatprep.subr.mxu0 0.0
        %4600 = vmatpush1.msra.mxu0 %v4464
        %4601 = vmatprep.subr.mxu0 0.0
        %4602 = vmatpush1.msra.mxu0 %v4465
        %4603 = vmatprep.subr.mxu0 0.0
        %4604 = vmatpush1.msra.mxu0 %v4466
        %4605 = vmatprep.subr.mxu0 0.0
        %4606 = vmatpush1.msra.mxu0 %v4467
        %4607 = vmatprep.subr.mxu0 0.0
        %4608 = vmatpush1.msra.mxu0 %v4468
        %4609 = vmatprep.subr.mxu0 0.0
        %4610 = vmatpush1.msra.mxu0 %v4469
        %4611 = vmatprep.subr.mxu0 0.0
        %4612 = vmatpush1.msra.mxu0 %v4470
        %4613 = vmatprep.subr.mxu0 0.0
        %4614 = vmatpush1.msra.mxu0 %v4471
        %4615 = vmatprep.subr.mxu0 0.0
        %4616 = vmatpush1.msra.mxu0 %v4472
        %4617 = vmatprep.subr.mxu0 0.0
        %4618 = vmatpush1.msra.mxu0 %v4473
        %4619 = vmatprep.subr.mxu0 0.0
        %4620 = vmatpush1.msra.mxu0 %v4474
        %4621 = vmatprep.subr.mxu0 0.0
        %4622 = vmatpush1.msra.mxu0 %v4475
        %4623 = vmatprep.subr.mxu0 0.0
        %4624 = vmatpush1.msra.mxu0 %v4476
        %4625 = vmatprep.subr.mxu0 0.0
        %4626 = vmatpush1.msra.mxu0 %v4477
        %4627 = vmatprep.subr.mxu0 0.0
        %4628 = vmatpush1.msra.mxu0 %v4478
        %4629 = vmatprep.subr.mxu0 0.0
        %4630 = vmatpush1.msra.mxu0 %v4479
        %4631 = vmatprep.subr.mxu0 0.0
        %4632 = vmatpush1.msra.mxu0 %v4480
        %4633 = vmatprep.subr.mxu0 0.0
        %4634 = vmatpush1.msra.mxu0 %v4481
        %4635 = vmatprep.subr.mxu0 0.0
        %4636 = vmatpush1.msra.mxu0 %v4482
        %4637 = vmatprep.subr.mxu0 0.0
        %4638 = vmatpush1.msra.mxu0 %v4483
        %4639 = vmatprep.subr.mxu0 0.0
        %4640 = vmatpush1.msra.mxu0 %v4484
        %4641 = vmatprep.subr.mxu0 0.0
        %4642 = vmatpush1.msra.mxu0 %v4485
        %4643 = vmatprep.subr.mxu0 0.0
        %4644 = vmatpush1.msra.mxu0 %v4486
        %4645 = vmatprep.subr.mxu0 0.0
        %4646 = vmatpush1.msra.mxu0 %v4487
        %4647 = vmatprep.subr.mxu0 0.0
        %4648 = vmatpush1.msra.mxu0 %v4488
        %4649 = vmatprep.subr.mxu0 0.0
        %4650 = vmatpush1.msra.mxu0 %v4489
        %4651 = vmatprep.subr.mxu0 0.0
        %4652 = vmatpush1.msra.mxu0 %v4490
        %4653 = vmatprep.subr.mxu0 0.0
        %4654 = vmatpush1.msra.mxu0 %v4491
        %4655 = vmatprep.subr.mxu0 0.0
        %4656 = vmatpush1.msra.mxu0 %v4492
        %4657 = vmatprep.subr.mxu0 0.0
        %4658 = vmatpush1.msra.mxu0 %v4493
        %4659 = vmatprep.subr.mxu0 0.0
        %4660 = vmatpush1.msra.mxu0 %v4494
        %4661 = vmatprep.subr.mxu0 0.0
        %4662 = vmatpush1.msra.mxu0 %v4495
        %4663 = vmatprep.mubr.f32.mxu0 %v4457
        %4664 = vmatmul.mubr.f32.gmra.mrb[0].mxu0 %v4456
        %v4665 = vpop.f32.mrb[0].mxu0
        %v4666 = vadd.f32 %v4597, %v4665
        %v4667 = vpop.f32.mrb[0].mxu0
        %4668 = vdwg.mxu0
        %4669 = vmatprep.subr.mxu0 0.0
        %4670 = vmatpush1.msra.mxu0 %v4496
        %4671 = vmatprep.subr.mxu0 0.0
        %4672 = vmatpush1.msra.mxu0 %v4497
        %4673 = vmatprep.subr.mxu0 0.0
        %4674 = vmatpush1.msra.mxu0 %v4498
        %4675 = vmatprep.subr.mxu0 0.0
        %4676 = vmatpush1.msra.mxu0 %v4499
        %4677 = vmatprep.subr.mxu0 0.0
        %4678 = vmatpush1.msra.mxu0 %v4500
        %4679 = vmatprep.subr.mxu0 0.0
        %4680 = vmatpush1.msra.mxu0 %v4501
        %4681 = vmatprep.subr.mxu0 0.0
        %4682 = vmatpush1.msra.mxu0 %v4502
        %4683 = vmatprep.subr.mxu0 0.0
        %4684 = vmatpush1.msra.mxu0 %v4503
        %4685 = vmatprep.subr.mxu0 0.0
        %4686 = vmatpush1.msra.mxu0 %v4504
        %4687 = vmatprep.subr.mxu0 0.0
        %4688 = vmatpush1.msra.mxu0 %v4505
        %4689 = vmatprep.subr.mxu0 0.0
        %4690 = vmatpush1.msra.mxu0 %v4506
        %4691 = vmatprep.subr.mxu0 0.0
        %4692 = vmatpush1.msra.mxu0 %v4507
        %4693 = vmatprep.subr.mxu0 0.0
        %4694 = vmatpush1.msra.mxu0 %v4508
        %4695 = vmatprep.subr.mxu0 0.0
        %4696 = vmatpush1.msra.mxu0 %v4509
        %4697 = vmatprep.subr.mxu0 0.0
        %4698 = vmatpush1.msra.mxu0 %v4510
        %4699 = vmatprep.subr.mxu0 0.0
        %4700 = vmatpush1.msra.mxu0 %v4511
        %4701 = vmatprep.subr.mxu0 0.0
        %4702 = vmatpush1.msra.mxu0 %v4512
        %4703 = vmatprep.subr.mxu0 0.0
        %4704 = vmatpush1.msra.mxu0 %v4513
        %4705 = vmatprep.subr.mxu0 0.0
        %4706 = vmatpush1.msra.mxu0 %v4514
        %4707 = vmatprep.subr.mxu0 0.0
        %4708 = vmatpush1.msra.mxu0 %v4515
        %4709 = vmatprep.subr.mxu0 0.0
        %4710 = vmatpush1.msra.mxu0 %v4516
        %4711 = vmatprep.subr.mxu0 0.0
        %4712 = vmatpush1.msra.mxu0 %v4517
        %4713 = vmatprep.subr.mxu0 0.0
        %4714 = vmatpush1.msra.mxu0 %v4518
        %4715 = vmatprep.subr.mxu0 0.0
        %4716 = vmatpush1.msra.mxu0 %v4519
        %4717 = vmatprep.subr.mxu0 0.0
        %4718 = vmatpush1.msra.mxu0 %v4520
        %4719 = vmatprep.subr.mxu0 0.0
        %4720 = vmatpush1.msra.mxu0 %v4521
        %4721 = vmatprep.subr.mxu0 0.0
        %4722 = vmatpush1.msra.mxu0 %v4522
        %4723 = vmatprep.subr.mxu0 0.0
        %4724 = vmatpush1.msra.mxu0 %v4523
        %4725 = vmatprep.subr.mxu0 0.0
        %4726 = vmatpush1.msra.mxu0 %v4524
        %4727 = vmatprep.subr.mxu0 0.0
        %4728 = vmatpush1.msra.mxu0 %v4525
        %4729 = vmatprep.subr.mxu0 0.0
        %4730 = vmatpush1.msra.mxu0 %v4526
        %4731 = vmatprep.subr.mxu0 0.0
        %4732 = vmatpush1.msra.mxu0 %v4527
        %4733 = vmatprep.mubr.f32.mxu0 %v4459
        %4734 = vmatmul.mubr.f32.gmra.mrb[0].mxu0 %v4458
        %v4735 = vpop.f32.mrb[0].mxu0
        %v4736 = vadd.f32 %v4666, %v4735
        %v4737 = vpop.f32.mrb[0].mxu0
        %4738 = vdwg.mxu0
        %4739 = vmatprep.subr.mxu0 0.0
        %4740 = vmatpush1.msra.mxu0 %v4528
        %4741 = vmatprep.subr.mxu0 0.0
        %4742 = vmatpush1.msra.mxu0 %v4529
        %4743 = vmatprep.subr.mxu0 0.0
        %4744 = vmatpush1.msra.mxu0 %v4530
        %4745 = vmatprep.subr.mxu0 0.0
        %4746 = vmatpush1.msra.mxu0 %v4531
        %4747 = vmatprep.subr.mxu0 0.0
        %4748 = vmatpush1.msra.mxu0 %v4532
        %4749 = vmatprep.subr.mxu0 0.0
        %4750 = vmatpush1.msra.mxu0 %v4533
        %4751 = vmatprep.subr.mxu0 0.0
        %4752 = vmatpush1.msra.mxu0 %v4534
        %4753 = vmatprep.subr.mxu0 0.0
        %4754 = vmatpush1.msra.mxu0 %v4535
        %4755 = vmatprep.subr.mxu0 0.0
        %4756 = vmatpush1.msra.mxu0 %v4536
        %4757 = vmatprep.subr.mxu0 0.0
        %4758 = vmatpush1.msra.mxu0 %v4537
        %4759 = vmatprep.subr.mxu0 0.0
        %4760 = vmatpush1.msra.mxu0 %v4538
        %4761 = vmatprep.subr.mxu0 0.0
        %4762 = vmatpush1.msra.mxu0 %v4539
        %4763 = vmatprep.subr.mxu0 0.0
        %4764 = vmatpush1.msra.mxu0 %v4540
        %4765 = vmatprep.subr.mxu0 0.0
        %4766 = vmatpush1.msra.mxu0 %v4541
        %4767 = vmatprep.subr.mxu0 0.0
        %4768 = vmatpush1.msra.mxu0 %v4542
        %4769 = vmatprep.subr.mxu0 0.0
        %4770 = vmatpush1.msra.mxu0 %v4543
        %4771 = vmatprep.subr.mxu0 0.0
        %4772 = vmatpush1.msra.mxu0 %v4544
        %4773 = vmatprep.subr.mxu0 0.0
        %4774 = vmatpush1.msra.mxu0 %v4545
        %4775 = vmatprep.subr.mxu0 0.0
        %4776 = vmatpush1.msra.mxu0 %v4546
        %4777 = vmatprep.subr.mxu0 0.0
        %4778 = vmatpush1.msra.mxu0 %v4547
        %4779 = vmatprep.subr.mxu0 0.0
        %4780 = vmatpush1.msra.mxu0 %v4548
        %4781 = vmatprep.subr.mxu0 0.0
        %4782 = vmatpush1.msra.mxu0 %v4549
        %4783 = vmatprep.subr.mxu0 0.0
        %4784 = vmatpush1.msra.mxu0 %v4550
        %4785 = vmatprep.subr.mxu0 0.0
        %4786 = vmatpush1.msra.mxu0 %v4551
        %4787 = vmatprep.subr.mxu0 0.0
        %4788 = vmatpush1.msra.mxu0 %v4552
        %4789 = vmatprep.subr.mxu0 0.0
        %4790 = vmatpush1.msra.mxu0 %v4553
        %4791 = vmatprep.subr.mxu0 0.0
        %4792 = vmatpush1.msra.mxu0 %v4554
        %4793 = vmatprep.subr.mxu0 0.0
        %4794 = vmatpush1.msra.mxu0 %v4555
        %4795 = vmatprep.subr.mxu0 0.0
        %4796 = vmatpush1.msra.mxu0 %v4556
        %4797 = vmatprep.subr.mxu0 0.0
        %4798 = vmatpush1.msra.mxu0 %v4557
        %4799 = vmatprep.subr.mxu0 0.0
        %4800 = vmatpush1.msra.mxu0 %v4558
        %4801 = vmatprep.subr.mxu0 0.0
        %4802 = vmatpush1.msra.mxu0 %v4559
        %4803 = vmatprep.mubr.f32.mxu0 %v4461
        %4804 = vmatmul.mubr.f32.gmra.mrb[0].mxu0 %v4460
        %v4805 = vpop.f32.mrb[0].mxu0
        %v4806 = vadd.f32 %v4736, %v4805
        %v4807 = vpop.f32.mrb[0].mxu0
        %4808 = vdwg.mxu0
        %4809 = vmatprep.subr.mxu0 0.0
        %4810 = vmatpush1.msra.mxu0 %v4560
        %4811 = vmatprep.subr.mxu0 0.0
        %4812 = vmatpush1.msra.mxu0 %v4561
        %4813 = vmatprep.subr.mxu0 0.0
        %4814 = vmatpush1.msra.mxu0 %v4562
        %4815 = vmatprep.subr.mxu0 0.0
        %4816 = vmatpush1.msra.mxu0 %v4563
        %4817 = vmatprep.subr.mxu0 0.0
        %4818 = vmatpush1.msra.mxu0 %v4564
        %4819 = vmatprep.subr.mxu0 0.0
        %4820 = vmatpush1.msra.mxu0 %v4565
        %4821 = vmatprep.subr.mxu0 0.0
        %4822 = vmatpush1.msra.mxu0 %v4566
        %4823 = vmatprep.subr.mxu0 0.0
        %4824 = vmatpush1.msra.mxu0 %v4567
        %4825 = vmatprep.subr.mxu0 0.0
        %4826 = vmatpush1.msra.mxu0 %v4568
        %4827 = vmatprep.subr.mxu0 0.0
        %4828 = vmatpush1.msra.mxu0 %v4569
        %4829 = vmatprep.subr.mxu0 0.0
        %4830 = vmatpush1.msra.mxu0 %v4570
        %4831 = vmatprep.subr.mxu0 0.0
        %4832 = vmatpush1.msra.mxu0 %v4571
        %4833 = vmatprep.subr.mxu0 0.0
        %4834 = vmatpush1.msra.mxu0 %v4572
        %4835 = vmatprep.subr.mxu0 0.0
        %4836 = vmatpush1.msra.mxu0 %v4573
        %4837 = vmatprep.subr.mxu0 0.0
        %4838 = vmatpush1.msra.mxu0 %v4574
        %4839 = vmatprep.subr.mxu0 0.0
        %4840 = vmatpush1.msra.mxu0 %v4575
        %4841 = vmatprep.subr.mxu0 0.0
        %4842 = vmatpush1.msra.mxu0 %v4576
        %4843 = vmatprep.subr.mxu0 0.0
        %4844 = vmatpush1.msra.mxu0 %v4577
        %4845 = vmatprep.subr.mxu0 0.0
        %4846 = vmatpush1.msra.mxu0 %v4578
        %4847 = vmatprep.subr.mxu0 0.0
        %4848 = vmatpush1.msra.mxu0 %v4579
        %4849 = vmatprep.subr.mxu0 0.0
        %4850 = vmatpush1.msra.mxu0 %v4580
        %4851 = vmatprep.subr.mxu0 0.0
        %4852 = vmatpush1.msra.mxu0 %v4581
        %4853 = vmatprep.subr.mxu0 0.0
        %4854 = vmatpush1.msra.mxu0 %v4582
        %4855 = vmatprep.subr.mxu0 0.0
        %4856 = vmatpush1.msra.mxu0 %v4583
        %4857 = vmatprep.subr.mxu0 0.0
        %4858 = vmatpush1.msra.mxu0 %v4584
        %4859 = vmatprep.subr.mxu0 0.0
        %4860 = vmatpush1.msra.mxu0 %v4585
        %4861 = vmatprep.subr.mxu0 0.0
        %4862 = vmatpush1.msra.mxu0 %v4586
        %4863 = vmatprep.subr.mxu0 0.0
        %4864 = vmatpush1.msra.mxu0 %v4587
        %4865 = vmatprep.subr.mxu0 0.0
        %4866 = vmatpush1.msra.mxu0 %v4588
        %4867 = vmatprep.subr.mxu0 0.0
        %4868 = vmatpush1.msra.mxu0 %v4589
        %4869 = vmatprep.subr.mxu0 0.0
        %4870 = vmatpush1.msra.mxu0 %v4590
        %4871 = vmatprep.subr.mxu0 0.0
        %4872 = vmatpush1.msra.mxu0 %v4591
        %4873 = vmatprep.mubr.f32.mxu0 %v4463
        %4874 = vmatmul.mubr.f32.gmra.mrb[0].mxu0 %v4462
        %v4875 = vpop.f32.mrb[0].mxu0
        %v4876 = vadd.f32 %v4806, %v4875
        %v4877 = vpop.f32.mrb[0].mxu0
        %4878 = vdwg.mxu0
        %v4879 = vsel %vm875, %v4876, 0.0
        %4880 = vadd.xlane.f32.xlu0 %v4879
        %v4881 = vpop.xlane.xlu0 %4880
        %v4882 = vsub.f32 %v4881, %v4876
        %v4883 = vmul.f32 %v4882, 0.33333334
        %4885 = vset.pattern.permute.xlu0 0
        %4886 = vperm.xlu0 %4885, %v4876
        %v4887 = vpop.permute.xlu0 %4886
        %v4889 = vadd.f32 %v4887, %v4876
        %4891 = vset.pattern.permute.xlu0 0
        %4892 = vperm.xlu0 %4891, %v4883
        %v4893 = vpop.permute.xlu0 %4892
        %v4895 = vsub.f32 %v4889, %v4893
        %4896 = vst [vmem:[%s439] sm:$0x3] %v4895
        %p4897 = scmp.lt.s32.totalorder %s25, 7
        %s4898 = scalar_select %p4897, %s25, 7
        %s4899 = smul.addr %s4898, 2
        %s4900 = scalar_lea.vmem %s9, %s4899
        // Predicated region
        $region89: #{dqn_conv1d_forward.1} parent=55 // pred_check
          %p4901 = pneg %p237
        $region90: #{dqn_conv1d_forward.1} parent=55 // pred_check_branch
          %4903 = sbr.rel (%p4901) target = $region92
        $region91: #{dqn_conv1d_forward.1} parent=55 // pred_region
          _
        $region92: #{dqn_conv1d_forward.1} parent=55 // pred_fallthru
          _
      $region56: #{dqn_conv1d_forward.1} parent=5 // pred_fallthru
        _
      %p4904 = scmp.le.s32.totalorder 2, %s20
      // Predicated region
      $region93: #{dqn_conv1d_forward.1} parent=5 // pred_check
        %p4905 = pneg %p4904
      $region94: #{dqn_conv1d_forward.1} parent=5 // pred_check_branch
        %4907 = sbr.rel (%p4905) target = $region96
      $region95: #{dqn_conv1d_forward.1} parent=5 // pred_region
        %s4908 = ssub.s32 %s20, 2
        // Predicated region
        $region97: #{dqn_conv1d_forward.1} parent=95 // pred_check
          %p4909 = pneg %p243
        $region98: #{dqn_conv1d_forward.1} parent=95 // pred_check_branch
          %4911 = sbr.rel (%p4909) target = $region100
        $region99: #{dqn_conv1d_forward.1} parent=95 // pred_region
          %p4912 = scmp.lt.s32.totalorder %s26, 7
          %s4913 = scalar_select %p4912, %s26, 7
          %s4914 = smul.addr %s4913, 2
          %s4915 = scalar_lea.vmem %s9, %s4914
        $region100: #{dqn_conv1d_forward.1} parent=95 // pred_fallthru
          _
      $region96: #{dqn_conv1d_forward.1} parent=5 // pred_fallthru
        _
    $region6: #{dqn_conv1d_forward.1} parent=1 // loop_footer
      %s24 = sadd.s32 1, %s20
    $region7: #{dqn_conv1d_forward.1} parent=1 // loop_footer_branch
      %19 = sbr.rel target = $region3
    $region8: #{dqn_conv1d_forward.1} parent=1 // loop_exit
      _
    %4916 = vsyncpa [#allocation3], 1
    %s4917 = scalar_lea.sflag [#allocation3], 1
    %4918 = vsyncpa %s4917, 1
    %4919 = vsyncpa [#allocation5], 1
    %4920 = vsyncpa [#allocation8], 1
    %4921 = vsyncpa [#allocation11], 1
    %4922 = vsyncpa [#allocation14], 1

</llo_original>
